<compile_context>
chip_gen: v7x
topology: tpu7x:2x2x1
jax: 0.10.0
libtpu: 0.0.40
codegen_flags: <defaults>
</compile_context>

<pallas_src>
import functools

import numpy as np
import jax
import jax.numpy as jnp
from jax.experimental import pallas as pl
from jax.experimental.pallas import tpu as pltpu

# ---- small synthetic config consistent with the module structure ----
VOCAB = 100
EMBED = 128        # embedding_dim   (stands in for 768)
HIDDEN = 64        # lstm hidden_size (stands in for 256)
NUM_LABELS = 8
LP = 128           # label dim padded to full lane width for lane-dense stores
BATCH = 2
SEQ = 8
LN_EPS = 1e-5
NEG = -1e9         # "-inf" for padded CRF label slots


def _sigmoid(x):
    # exact sigmoid (exp on EUP, divide on VPU) -- numerical parity with torch.sigmoid
    return 1.0 / (1.0 + jnp.exp(-x))


# ----------------------------------------------------------------------------
# Fused kernel: LayerNorm + BiLSTM + Linear -> emissions, then CRF Viterbi fwd
# ----------------------------------------------------------------------------
def _fused_kernel(x_ref, gamma_ref, beta_ref,
                  wih_ref, whh_ref, bias_ref,
                  wout_ref, bout_ref,
                  start_ref, end_ref, trans_ref, mask_ref,
                  em_out, score_out, bp_out,
                  h_scr,
                  *, seq, batch, hidden, num_labels):
    S, B, H = seq, batch, hidden
    LPk = bout_ref.shape[-1]

    # ---- LayerNorm over the embedding dim on the (S*B, E) slab ----
    x = x_ref[...]
    mean = jnp.mean(x, axis=-1, keepdims=True)
    var = jnp.mean((x - mean) ** 2, axis=-1, keepdims=True)
    x_ln = (x - mean) * jax.lax.rsqrt(var + LN_EPS) * gamma_ref[...] + beta_ref[...]
    # dropout: identity in eval mode

    # ---- hoisted input projection: one MXU matmul feeds BOTH directions ----
    # (S*B, E) @ (E, 8H) -> (S*B, 8H); cols [0,4H) = fwd gates, [4H,8H) = bwd gates
    # wih_ref is bf16 already (pre-cast on host).
    gates_x = jnp.dot(x_ln.astype(jnp.bfloat16), wih_ref[...],
                      preferred_element_type=jnp.float32) + bias_ref[...]

    whh = whh_ref[...]        # (2H, 8H) bf16, block-diagonal [whh_f | 0 ; 0 | whh_b]

    def lstm_cell(gates, c_prev):
        i_g = _sigmoid(gates[:, 0 * H:1 * H])
        f_g = _sigmoid(gates[:, 1 * H:2 * H])
        g_g = jnp.tanh(gates[:, 2 * H:3 * H])
        o_g = _sigmoid(gates[:, 3 * H:4 * H])
        c_new = f_g * c_prev + i_g * g_g
        h_new = o_g * jnp.tanh(c_new)
        return h_new, c_new

    h_f = jnp.zeros((B, H), jnp.float32)
    c_f = jnp.zeros((B, H), jnp.float32)
    h_b = jnp.zeros((B, H), jnp.float32)
    c_b = jnp.zeros((B, H), jnp.float32)

    # ---- merged fwd/bwd recurrences, fully unrolled (S small & static) ----
    # ONE recurrent matmul per step: concat(h_f, h_b) @ block-diag Whh; the two
    # directions are independent so the single matmul serves both.
    for i in range(S):
        tf = i
        tb = S - 1 - i

        h_cat = jnp.concatenate([h_f, h_b], axis=1).astype(jnp.bfloat16)   # (B, 2H)
        rec = jnp.dot(h_cat, whh, preferred_element_type=jnp.float32)      # (B, 8H)

        g_f = gates_x[tf * B:(tf + 1) * B, 0:4 * H] + rec[:, 0:4 * H]
        g_b = gates_x[tb * B:(tb + 1) * B, 4 * H:8 * H] + rec[:, 4 * H:8 * H]
        h_f, c_f = lstm_cell(g_f, c_f)
        h_b, c_b = lstm_cell(g_b, c_b)
        h_scr[tf * B:(tf + 1) * B, 0:H] = h_f
        h_scr[tb * B:(tb + 1) * B, H:2 * H] = h_b

    # ---- output Linear, hoisted out of the loop: one lane-dense matmul ----
    # padded label columns of wout/bout are zero, so padded emissions are 0
    em = jnp.dot(h_scr[...].astype(jnp.bfloat16), wout_ref[...],
                 preferred_element_type=jnp.float32) + bout_ref[...]          # (S*B, LP)
    em_out[...] = em

    # ---- CRF Viterbi forward pass (torchcrf semantics), fused in-kernel ----
    # `prev` axis is only the real num_labels (=8, one sublane group); padded cur
    # label slots of start/end/trans are -1e9 so they never win the max.
    trans = trans_ref[...]                                     # (num_labels, LP)
    score = start_ref[...] + em[0:B, :]                        # (B, LP)
    # slot 0 of the backpointers is never read by backtracking; written for determinism
    bp_out[0:B, :] = jnp.zeros((B, LPk), jnp.int32)

    for t in range(1, S):
        em_t = em[t * B:(t + 1) * B, :]                        # (B, LP)
        # fused max/argmax over prev: unrolled 8-way compare chain, one pass.
        best_sc = score[:, 0:1] + trans[0:1, :]                # (B, LP)
        best_idx = jnp.zeros((B, LPk), jnp.int32)
        for p in range(1, num_labels):
            cand = score[:, p:p + 1] + trans[p:p + 1, :]       # (B, LP)
            better = cand > best_sc                            # strict > => first-occurrence argmax
            best_sc = jnp.where(better, cand, best_sc)
            best_idx = jnp.where(better, p, best_idx)
        bp_out[t * B:(t + 1) * B, :] = best_idx
        m_t = mask_ref[t * B:(t + 1) * B, :]                   # (B, 1), broadcast in-kernel
        score = jnp.where(m_t > 0, best_sc + em_t, score)

    score_out[...] = score + end_ref[...]


# ----------------------------------------------------------------------------
# pallas_call wrapper
# ----------------------------------------------------------------------------
def _full_specs(arrs):
    return [pl.BlockSpec(a.shape, lambda i, nd=a.ndim: (0,) * nd) for a in arrs]


def fused_bilstm_crf(x_tm, mask_tm, p):
    SB, _ = x_tm.shape
    ins = (x_tm, p['ln_gamma'], p['ln_beta'],
           p['wih_cat'], p['whh_bd'], p['b_cat'],
           p['wout_p'], p['bout_p'],
           p['crf_start_p'], p['crf_end_p'], p['crf_trans_p'], mask_tm)
    kernel = functools.partial(_fused_kernel, seq=SEQ, batch=BATCH,
                               hidden=HIDDEN, num_labels=NUM_LABELS)
    # TODO(synk): at real BERT dims (S=512, B=32, E=768) this whole-slab-in-VMEM layout
    # must be split: tile LayerNorm + input projection and the output Linear as a
    # pipelined (tm, tk) matmul grid (with a "parallel" batch/S axis so v7x's two
    # TensorCores split the work, 256-multiple tiles on v6e, 128 on v5e), and run the
    # BiLSTM recurrence + CRF as a separate time-stepped stage with (h, c) carried in
    # VMEM scratch across an "arbitrary" time axis.
    return pl.pallas_call(
        kernel,
        out_shape=(jax.ShapeDtypeStruct((SB, LP), jnp.float32),     # emissions (padded)
                   jax.ShapeDtypeStruct((BATCH, LP), jnp.float32),  # final Viterbi scores
                   jax.ShapeDtypeStruct((SB, LP), jnp.int32)),      # backpointers
        grid=(1,),
        in_specs=_full_specs(ins),
        out_specs=(pl.BlockSpec((SB, LP), lambda i: (0, 0)),
                   pl.BlockSpec((BATCH, LP), lambda i: (0, 0)),
                   pl.BlockSpec((SB, LP), lambda i: (0, 0))),
        scratch_shapes=[pltpu.VMEM((SB, 2 * HIDDEN), jnp.float32)],
        compiler_params=pltpu.CompilerParams(dimension_semantics=("arbitrary",)),
    )(*ins)


def viterbi_backtrack(score_final, bp, attention_mask):
    # host-side ragged backtracking (List[List[int]]), matches torchcrf.decode
    B = score_final.shape[0]
    preds = []
    for b in range(B):
        seq_len = int(attention_mask[b].sum())
        best = int(np.argmax(score_final[b]))
        tags = [best]
        for t in range(seq_len - 1, 0, -1):
            best = int(bp[t, b, best])
            tags.append(best)
        tags.reverse()
        preds.append(tags)
    return preds


# ----------------------------------------------------------------------------
# Parameter init (deterministic, PyTorch-style init distributions)
# ----------------------------------------------------------------------------
def init_params(key):
    keys = jax.random.split(key, 16)

    def u(k, shape, bound):
        return jax.random.uniform(k, shape, jnp.float32, -bound, bound)

    # TODO(synk): BERT encoder not reproduced; last_hidden_state is approximated by a
    # deterministic token-embedding lookup (normal * 0.02, BERT's embedding init std).
    embed = jax.random.normal(keys[0], (VOCAB, EMBED), jnp.float32) * 0.02

    kH = 1.0 / np.sqrt(HIDDEN)
    wih, whh, bias = {}, {}, {}
    for d, base in (('f', 1), ('b', 5)):
        w_ih = u(keys[base + 0], (4 * HIDDEN, EMBED), kH)
        w_hh = u(keys[base + 1], (4 * HIDDEN, HIDDEN), kH)
        b_ih = u(keys[base + 2], (4 * HIDDEN,), kH)
        b_hh = u(keys[base + 3], (4 * HIDDEN,), kH)
        wih[d] = jnp.transpose(w_ih)                            # (E, 4H)
        whh[d] = jnp.transpose(w_hh)                            # (H, 4H)
        bias[d] = (b_ih + b_hh).reshape(1, 4 * HIDDEN)

    # merged block-diagonal recurrent weight: concat(h_f, h_b) @ whh_bd hits both dirs
    whh_bd = jnp.zeros((2 * HIDDEN, 8 * HIDDEN), jnp.float32)
    whh_bd = whh_bd.at[:HIDDEN, :4 * HIDDEN].set(whh['f'])
    whh_bd = whh_bd.at[HIDDEN:, 4 * HIDDEN:].set(whh['b'])

    kL = 1.0 / np.sqrt(2 * HIDDEN)
    wout = jnp.transpose(u(keys[9], (NUM_LABELS, 2 * HIDDEN), kL))   # (2H, L)
    bout = u(keys[10], (NUM_LABELS,), kL)
    # torchcrf init: uniform(-0.1, 0.1)
    crf_start = u(keys[11], (NUM_LABELS,), 0.1)
    crf_end = u(keys[12], (NUM_LABELS,), 0.1)
    crf_trans = u(keys[13], (NUM_LABELS, NUM_LABELS), 0.1)

    # lane-dense padding of the label dim (L -> LP=128):
    #   linear weights/bias padded with 0 (padded emissions are 0 and get sliced off),
    #   CRF params padded with -1e9 so padded labels never win the Viterbi max.
    #   trans keeps only the real NUM_LABELS rows on the `prev` axis (one sublane group).
    wout_p = jnp.zeros((2 * HIDDEN, LP), jnp.float32).at[:, :NUM_LABELS].set(wout)
    bout_p = jnp.zeros((1, LP), jnp.float32).at[0, :NUM_LABELS].set(bout)
    start_p = jnp.full((1, LP), NEG, jnp.float32).at[0, :NUM_LABELS].set(crf_start)
    end_p = jnp.full((1, LP), NEG, jnp.float32).at[0, :NUM_LABELS].set(crf_end)
    trans_p = jnp.full((NUM_LABELS, LP), NEG, jnp.float32).at[:, :NUM_LABELS].set(crf_trans)

    return {
        'embed': embed,
        'ln_gamma': jnp.ones((1, EMBED), jnp.float32),
        'ln_beta': jnp.zeros((1, EMBED), jnp.float32),
        # matmul weights pre-cast to bf16 on host: halves weight DMA, no in-kernel casts
        'wih_cat': jnp.concatenate([wih['f'], wih['b']], axis=1).astype(jnp.bfloat16),
        'whh_bd': whh_bd.astype(jnp.bfloat16),
        'b_cat': jnp.concatenate([bias['f'], bias['b']], axis=1),   # (1, 8H) f32
        'wout_p': wout_p.astype(jnp.bfloat16),
        'bout_p': bout_p,
        'crf_start_p': start_p,
        'crf_end_p': end_p,
        'crf_trans_p': trans_p,
    }


# ----------------------------------------------------------------------------
# Forward pass (decode path, labels=None)
# ----------------------------------------------------------------------------
def forward(params, input_ids, attention_mask):
    # "BERT" last_hidden_state stand-in
    hidden = jnp.take(params['embed'], input_ids, axis=0)               # (B, S, E)
    # time-major, sublane-folded slab: row index = t*B + b
    x_tm = jnp.transpose(hidden, (1, 0, 2)).reshape(SEQ * BATCH, EMBED).astype(jnp.float32)
    # mask stays (S*B, 1); the kernel broadcasts it across lanes for free
    mask_tm = jnp.transpose(attention_mask, (1, 0)).astype(jnp.float32).reshape(SEQ * BATCH, 1)

    em, score, bp = fused_bilstm_crf(x_tm, mask_tm, params)

    emissions = em.reshape(SEQ, BATCH, LP)[:, :, :NUM_LABELS].transpose(1, 0, 2)  # (B,S,L)
    bp3 = np.asarray(bp).reshape(SEQ, BATCH, LP)
    predictions = viterbi_backtrack(np.asarray(score)[:, :NUM_LABELS], bp3,
                                    np.asarray(attention_mask))
    # TODO(synk): labels / CRF negative-log-likelihood loss branch not implemented.
    return {'predictions': predictions, 'emissions': emissions}


if __name__ == "__main__":
    key = jax.random.PRNGKey(0)
    pkey, dkey = jax.random.split(key)
    params = init_params(pkey)

    input_ids = jax.random.randint(dkey, (BATCH, SEQ), 0, VOCAB, dtype=jnp.int32)
    attention_mask = jnp.array([[1] * SEQ,
                                [1] * (SEQ - 2) + [0] * 2], dtype=jnp.int32)

    out = forward(params, input_ids, attention_mask)
    jax.block_until_ready(out['emissions'])
    assert out['emissions'].shape == (BATCH, SEQ, NUM_LABELS)
    assert len(out['predictions']) == BATCH
    assert len(out['predictions'][0]) == SEQ
    assert len(out['predictions'][1]) == SEQ - 2  # masked tail truncated
    assert all(0 <= t < NUM_LABELS for seq_tags in out['predictions'] for t in seq_tags)
    print("KERNEL_OK")
</pallas_src>

<mosaic_0001>
module attributes {stable_mosaic.version = 11 : i64} {
  func.func @_fused_kernel(%arg0: i32, %arg1: memref<16x128xf32, #tpu.memory_space<vmem>>, %arg2: memref<1x128xf32, #tpu.memory_space<vmem>>, %arg3: memref<1x128xf32, #tpu.memory_space<vmem>>, %arg4: memref<128x512xbf16, #tpu.memory_space<vmem>>, %arg5: memref<128x512xbf16, #tpu.memory_space<vmem>>, %arg6: memref<1x512xf32, #tpu.memory_space<vmem>>, %arg7: memref<128x128xbf16, #tpu.memory_space<vmem>>, %arg8: memref<1x128xf32, #tpu.memory_space<vmem>>, %arg9: memref<1x128xf32, #tpu.memory_space<vmem>>, %arg10: memref<1x128xf32, #tpu.memory_space<vmem>>, %arg11: memref<8x128xf32, #tpu.memory_space<vmem>>, %arg12: memref<16x1xf32, #tpu.memory_space<vmem>>, %arg13: memref<16x128xf32, #tpu.memory_space<vmem>>, %arg14: memref<2x128xf32, #tpu.memory_space<vmem>>, %arg15: memref<16x128xi32, #tpu.memory_space<vmem>>, %arg16: memref<16x128xf32, #tpu.memory_space<vmem>>) attributes {dimension_semantics = [#tpu.dimension_semantics<arbitrary>], iteration_bounds = array<i64: 1>, scalar_prefetch = 0 : i64, scratch_operands = 1 : i64, tpu.core_type = #tpu.core_type<tc>, window_params = [{pipeline_mode = #tpu.pipeline_mode<synchronous>, transform_indices = @transform_0, window_bounds = array<i64: 16, 128>}, {pipeline_mode = #tpu.pipeline_mode<synchronous>, transform_indices = @transform_1, window_bounds = array<i64: 1, 128>}, {pipeline_mode = #tpu.pipeline_mode<synchronous>, transform_indices = @transform_2, window_bounds = array<i64: 1, 128>}, {pipeline_mode = #tpu.pipeline_mode<synchronous>, transform_indices = @transform_3, window_bounds = array<i64: 128, 512>}, {pipeline_mode = #tpu.pipeline_mode<synchronous>, transform_indices = @transform_4, window_bounds = array<i64: 128, 512>}, {pipeline_mode = #tpu.pipeline_mode<synchronous>, transform_indices = @transform_5, window_bounds = array<i64: 1, 512>}, {pipeline_mode = #tpu.pipeline_mode<synchronous>, transform_indices = @transform_6, window_bounds = array<i64: 128, 128>}, {pipeline_mode = #tpu.pipeline_mode<synchronous>, transform_indices = @transform_7, window_bounds = array<i64: 1, 128>}, {pipeline_mode = #tpu.pipeline_mode<synchronous>, transform_indices = @transform_8, window_bounds = array<i64: 1, 128>}, {pipeline_mode = #tpu.pipeline_mode<synchronous>, transform_indices = @transform_9, window_bounds = array<i64: 1, 128>}, {pipeline_mode = #tpu.pipeline_mode<synchronous>, transform_indices = @transform_10, window_bounds = array<i64: 8, 128>}, {pipeline_mode = #tpu.pipeline_mode<synchronous>, transform_indices = @transform_11, window_bounds = array<i64: 16, 1>}, {pipeline_mode = #tpu.pipeline_mode<synchronous>, transform_indices = @transform_12, window_bounds = array<i64: 16, 128>}, {pipeline_mode = #tpu.pipeline_mode<synchronous>, transform_indices = @transform_13, window_bounds = array<i64: 2, 128>}, {pipeline_mode = #tpu.pipeline_mode<synchronous>, transform_indices = @transform_14, window_bounds = array<i64: 16, 128>}]} {
    %c0 = arith.constant 0 : index
    %c0_0 = arith.constant 0 : index
    %0 = vector.load %arg1[%c0, %c0_0] : memref<16x128xf32, #tpu.memory_space<vmem>>, vector<16x128xf32>
    %cst = arith.constant dense<0.000000e+00> : vector<16xf32>
    %1 = vector.multi_reduction <add>, %0, %cst [1] : vector<16x128xf32> to vector<16xf32>
    %2 = vector.shape_cast %1 : vector<16xf32> to vector<16x1xf32>
    %cst_1 = arith.constant 1.280000e+02 : f32
    %3 = vector.broadcast %cst_1 : f32 to vector<16x1xf32>
    %4 = arith.divf %2, %3 : vector<16x1xf32>
    %5 = vector.broadcast %4 : vector<16x1xf32> to vector<16x128xf32>
    %6 = arith.subf %0, %5 : vector<16x128xf32>
    %7 = arith.mulf %6, %6 : vector<16x128xf32>
    %cst_2 = arith.constant dense<0.000000e+00> : vector<16xf32>
    %8 = vector.multi_reduction <add>, %7, %cst_2 [1] : vector<16x128xf32> to vector<16xf32>
    %9 = vector.shape_cast %8 : vector<16xf32> to vector<16x1xf32>
    %cst_3 = arith.constant 1.280000e+02 : f32
    %10 = vector.broadcast %cst_3 : f32 to vector<16x1xf32>
    %11 = arith.divf %9, %10 : vector<16x1xf32>
    %12 = vector.broadcast %4 : vector<16x1xf32> to vector<16x128xf32>
    %13 = arith.subf %0, %12 : vector<16x128xf32>
    %cst_4 = arith.constant 9.99999974E-6 : f32
    %14 = vector.broadcast %cst_4 : f32 to vector<16x1xf32>
    %15 = arith.addf %11, %14 : vector<16x1xf32>
    %16 = math.rsqrt %15 : vector<16x1xf32>
    %17 = vector.broadcast %16 : vector<16x1xf32> to vector<16x128xf32>
    %18 = arith.mulf %13, %17 : vector<16x128xf32>
    %c0_5 = arith.constant 0 : index
    %c0_6 = arith.constant 0 : index
    %19 = vector.load %arg2[%c0_5, %c0_6] : memref<1x128xf32, #tpu.memory_space<vmem>>, vector<1x128xf32>
    %20 = vector.broadcast %19 : vector<1x128xf32> to vector<16x128xf32>
    %21 = arith.mulf %18, %20 : vector<16x128xf32>
    %c0_7 = arith.constant 0 : index
    %c0_8 = arith.constant 0 : index
    %22 = vector.load %arg3[%c0_7, %c0_8] : memref<1x128xf32, #tpu.memory_space<vmem>>, vector<1x128xf32>
    %23 = vector.broadcast %22 : vector<1x128xf32> to vector<16x128xf32>
    %24 = arith.addf %21, %23 : vector<16x128xf32>
    %25 = arith.truncf %24 : vector<16x128xf32> to vector<16x128xbf16>
    %c0_9 = arith.constant 0 : index
    %c0_10 = arith.constant 0 : index
    %26 = vector.load %arg4[%c0_9, %c0_10] : memref<128x512xbf16, #tpu.memory_space<vmem>>, vector<128x512xbf16>
    %cst_11 = arith.constant dense<0.000000e+00> : vector<16x512xf32>
    %27 = tpu.matmul %25, %26, %cst_11 {dimension_numbers = #tpu.dot_dimension_numbers<[1], [0], [0], [1], [0, 0, 1, 1], [], []>} : vector<16x128xbf16>, vector<128x512xbf16>, vector<16x512xf32> -> vector<16x512xf32>
    %c0_12 = arith.constant 0 : index
    %c0_13 = arith.constant 0 : index
    %28 = vector.load %arg6[%c0_12, %c0_13] : memref<1x512xf32, #tpu.memory_space<vmem>>, vector<1x512xf32>
    %29 = vector.broadcast %28 : vector<1x512xf32> to vector<16x512xf32>
    %30 = arith.addf %27, %29 : vector<16x512xf32>
    %c0_14 = arith.constant 0 : index
    %c0_15 = arith.constant 0 : index
    %31 = vector.load %arg5[%c0_14, %c0_15] : memref<128x512xbf16, #tpu.memory_space<vmem>>, vector<128x512xbf16>
    %cst_16 = arith.constant 0.000000e+00 : f32
    %32 = vector.broadcast %cst_16 : f32 to vector<2x64xf32>
    %cst_17 = arith.constant 0.000000e+00 : f32
    %33 = vector.broadcast %cst_17 : f32 to vector<2x64xf32>
    %cst_18 = arith.constant 0.000000e+00 : f32
    %34 = vector.broadcast %cst_18 : f32 to vector<2x64xf32>
    %cst_19 = arith.constant 0.000000e+00 : f32
    %35 = vector.broadcast %cst_19 : f32 to vector<2x64xf32>
    %36 = tpu.concatenate %32, %34 in 1 : vector<2x64xf32>, vector<2x64xf32> -> vector<2x128xf32>
    %37 = arith.truncf %36 : vector<2x128xf32> to vector<2x128xbf16>
    %cst_20 = arith.constant dense<0.000000e+00> : vector<2x512xf32>
    %38 = tpu.matmul %37, %31, %cst_20 {dimension_numbers = #tpu.dot_dimension_numbers<[1], [0], [0], [1], [0, 0, 1, 1], [], []>} : vector<2x128xbf16>, vector<128x512xbf16>, vector<2x512xf32> -> vector<2x512xf32>
    %39 = vector.extract_strided_slice %30 {offsets = [0, 0], sizes = [2, 256], strides = [1, 1]} : vector<16x512xf32> to vector<2x256xf32>
    %40 = vector.extract_strided_slice %38 {offsets = [0, 0], sizes = [2, 256], strides = [1, 1]} : vector<2x512xf32> to vector<2x256xf32>
    %41 = arith.addf %39, %40 : vector<2x256xf32>
    %42 = vector.extract_strided_slice %30 {offsets = [14, 256], sizes = [2, 256], strides = [1, 1]} : vector<16x512xf32> to vector<2x256xf32>
    %43 = vector.extract_strided_slice %38 {offsets = [0, 256], sizes = [2, 256], strides = [1, 1]} : vector<2x512xf32> to vector<2x256xf32>
    %44 = arith.addf %42, %43 : vector<2x256xf32>
    %45 = vector.extract_strided_slice %41 {offsets = [0, 0], sizes = [2, 64], strides = [1, 1]} : vector<2x256xf32> to vector<2x64xf32>
    %cst_21 = arith.constant 0.000000e+00 : f32
    %46 = vector.broadcast %cst_21 : f32 to vector<2x64xf32>
    %47 = arith.subf %46, %45 : vector<2x64xf32>
    %48 = math.exp %47 : vector<2x64xf32>
    %cst_22 = arith.constant 1.000000e+00 : f32
    %49 = vector.broadcast %cst_22 : f32 to vector<2x64xf32>
    %50 = arith.addf %49, %48 : vector<2x64xf32>
    %cst_23 = arith.constant 1.000000e+00 : f32
    %51 = vector.broadcast %cst_23 : f32 to vector<2x64xf32>
    %52 = arith.divf %51, %50 : vector<2x64xf32>
    %53 = vector.extract_strided_slice %41 {offsets = [0, 64], sizes = [2, 64], strides = [1, 1]} : vector<2x256xf32> to vector<2x64xf32>
    %cst_24 = arith.constant 0.000000e+00 : f32
    %54 = vector.broadcast %cst_24 : f32 to vector<2x64xf32>
    %55 = arith.subf %54, %53 : vector<2x64xf32>
    %56 = math.exp %55 : vector<2x64xf32>
    %cst_25 = arith.constant 1.000000e+00 : f32
    %57 = vector.broadcast %cst_25 : f32 to vector<2x64xf32>
    %58 = arith.addf %57, %56 : vector<2x64xf32>
    %cst_26 = arith.constant 1.000000e+00 : f32
    %59 = vector.broadcast %cst_26 : f32 to vector<2x64xf32>
    %60 = arith.divf %59, %58 : vector<2x64xf32>
    %61 = vector.extract_strided_slice %41 {offsets = [0, 128], sizes = [2, 64], strides = [1, 1]} : vector<2x256xf32> to vector<2x64xf32>
    %62 = math.tanh %61 : vector<2x64xf32>
    %63 = vector.extract_strided_slice %41 {offsets = [0, 192], sizes = [2, 64], strides = [1, 1]} : vector<2x256xf32> to vector<2x64xf32>
    %cst_27 = arith.constant 0.000000e+00 : f32
    %64 = vector.broadcast %cst_27 : f32 to vector<2x64xf32>
    %65 = arith.subf %64, %63 : vector<2x64xf32>
    %66 = math.exp %65 : vector<2x64xf32>
    %cst_28 = arith.constant 1.000000e+00 : f32
    %67 = vector.broadcast %cst_28 : f32 to vector<2x64xf32>
    %68 = arith.addf %67, %66 : vector<2x64xf32>
    %cst_29 = arith.constant 1.000000e+00 : f32
    %69 = vector.broadcast %cst_29 : f32 to vector<2x64xf32>
    %70 = arith.divf %69, %68 : vector<2x64xf32>
    %71 = arith.mulf %60, %33 : vector<2x64xf32>
    %72 = arith.mulf %52, %62 : vector<2x64xf32>
    %73 = arith.addf %71, %72 : vector<2x64xf32>
    %74 = math.tanh %73 : vector<2x64xf32>
    %75 = arith.mulf %70, %74 : vector<2x64xf32>
    %76 = vector.extract_strided_slice %44 {offsets = [0, 0], sizes = [2, 64], strides = [1, 1]} : vector<2x256xf32> to vector<2x64xf32>
    %cst_30 = arith.constant 0.000000e+00 : f32
    %77 = vector.broadcast %cst_30 : f32 to vector<2x64xf32>
    %78 = arith.subf %77, %76 : vector<2x64xf32>
    %79 = math.exp %78 : vector<2x64xf32>
    %cst_31 = arith.constant 1.000000e+00 : f32
    %80 = vector.broadcast %cst_31 : f32 to vector<2x64xf32>
    %81 = arith.addf %80, %79 : vector<2x64xf32>
    %cst_32 = arith.constant 1.000000e+00 : f32
    %82 = vector.broadcast %cst_32 : f32 to vector<2x64xf32>
    %83 = arith.divf %82, %81 : vector<2x64xf32>
    %84 = vector.extract_strided_slice %44 {offsets = [0, 64], sizes = [2, 64], strides = [1, 1]} : vector<2x256xf32> to vector<2x64xf32>
    %cst_33 = arith.constant 0.000000e+00 : f32
    %85 = vector.broadcast %cst_33 : f32 to vector<2x64xf32>
    %86 = arith.subf %85, %84 : vector<2x64xf32>
    %87 = math.exp %86 : vector<2x64xf32>
    %cst_34 = arith.constant 1.000000e+00 : f32
    %88 = vector.broadcast %cst_34 : f32 to vector<2x64xf32>
    %89 = arith.addf %88, %87 : vector<2x64xf32>
    %cst_35 = arith.constant 1.000000e+00 : f32
    %90 = vector.broadcast %cst_35 : f32 to vector<2x64xf32>
    %91 = arith.divf %90, %89 : vector<2x64xf32>
    %92 = vector.extract_strided_slice %44 {offsets = [0, 128], sizes = [2, 64], strides = [1, 1]} : vector<2x256xf32> to vector<2x64xf32>
    %93 = math.tanh %92 : vector<2x64xf32>
    %94 = vector.extract_strided_slice %44 {offsets = [0, 192], sizes = [2, 64], strides = [1, 1]} : vector<2x256xf32> to vector<2x64xf32>
    %cst_36 = arith.constant 0.000000e+00 : f32
    %95 = vector.broadcast %cst_36 : f32 to vector<2x64xf32>
    %96 = arith.subf %95, %94 : vector<2x64xf32>
    %97 = math.exp %96 : vector<2x64xf32>
    %cst_37 = arith.constant 1.000000e+00 : f32
    %98 = vector.broadcast %cst_37 : f32 to vector<2x64xf32>
    %99 = arith.addf %98, %97 : vector<2x64xf32>
    %cst_38 = arith.constant 1.000000e+00 : f32
    %100 = vector.broadcast %cst_38 : f32 to vector<2x64xf32>
    %101 = arith.divf %100, %99 : vector<2x64xf32>
    %102 = arith.mulf %91, %35 : vector<2x64xf32>
    %103 = arith.mulf %83, %93 : vector<2x64xf32>
    %104 = arith.addf %102, %103 : vector<2x64xf32>
    %105 = math.tanh %104 : vector<2x64xf32>
    %106 = arith.mulf %101, %105 : vector<2x64xf32>
    %c0_39 = arith.constant 0 : index
    %c0_40 = arith.constant 0 : index
    %107 = vector.load %arg16[%c0_39, %c0_40] : memref<16x128xf32, #tpu.memory_space<vmem>>, vector<2x64xf32>
    tpu.vector_store %arg16[%c0_39, %c0_40], %75 {strides = array<i32>} : memref<16x128xf32, #tpu.memory_space<vmem>>, vector<2x64xf32>,
    %c14 = arith.constant 14 : index
    %c64 = arith.constant 64 : index
    %108 = vector.load %arg16[%c14, %c64] : memref<16x128xf32, #tpu.memory_space<vmem>>, vector<2x64xf32>
    tpu.vector_store %arg16[%c14, %c64], %106 {strides = array<i32>} : memref<16x128xf32, #tpu.memory_space<vmem>>, vector<2x64xf32>,
    %109 = tpu.concatenate %75, %106 in 1 : vector<2x64xf32>, vector<2x64xf32> -> vector<2x128xf32>
    %110 = arith.truncf %109 : vector<2x128xf32> to vector<2x128xbf16>
    %cst_41 = arith.constant dense<0.000000e+00> : vector<2x512xf32>
    %111 = tpu.matmul %110, %31, %cst_41 {dimension_numbers = #tpu.dot_dimension_numbers<[1], [0], [0], [1], [0, 0, 1, 1], [], []>} : vector<2x128xbf16>, vector<128x512xbf16>, vector<2x512xf32> -> vector<2x512xf32>
    %112 = vector.extract_strided_slice %30 {offsets = [2, 0], sizes = [2, 256], strides = [1, 1]} : vector<16x512xf32> to vector<2x256xf32>
    %113 = vector.extract_strided_slice %111 {offsets = [0, 0], sizes = [2, 256], strides = [1, 1]} : vector<2x512xf32> to vector<2x256xf32>
    %114 = arith.addf %112, %113 : vector<2x256xf32>
    %115 = vector.extract_strided_slice %30 {offsets = [12, 256], sizes = [2, 256], strides = [1, 1]} : vector<16x512xf32> to vector<2x256xf32>
    %116 = vector.extract_strided_slice %111 {offsets = [0, 256], sizes = [2, 256], strides = [1, 1]} : vector<2x512xf32> to vector<2x256xf32>
    %117 = arith.addf %115, %116 : vector<2x256xf32>
    %118 = vector.extract_strided_slice %114 {offsets = [0, 0], sizes = [2, 64], strides = [1, 1]} : vector<2x256xf32> to vector<2x64xf32>
    %cst_42 = arith.constant 0.000000e+00 : f32
    %119 = vector.broadcast %cst_42 : f32 to vector<2x64xf32>
    %120 = arith.subf %119, %118 : vector<2x64xf32>
    %121 = math.exp %120 : vector<2x64xf32>
    %cst_43 = arith.constant 1.000000e+00 : f32
    %122 = vector.broadcast %cst_43 : f32 to vector<2x64xf32>
    %123 = arith.addf %122, %121 : vector<2x64xf32>
    %cst_44 = arith.constant 1.000000e+00 : f32
    %124 = vector.broadcast %cst_44 : f32 to vector<2x64xf32>
    %125 = arith.divf %124, %123 : vector<2x64xf32>
    %126 = vector.extract_strided_slice %114 {offsets = [0, 64], sizes = [2, 64], strides = [1, 1]} : vector<2x256xf32> to vector<2x64xf32>
    %cst_45 = arith.constant 0.000000e+00 : f32
    %127 = vector.broadcast %cst_45 : f32 to vector<2x64xf32>
    %128 = arith.subf %127, %126 : vector<2x64xf32>
    %129 = math.exp %128 : vector<2x64xf32>
    %cst_46 = arith.constant 1.000000e+00 : f32
    %130 = vector.broadcast %cst_46 : f32 to vector<2x64xf32>
    %131 = arith.addf %130, %129 : vector<2x64xf32>
    %cst_47 = arith.constant 1.000000e+00 : f32
    %132 = vector.broadcast %cst_47 : f32 to vector<2x64xf32>
    %133 = arith.divf %132, %131 : vector<2x64xf32>
    %134 = vector.extract_strided_slice %114 {offsets = [0, 128], sizes = [2, 64], strides = [1, 1]} : vector<2x256xf32> to vector<2x64xf32>
    %135 = math.tanh %134 : vector<2x64xf32>
    %136 = vector.extract_strided_slice %114 {offsets = [0, 192], sizes = [2, 64], strides = [1, 1]} : vector<2x256xf32> to vector<2x64xf32>
    %cst_48 = arith.constant 0.000000e+00 : f32
    %137 = vector.broadcast %cst_48 : f32 to vector<2x64xf32>
    %138 = arith.subf %137, %136 : vector<2x64xf32>
    %139 = math.exp %138 : vector<2x64xf32>
    %cst_49 = arith.constant 1.000000e+00 : f32
    %140 = vector.broadcast %cst_49 : f32 to vector<2x64xf32>
    %141 = arith.addf %140, %139 : vector<2x64xf32>
    %cst_50 = arith.constant 1.000000e+00 : f32
    %142 = vector.broadcast %cst_50 : f32 to vector<2x64xf32>
    %143 = arith.divf %142, %141 : vector<2x64xf32>
    %144 = arith.mulf %133, %73 : vector<2x64xf32>
    %145 = arith.mulf %125, %135 : vector<2x64xf32>
    %146 = arith.addf %144, %145 : vector<2x64xf32>
    %147 = math.tanh %146 : vector<2x64xf32>
    %148 = arith.mulf %143, %147 : vector<2x64xf32>
    %149 = vector.extract_strided_slice %117 {offsets = [0, 0], sizes = [2, 64], strides = [1, 1]} : vector<2x256xf32> to vector<2x64xf32>
    %cst_51 = arith.constant 0.000000e+00 : f32
    %150 = vector.broadcast %cst_51 : f32 to vector<2x64xf32>
    %151 = arith.subf %150, %149 : vector<2x64xf32>
    %152 = math.exp %151 : vector<2x64xf32>
    %cst_52 = arith.constant 1.000000e+00 : f32
    %153 = vector.broadcast %cst_52 : f32 to vector<2x64xf32>
    %154 = arith.addf %153, %152 : vector<2x64xf32>
    %cst_53 = arith.constant 1.000000e+00 : f32
    %155 = vector.broadcast %cst_53 : f32 to vector<2x64xf32>
    %156 = arith.divf %155, %154 : vector<2x64xf32>
    %157 = vector.extract_strided_slice %117 {offsets = [0, 64], sizes = [2, 64], strides = [1, 1]} : vector<2x256xf32> to vector<2x64xf32>
    %cst_54 = arith.constant 0.000000e+00 : f32
    %158 = vector.broadcast %cst_54 : f32 to vector<2x64xf32>
    %159 = arith.subf %158, %157 : vector<2x64xf32>
    %160 = math.exp %159 : vector<2x64xf32>
    %cst_55 = arith.constant 1.000000e+00 : f32
    %161 = vector.broadcast %cst_55 : f32 to vector<2x64xf32>
    %162 = arith.addf %161, %160 : vector<2x64xf32>
    %cst_56 = arith.constant 1.000000e+00 : f32
    %163 = vector.broadcast %cst_56 : f32 to vector<2x64xf32>
    %164 = arith.divf %163, %162 : vector<2x64xf32>
    %165 = vector.extract_strided_slice %117 {offsets = [0, 128], sizes = [2, 64], strides = [1, 1]} : vector<2x256xf32> to vector<2x64xf32>
    %166 = math.tanh %165 : vector<2x64xf32>
    %167 = vector.extract_strided_slice %117 {offsets = [0, 192], sizes = [2, 64], strides = [1, 1]} : vector<2x256xf32> to vector<2x64xf32>
    %cst_57 = arith.constant 0.000000e+00 : f32
    %168 = vector.broadcast %cst_57 : f32 to vector<2x64xf32>
    %169 = arith.subf %168, %167 : vector<2x64xf32>
    %170 = math.exp %169 : vector<2x64xf32>
    %cst_58 = arith.constant 1.000000e+00 : f32
    %171 = vector.broadcast %cst_58 : f32 to vector<2x64xf32>
    %172 = arith.addf %171, %170 : vector<2x64xf32>
    %cst_59 = arith.constant 1.000000e+00 : f32
    %173 = vector.broadcast %cst_59 : f32 to vector<2x64xf32>
    %174 = arith.divf %173, %172 : vector<2x64xf32>
    %175 = arith.mulf %164, %104 : vector<2x64xf32>
    %176 = arith.mulf %156, %166 : vector<2x64xf32>
    %177 = arith.addf %175, %176 : vector<2x64xf32>
    %178 = math.tanh %177 : vector<2x64xf32>
    %179 = arith.mulf %174, %178 : vector<2x64xf32>
    %c2 = arith.constant 2 : index
    %c0_60 = arith.constant 0 : index
    %180 = vector.load %arg16[%c2, %c0_60] : memref<16x128xf32, #tpu.memory_space<vmem>>, vector<2x64xf32>
    tpu.vector_store %arg16[%c2, %c0_60], %148 {strides = array<i32>} : memref<16x128xf32, #tpu.memory_space<vmem>>, vector<2x64xf32>,
    %c12 = arith.constant 12 : index
    %c64_61 = arith.constant 64 : index
    %181 = vector.load %arg16[%c12, %c64_61] : memref<16x128xf32, #tpu.memory_space<vmem>>, vector<2x64xf32>
    tpu.vector_store %arg16[%c12, %c64_61], %179 {strides = array<i32>} : memref<16x128xf32, #tpu.memory_space<vmem>>, vector<2x64xf32>,
    %182 = tpu.concatenate %148, %179 in 1 : vector<2x64xf32>, vector<2x64xf32> -> vector<2x128xf32>
    %183 = arith.truncf %182 : vector<2x128xf32> to vector<2x128xbf16>
    %cst_62 = arith.constant dense<0.000000e+00> : vector<2x512xf32>
    %184 = tpu.matmul %183, %31, %cst_62 {dimension_numbers = #tpu.dot_dimension_numbers<[1], [0], [0], [1], [0, 0, 1, 1], [], []>} : vector<2x128xbf16>, vector<128x512xbf16>, vector<2x512xf32> -> vector<2x512xf32>
    %185 = vector.extract_strided_slice %30 {offsets = [4, 0], sizes = [2, 256], strides = [1, 1]} : vector<16x512xf32> to vector<2x256xf32>
    %186 = vector.extract_strided_slice %184 {offsets = [0, 0], sizes = [2, 256], strides = [1, 1]} : vector<2x512xf32> to vector<2x256xf32>
    %187 = arith.addf %185, %186 : vector<2x256xf32>
    %188 = vector.extract_strided_slice %30 {offsets = [10, 256], sizes = [2, 256], strides = [1, 1]} : vector<16x512xf32> to vector<2x256xf32>
    %189 = vector.extract_strided_slice %184 {offsets = [0, 256], sizes = [2, 256], strides = [1, 1]} : vector<2x512xf32> to vector<2x256xf32>
    %190 = arith.addf %188, %189 : vector<2x256xf32>
    %191 = vector.extract_strided_slice %187 {offsets = [0, 0], sizes = [2, 64], strides = [1, 1]} : vector<2x256xf32> to vector<2x64xf32>
    %cst_63 = arith.constant 0.000000e+00 : f32
    %192 = vector.broadcast %cst_63 : f32 to vector<2x64xf32>
    %193 = arith.subf %192, %191 : vector<2x64xf32>
    %194 = math.exp %193 : vector<2x64xf32>
    %cst_64 = arith.constant 1.000000e+00 : f32
    %195 = vector.broadcast %cst_64 : f32 to vector<2x64xf32>
    %196 = arith.addf %195, %194 : vector<2x64xf32>
    %cst_65 = arith.constant 1.000000e+00 : f32
    %197 = vector.broadcast %cst_65 : f32 to vector<2x64xf32>
    %198 = arith.divf %197, %196 : vector<2x64xf32>
    %199 = vector.extract_strided_slice %187 {offsets = [0, 64], sizes = [2, 64], strides = [1, 1]} : vector<2x256xf32> to vector<2x64xf32>
    %cst_66 = arith.constant 0.000000e+00 : f32
    %200 = vector.broadcast %cst_66 : f32 to vector<2x64xf32>
    %201 = arith.subf %200, %199 : vector<2x64xf32>
    %202 = math.exp %201 : vector<2x64xf32>
    %cst_67 = arith.constant 1.000000e+00 : f32
    %203 = vector.broadcast %cst_67 : f32 to vector<2x64xf32>
    %204 = arith.addf %203, %202 : vector<2x64xf32>
    %cst_68 = arith.constant 1.000000e+00 : f32
    %205 = vector.broadcast %cst_68 : f32 to vector<2x64xf32>
    %206 = arith.divf %205, %204 : vector<2x64xf32>
    %207 = vector.extract_strided_slice %187 {offsets = [0, 128], sizes = [2, 64], strides = [1, 1]} : vector<2x256xf32> to vector<2x64xf32>
    %208 = math.tanh %207 : vector<2x64xf32>
    %209 = vector.extract_strided_slice %187 {offsets = [0, 192], sizes = [2, 64], strides = [1, 1]} : vector<2x256xf32> to vector<2x64xf32>
    %cst_69 = arith.constant 0.000000e+00 : f32
    %210 = vector.broadcast %cst_69 : f32 to vector<2x64xf32>
    %211 = arith.subf %210, %209 : vector<2x64xf32>
    %212 = math.exp %211 : vector<2x64xf32>
    %cst_70 = arith.constant 1.000000e+00 : f32
    %213 = vector.broadcast %cst_70 : f32 to vector<2x64xf32>
    %214 = arith.addf %213, %212 : vector<2x64xf32>
    %cst_71 = arith.constant 1.000000e+00 : f32
    %215 = vector.broadcast %cst_71 : f32 to vector<2x64xf32>
    %216 = arith.divf %215, %214 : vector<2x64xf32>
    %217 = arith.mulf %206, %146 : vector<2x64xf32>
    %218 = arith.mulf %198, %208 : vector<2x64xf32>
    %219 = arith.addf %217, %218 : vector<2x64xf32>
    %220 = math.tanh %219 : vector<2x64xf32>
    %221 = arith.mulf %216, %220 : vector<2x64xf32>
    %222 = vector.extract_strided_slice %190 {offsets = [0, 0], sizes = [2, 64], strides = [1, 1]} : vector<2x256xf32> to vector<2x64xf32>
    %cst_72 = arith.constant 0.000000e+00 : f32
    %223 = vector.broadcast %cst_72 : f32 to vector<2x64xf32>
    %224 = arith.subf %223, %222 : vector<2x64xf32>
    %225 = math.exp %224 : vector<2x64xf32>
    %cst_73 = arith.constant 1.000000e+00 : f32
    %226 = vector.broadcast %cst_73 : f32 to vector<2x64xf32>
    %227 = arith.addf %226, %225 : vector<2x64xf32>
    %cst_74 = arith.constant 1.000000e+00 : f32
    %228 = vector.broadcast %cst_74 : f32 to vector<2x64xf32>
    %229 = arith.divf %228, %227 : vector<2x64xf32>
    %230 = vector.extract_strided_slice %190 {offsets = [0, 64], sizes = [2, 64], strides = [1, 1]} : vector<2x256xf32> to vector<2x64xf32>
    %cst_75 = arith.constant 0.000000e+00 : f32
    %231 = vector.broadcast %cst_75 : f32 to vector<2x64xf32>
    %232 = arith.subf %231, %230 : vector<2x64xf32>
    %233 = math.exp %232 : vector<2x64xf32>
    %cst_76 = arith.constant 1.000000e+00 : f32
    %234 = vector.broadcast %cst_76 : f32 to vector<2x64xf32>
    %235 = arith.addf %234, %233 : vector<2x64xf32>
    %cst_77 = arith.constant 1.000000e+00 : f32
    %236 = vector.broadcast %cst_77 : f32 to vector<2x64xf32>
    %237 = arith.divf %236, %235 : vector<2x64xf32>
    %238 = vector.extract_strided_slice %190 {offsets = [0, 128], sizes = [2, 64], strides = [1, 1]} : vector<2x256xf32> to vector<2x64xf32>
    %239 = math.tanh %238 : vector<2x64xf32>
    %240 = vector.extract_strided_slice %190 {offsets = [0, 192], sizes = [2, 64], strides = [1, 1]} : vector<2x256xf32> to vector<2x64xf32>
    %cst_78 = arith.constant 0.000000e+00 : f32
    %241 = vector.broadcast %cst_78 : f32 to vector<2x64xf32>
    %242 = arith.subf %241, %240 : vector<2x64xf32>
    %243 = math.exp %242 : vector<2x64xf32>
    %cst_79 = arith.constant 1.000000e+00 : f32
    %244 = vector.broadcast %cst_79 : f32 to vector<2x64xf32>
    %245 = arith.addf %244, %243 : vector<2x64xf32>
    %cst_80 = arith.constant 1.000000e+00 : f32
    %246 = vector.broadcast %cst_80 : f32 to vector<2x64xf32>
    %247 = arith.divf %246, %245 : vector<2x64xf32>
    %248 = arith.mulf %237, %177 : vector<2x64xf32>
    %249 = arith.mulf %229, %239 : vector<2x64xf32>
    %250 = arith.addf %248, %249 : vector<2x64xf32>
    %251 = math.tanh %250 : vector<2x64xf32>
    %252 = arith.mulf %247, %251 : vector<2x64xf32>
    %c4 = arith.constant 4 : index
    %c0_81 = arith.constant 0 : index
    %253 = vector.load %arg16[%c4, %c0_81] : memref<16x128xf32, #tpu.memory_space<vmem>>, vector<2x64xf32>
    tpu.vector_store %arg16[%c4, %c0_81], %221 {strides = array<i32>} : memref<16x128xf32, #tpu.memory_space<vmem>>, vector<2x64xf32>,
    %c10 = arith.constant 10 : index
    %c64_82 = arith.constant 64 : index
    %254 = vector.load %arg16[%c10, %c64_82] : memref<16x128xf32, #tpu.memory_space<vmem>>, vector<2x64xf32>
    tpu.vector_store %arg16[%c10, %c64_82], %252 {strides = array<i32>} : memref<16x128xf32, #tpu.memory_space<vmem>>, vector<2x64xf32>,
    %255 = tpu.concatenate %221, %252 in 1 : vector<2x64xf32>, vector<2x64xf32> -> vector<2x128xf32>
    %256 = arith.truncf %255 : vector<2x128xf32> to vector<2x128xbf16>
    %cst_83 = arith.constant dense<0.000000e+00> : vector<2x512xf32>
    %257 = tpu.matmul %256, %31, %cst_83 {dimension_numbers = #tpu.dot_dimension_numbers<[1], [0], [0], [1], [0, 0, 1, 1], [], []>} : vector<2x128xbf16>, vector<128x512xbf16>, vector<2x512xf32> -> vector<2x512xf32>
    %258 = vector.extract_strided_slice %30 {offsets = [6, 0], sizes = [2, 256], strides = [1, 1]} : vector<16x512xf32> to vector<2x256xf32>
    %259 = vector.extract_strided_slice %257 {offsets = [0, 0], sizes = [2, 256], strides = [1, 1]} : vector<2x512xf32> to vector<2x256xf32>
    %260 = arith.addf %258, %259 : vector<2x256xf32>
    %261 = vector.extract_strided_slice %30 {offsets = [8, 256], sizes = [2, 256], strides = [1, 1]} : vector<16x512xf32> to vector<2x256xf32>
    %262 = vector.extract_strided_slice %257 {offsets = [0, 256], sizes = [2, 256], strides = [1, 1]} : vector<2x512xf32> to vector<2x256xf32>
    %263 = arith.addf %261, %262 : vector<2x256xf32>
    %264 = vector.extract_strided_slice %260 {offsets = [0, 0], sizes = [2, 64], strides = [1, 1]} : vector<2x256xf32> to vector<2x64xf32>
    %cst_84 = arith.constant 0.000000e+00 : f32
    %265 = vector.broadcast %cst_84 : f32 to vector<2x64xf32>
    %266 = arith.subf %265, %264 : vector<2x64xf32>
    %267 = math.exp %266 : vector<2x64xf32>
    %cst_85 = arith.constant 1.000000e+00 : f32
    %268 = vector.broadcast %cst_85 : f32 to vector<2x64xf32>
    %269 = arith.addf %268, %267 : vector<2x64xf32>
    %cst_86 = arith.constant 1.000000e+00 : f32
    %270 = vector.broadcast %cst_86 : f32 to vector<2x64xf32>
    %271 = arith.divf %270, %269 : vector<2x64xf32>
    %272 = vector.extract_strided_slice %260 {offsets = [0, 64], sizes = [2, 64], strides = [1, 1]} : vector<2x256xf32> to vector<2x64xf32>
    %cst_87 = arith.constant 0.000000e+00 : f32
    %273 = vector.broadcast %cst_87 : f32 to vector<2x64xf32>
    %274 = arith.subf %273, %272 : vector<2x64xf32>
    %275 = math.exp %274 : vector<2x64xf32>
    %cst_88 = arith.constant 1.000000e+00 : f32
    %276 = vector.broadcast %cst_88 : f32 to vector<2x64xf32>
    %277 = arith.addf %276, %275 : vector<2x64xf32>
    %cst_89 = arith.constant 1.000000e+00 : f32
    %278 = vector.broadcast %cst_89 : f32 to vector<2x64xf32>
    %279 = arith.divf %278, %277 : vector<2x64xf32>
    %280 = vector.extract_strided_slice %260 {offsets = [0, 128], sizes = [2, 64], strides = [1, 1]} : vector<2x256xf32> to vector<2x64xf32>
    %281 = math.tanh %280 : vector<2x64xf32>
    %282 = vector.extract_strided_slice %260 {offsets = [0, 192], sizes = [2, 64], strides = [1, 1]} : vector<2x256xf32> to vector<2x64xf32>
    %cst_90 = arith.constant 0.000000e+00 : f32
    %283 = vector.broadcast %cst_90 : f32 to vector<2x64xf32>
    %284 = arith.subf %283, %282 : vector<2x64xf32>
    %285 = math.exp %284 : vector<2x64xf32>
    %cst_91 = arith.constant 1.000000e+00 : f32
    %286 = vector.broadcast %cst_91 : f32 to vector<2x64xf32>
    %287 = arith.addf %286, %285 : vector<2x64xf32>
    %cst_92 = arith.constant 1.000000e+00 : f32
    %288 = vector.broadcast %cst_92 : f32 to vector<2x64xf32>
    %289 = arith.divf %288, %287 : vector<2x64xf32>
    %290 = arith.mulf %279, %219 : vector<2x64xf32>
    %291 = arith.mulf %271, %281 : vector<2x64xf32>
    %292 = arith.addf %290, %291 : vector<2x64xf32>
    %293 = math.tanh %292 : vector<2x64xf32>
    %294 = arith.mulf %289, %293 : vector<2x64xf32>
    %295 = vector.extract_strided_slice %263 {offsets = [0, 0], sizes = [2, 64], strides = [1, 1]} : vector<2x256xf32> to vector<2x64xf32>
    %cst_93 = arith.constant 0.000000e+00 : f32
    %296 = vector.broadcast %cst_93 : f32 to vector<2x64xf32>
    %297 = arith.subf %296, %295 : vector<2x64xf32>
    %298 = math.exp %297 : vector<2x64xf32>
    %cst_94 = arith.constant 1.000000e+00 : f32
    %299 = vector.broadcast %cst_94 : f32 to vector<2x64xf32>
    %300 = arith.addf %299, %298 : vector<2x64xf32>
    %cst_95 = arith.constant 1.000000e+00 : f32
    %301 = vector.broadcast %cst_95 : f32 to vector<2x64xf32>
    %302 = arith.divf %301, %300 : vector<2x64xf32>
    %303 = vector.extract_strided_slice %263 {offsets = [0, 64], sizes = [2, 64], strides = [1, 1]} : vector<2x256xf32> to vector<2x64xf32>
    %cst_96 = arith.constant 0.000000e+00 : f32
    %304 = vector.broadcast %cst_96 : f32 to vector<2x64xf32>
    %305 = arith.subf %304, %303 : vector<2x64xf32>
    %306 = math.exp %305 : vector<2x64xf32>
    %cst_97 = arith.constant 1.000000e+00 : f32
    %307 = vector.broadcast %cst_97 : f32 to vector<2x64xf32>
    %308 = arith.addf %307, %306 : vector<2x64xf32>
    %cst_98 = arith.constant 1.000000e+00 : f32
    %309 = vector.broadcast %cst_98 : f32 to vector<2x64xf32>
    %310 = arith.divf %309, %308 : vector<2x64xf32>
    %311 = vector.extract_strided_slice %263 {offsets = [0, 128], sizes = [2, 64], strides = [1, 1]} : vector<2x256xf32> to vector<2x64xf32>
    %312 = math.tanh %311 : vector<2x64xf32>
    %313 = vector.extract_strided_slice %263 {offsets = [0, 192], sizes = [2, 64], strides = [1, 1]} : vector<2x256xf32> to vector<2x64xf32>
    %cst_99 = arith.constant 0.000000e+00 : f32
    %314 = vector.broadcast %cst_99 : f32 to vector<2x64xf32>
    %315 = arith.subf %314, %313 : vector<2x64xf32>
    %316 = math.exp %315 : vector<2x64xf32>
    %cst_100 = arith.constant 1.000000e+00 : f32
    %317 = vector.broadcast %cst_100 : f32 to vector<2x64xf32>
    %318 = arith.addf %317, %316 : vector<2x64xf32>
    %cst_101 = arith.constant 1.000000e+00 : f32
    %319 = vector.broadcast %cst_101 : f32 to vector<2x64xf32>
    %320 = arith.divf %319, %318 : vector<2x64xf32>
    %321 = arith.mulf %310, %250 : vector<2x64xf32>
    %322 = arith.mulf %302, %312 : vector<2x64xf32>
    %323 = arith.addf %321, %322 : vector<2x64xf32>
    %324 = math.tanh %323 : vector<2x64xf32>
    %325 = arith.mulf %320, %324 : vector<2x64xf32>
    %c6 = arith.constant 6 : index
    %c0_102 = arith.constant 0 : index
    %326 = vector.load %arg16[%c6, %c0_102] : memref<16x128xf32, #tpu.memory_space<vmem>>, vector<2x64xf32>
    tpu.vector_store %arg16[%c6, %c0_102], %294 {strides = array<i32>} : memref<16x128xf32, #tpu.memory_space<vmem>>, vector<2x64xf32>,
    %c8 = arith.constant 8 : index
    %c64_103 = arith.constant 64 : index
    %327 = vector.load %arg16[%c8, %c64_103] : memref<16x128xf32, #tpu.memory_space<vmem>>, vector<2x64xf32>
    tpu.vector_store %arg16[%c8, %c64_103], %325 {strides = array<i32>} : memref<16x128xf32, #tpu.memory_space<vmem>>, vector<2x64xf32>,
    %328 = tpu.concatenate %294, %325 in 1 : vector<2x64xf32>, vector<2x64xf32> -> vector<2x128xf32>
    %329 = arith.truncf %328 : vector<2x128xf32> to vector<2x128xbf16>
    %cst_104 = arith.constant dense<0.000000e+00> : vector<2x512xf32>
    %330 = tpu.matmul %329, %31, %cst_104 {dimension_numbers = #tpu.dot_dimension_numbers<[1], [0], [0], [1], [0, 0, 1, 1], [], []>} : vector<2x128xbf16>, vector<128x512xbf16>, vector<2x512xf32> -> vector<2x512xf32>
    %331 = vector.extract_strided_slice %30 {offsets = [8, 0], sizes = [2, 256], strides = [1, 1]} : vector<16x512xf32> to vector<2x256xf32>
    %332 = vector.extract_strided_slice %330 {offsets = [0, 0], sizes = [2, 256], strides = [1, 1]} : vector<2x512xf32> to vector<2x256xf32>
    %333 = arith.addf %331, %332 : vector<2x256xf32>
    %334 = vector.extract_strided_slice %30 {offsets = [6, 256], sizes = [2, 256], strides = [1, 1]} : vector<16x512xf32> to vector<2x256xf32>
    %335 = vector.extract_strided_slice %330 {offsets = [0, 256], sizes = [2, 256], strides = [1, 1]} : vector<2x512xf32> to vector<2x256xf32>
    %336 = arith.addf %334, %335 : vector<2x256xf32>
    %337 = vector.extract_strided_slice %333 {offsets = [0, 0], sizes = [2, 64], strides = [1, 1]} : vector<2x256xf32> to vector<2x64xf32>
    %cst_105 = arith.constant 0.000000e+00 : f32
    %338 = vector.broadcast %cst_105 : f32 to vector<2x64xf32>
    %339 = arith.subf %338, %337 : vector<2x64xf32>
    %340 = math.exp %339 : vector<2x64xf32>
    %cst_106 = arith.constant 1.000000e+00 : f32
    %341 = vector.broadcast %cst_106 : f32 to vector<2x64xf32>
    %342 = arith.addf %341, %340 : vector<2x64xf32>
    %cst_107 = arith.constant 1.000000e+00 : f32
    %343 = vector.broadcast %cst_107 : f32 to vector<2x64xf32>
    %344 = arith.divf %343, %342 : vector<2x64xf32>
    %345 = vector.extract_strided_slice %333 {offsets = [0, 64], sizes = [2, 64], strides = [1, 1]} : vector<2x256xf32> to vector<2x64xf32>
    %cst_108 = arith.constant 0.000000e+00 : f32
    %346 = vector.broadcast %cst_108 : f32 to vector<2x64xf32>
    %347 = arith.subf %346, %345 : vector<2x64xf32>
    %348 = math.exp %347 : vector<2x64xf32>
    %cst_109 = arith.constant 1.000000e+00 : f32
    %349 = vector.broadcast %cst_109 : f32 to vector<2x64xf32>
    %350 = arith.addf %349, %348 : vector<2x64xf32>
    %cst_110 = arith.constant 1.000000e+00 : f32
    %351 = vector.broadcast %cst_110 : f32 to vector<2x64xf32>
    %352 = arith.divf %351, %350 : vector<2x64xf32>
    %353 = vector.extract_strided_slice %333 {offsets = [0, 128], sizes = [2, 64], strides = [1, 1]} : vector<2x256xf32> to vector<2x64xf32>
    %354 = math.tanh %353 : vector<2x64xf32>
    %355 = vector.extract_strided_slice %333 {offsets = [0, 192], sizes = [2, 64], strides = [1, 1]} : vector<2x256xf32> to vector<2x64xf32>
    %cst_111 = arith.constant 0.000000e+00 : f32
    %356 = vector.broadcast %cst_111 : f32 to vector<2x64xf32>
    %357 = arith.subf %356, %355 : vector<2x64xf32>
    %358 = math.exp %357 : vector<2x64xf32>
    %cst_112 = arith.constant 1.000000e+00 : f32
    %359 = vector.broadcast %cst_112 : f32 to vector<2x64xf32>
    %360 = arith.addf %359, %358 : vector<2x64xf32>
    %cst_113 = arith.constant 1.000000e+00 : f32
    %361 = vector.broadcast %cst_113 : f32 to vector<2x64xf32>
    %362 = arith.divf %361, %360 : vector<2x64xf32>
    %363 = arith.mulf %352, %292 : vector<2x64xf32>
    %364 = arith.mulf %344, %354 : vector<2x64xf32>
    %365 = arith.addf %363, %364 : vector<2x64xf32>
    %366 = math.tanh %365 : vector<2x64xf32>
    %367 = arith.mulf %362, %366 : vector<2x64xf32>
    %368 = vector.extract_strided_slice %336 {offsets = [0, 0], sizes = [2, 64], strides = [1, 1]} : vector<2x256xf32> to vector<2x64xf32>
    %cst_114 = arith.constant 0.000000e+00 : f32
    %369 = vector.broadcast %cst_114 : f32 to vector<2x64xf32>
    %370 = arith.subf %369, %368 : vector<2x64xf32>
    %371 = math.exp %370 : vector<2x64xf32>
    %cst_115 = arith.constant 1.000000e+00 : f32
    %372 = vector.broadcast %cst_115 : f32 to vector<2x64xf32>
    %373 = arith.addf %372, %371 : vector<2x64xf32>
    %cst_116 = arith.constant 1.000000e+00 : f32
    %374 = vector.broadcast %cst_116 : f32 to vector<2x64xf32>
    %375 = arith.divf %374, %373 : vector<2x64xf32>
    %376 = vector.extract_strided_slice %336 {offsets = [0, 64], sizes = [2, 64], strides = [1, 1]} : vector<2x256xf32> to vector<2x64xf32>
    %cst_117 = arith.constant 0.000000e+00 : f32
    %377 = vector.broadcast %cst_117 : f32 to vector<2x64xf32>
    %378 = arith.subf %377, %376 : vector<2x64xf32>
    %379 = math.exp %378 : vector<2x64xf32>
    %cst_118 = arith.constant 1.000000e+00 : f32
    %380 = vector.broadcast %cst_118 : f32 to vector<2x64xf32>
    %381 = arith.addf %380, %379 : vector<2x64xf32>
    %cst_119 = arith.constant 1.000000e+00 : f32
    %382 = vector.broadcast %cst_119 : f32 to vector<2x64xf32>
    %383 = arith.divf %382, %381 : vector<2x64xf32>
    %384 = vector.extract_strided_slice %336 {offsets = [0, 128], sizes = [2, 64], strides = [1, 1]} : vector<2x256xf32> to vector<2x64xf32>
    %385 = math.tanh %384 : vector<2x64xf32>
    %386 = vector.extract_strided_slice %336 {offsets = [0, 192], sizes = [2, 64], strides = [1, 1]} : vector<2x256xf32> to vector<2x64xf32>
    %cst_120 = arith.constant 0.000000e+00 : f32
    %387 = vector.broadcast %cst_120 : f32 to vector<2x64xf32>
    %388 = arith.subf %387, %386 : vector<2x64xf32>
    %389 = math.exp %388 : vector<2x64xf32>
    %cst_121 = arith.constant 1.000000e+00 : f32
    %390 = vector.broadcast %cst_121 : f32 to vector<2x64xf32>
    %391 = arith.addf %390, %389 : vector<2x64xf32>
    %cst_122 = arith.constant 1.000000e+00 : f32
    %392 = vector.broadcast %cst_122 : f32 to vector<2x64xf32>
    %393 = arith.divf %392, %391 : vector<2x64xf32>
    %394 = arith.mulf %383, %323 : vector<2x64xf32>
    %395 = arith.mulf %375, %385 : vector<2x64xf32>
    %396 = arith.addf %394, %395 : vector<2x64xf32>
    %397 = math.tanh %396 : vector<2x64xf32>
    %398 = arith.mulf %393, %397 : vector<2x64xf32>
    %c8_123 = arith.constant 8 : index
    %c0_124 = arith.constant 0 : index
    %399 = vector.load %arg16[%c8_123, %c0_124] : memref<16x128xf32, #tpu.memory_space<vmem>>, vector<2x64xf32>
    tpu.vector_store %arg16[%c8_123, %c0_124], %367 {strides = array<i32>} : memref<16x128xf32, #tpu.memory_space<vmem>>, vector<2x64xf32>,
    %c6_125 = arith.constant 6 : index
    %c64_126 = arith.constant 64 : index
    %400 = vector.load %arg16[%c6_125, %c64_126] : memref<16x128xf32, #tpu.memory_space<vmem>>, vector<2x64xf32>
    tpu.vector_store %arg16[%c6_125, %c64_126], %398 {strides = array<i32>} : memref<16x128xf32, #tpu.memory_space<vmem>>, vector<2x64xf32>,
    %401 = tpu.concatenate %367, %398 in 1 : vector<2x64xf32>, vector<2x64xf32> -> vector<2x128xf32>
    %402 = arith.truncf %401 : vector<2x128xf32> to vector<2x128xbf16>
    %cst_127 = arith.constant dense<0.000000e+00> : vector<2x512xf32>
    %403 = tpu.matmul %402, %31, %cst_127 {dimension_numbers = #tpu.dot_dimension_numbers<[1], [0], [0], [1], [0, 0, 1, 1], [], []>} : vector<2x128xbf16>, vector<128x512xbf16>, vector<2x512xf32> -> vector<2x512xf32>
    %404 = vector.extract_strided_slice %30 {offsets = [10, 0], sizes = [2, 256], strides = [1, 1]} : vector<16x512xf32> to vector<2x256xf32>
    %405 = vector.extract_strided_slice %403 {offsets = [0, 0], sizes = [2, 256], strides = [1, 1]} : vector<2x512xf32> to vector<2x256xf32>
    %406 = arith.addf %404, %405 : vector<2x256xf32>
    %407 = vector.extract_strided_slice %30 {offsets = [4, 256], sizes = [2, 256], strides = [1, 1]} : vector<16x512xf32> to vector<2x256xf32>
    %408 = vector.extract_strided_slice %403 {offsets = [0, 256], sizes = [2, 256], strides = [1, 1]} : vector<2x512xf32> to vector<2x256xf32>
    %409 = arith.addf %407, %408 : vector<2x256xf32>
    %410 = vector.extract_strided_slice %406 {offsets = [0, 0], sizes = [2, 64], strides = [1, 1]} : vector<2x256xf32> to vector<2x64xf32>
    %cst_128 = arith.constant 0.000000e+00 : f32
    %411 = vector.broadcast %cst_128 : f32 to vector<2x64xf32>
    %412 = arith.subf %411, %410 : vector<2x64xf32>
    %413 = math.exp %412 : vector<2x64xf32>
    %cst_129 = arith.constant 1.000000e+00 : f32
    %414 = vector.broadcast %cst_129 : f32 to vector<2x64xf32>
    %415 = arith.addf %414, %413 : vector<2x64xf32>
    %cst_130 = arith.constant 1.000000e+00 : f32
    %416 = vector.broadcast %cst_130 : f32 to vector<2x64xf32>
    %417 = arith.divf %416, %415 : vector<2x64xf32>
    %418 = vector.extract_strided_slice %406 {offsets = [0, 64], sizes = [2, 64], strides = [1, 1]} : vector<2x256xf32> to vector<2x64xf32>
    %cst_131 = arith.constant 0.000000e+00 : f32
    %419 = vector.broadcast %cst_131 : f32 to vector<2x64xf32>
    %420 = arith.subf %419, %418 : vector<2x64xf32>
    %421 = math.exp %420 : vector<2x64xf32>
    %cst_132 = arith.constant 1.000000e+00 : f32
    %422 = vector.broadcast %cst_132 : f32 to vector<2x64xf32>
    %423 = arith.addf %422, %421 : vector<2x64xf32>
    %cst_133 = arith.constant 1.000000e+00 : f32
    %424 = vector.broadcast %cst_133 : f32 to vector<2x64xf32>
    %425 = arith.divf %424, %423 : vector<2x64xf32>
    %426 = vector.extract_strided_slice %406 {offsets = [0, 128], sizes = [2, 64], strides = [1, 1]} : vector<2x256xf32> to vector<2x64xf32>
    %427 = math.tanh %426 : vector<2x64xf32>
    %428 = vector.extract_strided_slice %406 {offsets = [0, 192], sizes = [2, 64], strides = [1, 1]} : vector<2x256xf32> to vector<2x64xf32>
    %cst_134 = arith.constant 0.000000e+00 : f32
    %429 = vector.broadcast %cst_134 : f32 to vector<2x64xf32>
    %430 = arith.subf %429, %428 : vector<2x64xf32>
    %431 = math.exp %430 : vector<2x64xf32>
    %cst_135 = arith.constant 1.000000e+00 : f32
    %432 = vector.broadcast %cst_135 : f32 to vector<2x64xf32>
    %433 = arith.addf %432, %431 : vector<2x64xf32>
    %cst_136 = arith.constant 1.000000e+00 : f32
    %434 = vector.broadcast %cst_136 : f32 to vector<2x64xf32>
    %435 = arith.divf %434, %433 : vector<2x64xf32>
    %436 = arith.mulf %425, %365 : vector<2x64xf32>
    %437 = arith.mulf %417, %427 : vector<2x64xf32>
    %438 = arith.addf %436, %437 : vector<2x64xf32>
    %439 = math.tanh %438 : vector<2x64xf32>
    %440 = arith.mulf %435, %439 : vector<2x64xf32>
    %441 = vector.extract_strided_slice %409 {offsets = [0, 0], sizes = [2, 64], strides = [1, 1]} : vector<2x256xf32> to vector<2x64xf32>
    %cst_137 = arith.constant 0.000000e+00 : f32
    %442 = vector.broadcast %cst_137 : f32 to vector<2x64xf32>
    %443 = arith.subf %442, %441 : vector<2x64xf32>
    %444 = math.exp %443 : vector<2x64xf32>
    %cst_138 = arith.constant 1.000000e+00 : f32
    %445 = vector.broadcast %cst_138 : f32 to vector<2x64xf32>
    %446 = arith.addf %445, %444 : vector<2x64xf32>
    %cst_139 = arith.constant 1.000000e+00 : f32
    %447 = vector.broadcast %cst_139 : f32 to vector<2x64xf32>
    %448 = arith.divf %447, %446 : vector<2x64xf32>
    %449 = vector.extract_strided_slice %409 {offsets = [0, 64], sizes = [2, 64], strides = [1, 1]} : vector<2x256xf32> to vector<2x64xf32>
    %cst_140 = arith.constant 0.000000e+00 : f32
    %450 = vector.broadcast %cst_140 : f32 to vector<2x64xf32>
    %451 = arith.subf %450, %449 : vector<2x64xf32>
    %452 = math.exp %451 : vector<2x64xf32>
    %cst_141 = arith.constant 1.000000e+00 : f32
    %453 = vector.broadcast %cst_141 : f32 to vector<2x64xf32>
    %454 = arith.addf %453, %452 : vector<2x64xf32>
    %cst_142 = arith.constant 1.000000e+00 : f32
    %455 = vector.broadcast %cst_142 : f32 to vector<2x64xf32>
    %456 = arith.divf %455, %454 : vector<2x64xf32>
    %457 = vector.extract_strided_slice %409 {offsets = [0, 128], sizes = [2, 64], strides = [1, 1]} : vector<2x256xf32> to vector<2x64xf32>
    %458 = math.tanh %457 : vector<2x64xf32>
    %459 = vector.extract_strided_slice %409 {offsets = [0, 192], sizes = [2, 64], strides = [1, 1]} : vector<2x256xf32> to vector<2x64xf32>
    %cst_143 = arith.constant 0.000000e+00 : f32
    %460 = vector.broadcast %cst_143 : f32 to vector<2x64xf32>
    %461 = arith.subf %460, %459 : vector<2x64xf32>
    %462 = math.exp %461 : vector<2x64xf32>
    %cst_144 = arith.constant 1.000000e+00 : f32
    %463 = vector.broadcast %cst_144 : f32 to vector<2x64xf32>
    %464 = arith.addf %463, %462 : vector<2x64xf32>
    %cst_145 = arith.constant 1.000000e+00 : f32
    %465 = vector.broadcast %cst_145 : f32 to vector<2x64xf32>
    %466 = arith.divf %465, %464 : vector<2x64xf32>
    %467 = arith.mulf %456, %396 : vector<2x64xf32>
    %468 = arith.mulf %448, %458 : vector<2x64xf32>
    %469 = arith.addf %467, %468 : vector<2x64xf32>
    %470 = math.tanh %469 : vector<2x64xf32>
    %471 = arith.mulf %466, %470 : vector<2x64xf32>
    %c10_146 = arith.constant 10 : index
    %c0_147 = arith.constant 0 : index
    %472 = vector.load %arg16[%c10_146, %c0_147] : memref<16x128xf32, #tpu.memory_space<vmem>>, vector<2x64xf32>
    tpu.vector_store %arg16[%c10_146, %c0_147], %440 {strides = array<i32>} : memref<16x128xf32, #tpu.memory_space<vmem>>, vector<2x64xf32>,
    %c4_148 = arith.constant 4 : index
    %c64_149 = arith.constant 64 : index
    %473 = vector.load %arg16[%c4_148, %c64_149] : memref<16x128xf32, #tpu.memory_space<vmem>>, vector<2x64xf32>
    tpu.vector_store %arg16[%c4_148, %c64_149], %471 {strides = array<i32>} : memref<16x128xf32, #tpu.memory_space<vmem>>, vector<2x64xf32>,
    %474 = tpu.concatenate %440, %471 in 1 : vector<2x64xf32>, vector<2x64xf32> -> vector<2x128xf32>
    %475 = arith.truncf %474 : vector<2x128xf32> to vector<2x128xbf16>
    %cst_150 = arith.constant dense<0.000000e+00> : vector<2x512xf32>
    %476 = tpu.matmul %475, %31, %cst_150 {dimension_numbers = #tpu.dot_dimension_numbers<[1], [0], [0], [1], [0, 0, 1, 1], [], []>} : vector<2x128xbf16>, vector<128x512xbf16>, vector<2x512xf32> -> vector<2x512xf32>
    %477 = vector.extract_strided_slice %30 {offsets = [12, 0], sizes = [2, 256], strides = [1, 1]} : vector<16x512xf32> to vector<2x256xf32>
    %478 = vector.extract_strided_slice %476 {offsets = [0, 0], sizes = [2, 256], strides = [1, 1]} : vector<2x512xf32> to vector<2x256xf32>
    %479 = arith.addf %477, %478 : vector<2x256xf32>
    %480 = vector.extract_strided_slice %30 {offsets = [2, 256], sizes = [2, 256], strides = [1, 1]} : vector<16x512xf32> to vector<2x256xf32>
    %481 = vector.extract_strided_slice %476 {offsets = [0, 256], sizes = [2, 256], strides = [1, 1]} : vector<2x512xf32> to vector<2x256xf32>
    %482 = arith.addf %480, %481 : vector<2x256xf32>
    %483 = vector.extract_strided_slice %479 {offsets = [0, 0], sizes = [2, 64], strides = [1, 1]} : vector<2x256xf32> to vector<2x64xf32>
    %cst_151 = arith.constant 0.000000e+00 : f32
    %484 = vector.broadcast %cst_151 : f32 to vector<2x64xf32>
    %485 = arith.subf %484, %483 : vector<2x64xf32>
    %486 = math.exp %485 : vector<2x64xf32>
    %cst_152 = arith.constant 1.000000e+00 : f32
    %487 = vector.broadcast %cst_152 : f32 to vector<2x64xf32>
    %488 = arith.addf %487, %486 : vector<2x64xf32>
    %cst_153 = arith.constant 1.000000e+00 : f32
    %489 = vector.broadcast %cst_153 : f32 to vector<2x64xf32>
    %490 = arith.divf %489, %488 : vector<2x64xf32>
    %491 = vector.extract_strided_slice %479 {offsets = [0, 64], sizes = [2, 64], strides = [1, 1]} : vector<2x256xf32> to vector<2x64xf32>
    %cst_154 = arith.constant 0.000000e+00 : f32
    %492 = vector.broadcast %cst_154 : f32 to vector<2x64xf32>
    %493 = arith.subf %492, %491 : vector<2x64xf32>
    %494 = math.exp %493 : vector<2x64xf32>
    %cst_155 = arith.constant 1.000000e+00 : f32
    %495 = vector.broadcast %cst_155 : f32 to vector<2x64xf32>
    %496 = arith.addf %495, %494 : vector<2x64xf32>
    %cst_156 = arith.constant 1.000000e+00 : f32
    %497 = vector.broadcast %cst_156 : f32 to vector<2x64xf32>
    %498 = arith.divf %497, %496 : vector<2x64xf32>
    %499 = vector.extract_strided_slice %479 {offsets = [0, 128], sizes = [2, 64], strides = [1, 1]} : vector<2x256xf32> to vector<2x64xf32>
    %500 = math.tanh %499 : vector<2x64xf32>
    %501 = vector.extract_strided_slice %479 {offsets = [0, 192], sizes = [2, 64], strides = [1, 1]} : vector<2x256xf32> to vector<2x64xf32>
    %cst_157 = arith.constant 0.000000e+00 : f32
    %502 = vector.broadcast %cst_157 : f32 to vector<2x64xf32>
    %503 = arith.subf %502, %501 : vector<2x64xf32>
    %504 = math.exp %503 : vector<2x64xf32>
    %cst_158 = arith.constant 1.000000e+00 : f32
    %505 = vector.broadcast %cst_158 : f32 to vector<2x64xf32>
    %506 = arith.addf %505, %504 : vector<2x64xf32>
    %cst_159 = arith.constant 1.000000e+00 : f32
    %507 = vector.broadcast %cst_159 : f32 to vector<2x64xf32>
    %508 = arith.divf %507, %506 : vector<2x64xf32>
    %509 = arith.mulf %498, %438 : vector<2x64xf32>
    %510 = arith.mulf %490, %500 : vector<2x64xf32>
    %511 = arith.addf %509, %510 : vector<2x64xf32>
    %512 = math.tanh %511 : vector<2x64xf32>
    %513 = arith.mulf %508, %512 : vector<2x64xf32>
    %514 = vector.extract_strided_slice %482 {offsets = [0, 0], sizes = [2, 64], strides = [1, 1]} : vector<2x256xf32> to vector<2x64xf32>
    %cst_160 = arith.constant 0.000000e+00 : f32
    %515 = vector.broadcast %cst_160 : f32 to vector<2x64xf32>
    %516 = arith.subf %515, %514 : vector<2x64xf32>
    %517 = math.exp %516 : vector<2x64xf32>
    %cst_161 = arith.constant 1.000000e+00 : f32
    %518 = vector.broadcast %cst_161 : f32 to vector<2x64xf32>
    %519 = arith.addf %518, %517 : vector<2x64xf32>
    %cst_162 = arith.constant 1.000000e+00 : f32
    %520 = vector.broadcast %cst_162 : f32 to vector<2x64xf32>
    %521 = arith.divf %520, %519 : vector<2x64xf32>
    %522 = vector.extract_strided_slice %482 {offsets = [0, 64], sizes = [2, 64], strides = [1, 1]} : vector<2x256xf32> to vector<2x64xf32>
    %cst_163 = arith.constant 0.000000e+00 : f32
    %523 = vector.broadcast %cst_163 : f32 to vector<2x64xf32>
    %524 = arith.subf %523, %522 : vector<2x64xf32>
    %525 = math.exp %524 : vector<2x64xf32>
    %cst_164 = arith.constant 1.000000e+00 : f32
    %526 = vector.broadcast %cst_164 : f32 to vector<2x64xf32>
    %527 = arith.addf %526, %525 : vector<2x64xf32>
    %cst_165 = arith.constant 1.000000e+00 : f32
    %528 = vector.broadcast %cst_165 : f32 to vector<2x64xf32>
    %529 = arith.divf %528, %527 : vector<2x64xf32>
    %530 = vector.extract_strided_slice %482 {offsets = [0, 128], sizes = [2, 64], strides = [1, 1]} : vector<2x256xf32> to vector<2x64xf32>
    %531 = math.tanh %530 : vector<2x64xf32>
    %532 = vector.extract_strided_slice %482 {offsets = [0, 192], sizes = [2, 64], strides = [1, 1]} : vector<2x256xf32> to vector<2x64xf32>
    %cst_166 = arith.constant 0.000000e+00 : f32
    %533 = vector.broadcast %cst_166 : f32 to vector<2x64xf32>
    %534 = arith.subf %533, %532 : vector<2x64xf32>
    %535 = math.exp %534 : vector<2x64xf32>
    %cst_167 = arith.constant 1.000000e+00 : f32
    %536 = vector.broadcast %cst_167 : f32 to vector<2x64xf32>
    %537 = arith.addf %536, %535 : vector<2x64xf32>
    %cst_168 = arith.constant 1.000000e+00 : f32
    %538 = vector.broadcast %cst_168 : f32 to vector<2x64xf32>
    %539 = arith.divf %538, %537 : vector<2x64xf32>
    %540 = arith.mulf %529, %469 : vector<2x64xf32>
    %541 = arith.mulf %521, %531 : vector<2x64xf32>
    %542 = arith.addf %540, %541 : vector<2x64xf32>
    %543 = math.tanh %542 : vector<2x64xf32>
    %544 = arith.mulf %539, %543 : vector<2x64xf32>
    %c12_169 = arith.constant 12 : index
    %c0_170 = arith.constant 0 : index
    %545 = vector.load %arg16[%c12_169, %c0_170] : memref<16x128xf32, #tpu.memory_space<vmem>>, vector<2x64xf32>
    tpu.vector_store %arg16[%c12_169, %c0_170], %513 {strides = array<i32>} : memref<16x128xf32, #tpu.memory_space<vmem>>, vector<2x64xf32>,
    %c2_171 = arith.constant 2 : index
    %c64_172 = arith.constant 64 : index
    %546 = vector.load %arg16[%c2_171, %c64_172] : memref<16x128xf32, #tpu.memory_space<vmem>>, vector<2x64xf32>
    tpu.vector_store %arg16[%c2_171, %c64_172], %544 {strides = array<i32>} : memref<16x128xf32, #tpu.memory_space<vmem>>, vector<2x64xf32>,
    %547 = tpu.concatenate %513, %544 in 1 : vector<2x64xf32>, vector<2x64xf32> -> vector<2x128xf32>
    %548 = arith.truncf %547 : vector<2x128xf32> to vector<2x128xbf16>
    %cst_173 = arith.constant dense<0.000000e+00> : vector<2x512xf32>
    %549 = tpu.matmul %548, %31, %cst_173 {dimension_numbers = #tpu.dot_dimension_numbers<[1], [0], [0], [1], [0, 0, 1, 1], [], []>} : vector<2x128xbf16>, vector<128x512xbf16>, vector<2x512xf32> -> vector<2x512xf32>
    %550 = vector.extract_strided_slice %30 {offsets = [14, 0], sizes = [2, 256], strides = [1, 1]} : vector<16x512xf32> to vector<2x256xf32>
    %551 = vector.extract_strided_slice %549 {offsets = [0, 0], sizes = [2, 256], strides = [1, 1]} : vector<2x512xf32> to vector<2x256xf32>
    %552 = arith.addf %550, %551 : vector<2x256xf32>
    %553 = vector.extract_strided_slice %30 {offsets = [0, 256], sizes = [2, 256], strides = [1, 1]} : vector<16x512xf32> to vector<2x256xf32>
    %554 = vector.extract_strided_slice %549 {offsets = [0, 256], sizes = [2, 256], strides = [1, 1]} : vector<2x512xf32> to vector<2x256xf32>
    %555 = arith.addf %553, %554 : vector<2x256xf32>
    %556 = vector.extract_strided_slice %552 {offsets = [0, 0], sizes = [2, 64], strides = [1, 1]} : vector<2x256xf32> to vector<2x64xf32>
    %cst_174 = arith.constant 0.000000e+00 : f32
    %557 = vector.broadcast %cst_174 : f32 to vector<2x64xf32>
    %558 = arith.subf %557, %556 : vector<2x64xf32>
    %559 = math.exp %558 : vector<2x64xf32>
    %cst_175 = arith.constant 1.000000e+00 : f32
    %560 = vector.broadcast %cst_175 : f32 to vector<2x64xf32>
    %561 = arith.addf %560, %559 : vector<2x64xf32>
    %cst_176 = arith.constant 1.000000e+00 : f32
    %562 = vector.broadcast %cst_176 : f32 to vector<2x64xf32>
    %563 = arith.divf %562, %561 : vector<2x64xf32>
    %564 = vector.extract_strided_slice %552 {offsets = [0, 64], sizes = [2, 64], strides = [1, 1]} : vector<2x256xf32> to vector<2x64xf32>
    %cst_177 = arith.constant 0.000000e+00 : f32
    %565 = vector.broadcast %cst_177 : f32 to vector<2x64xf32>
    %566 = arith.subf %565, %564 : vector<2x64xf32>
    %567 = math.exp %566 : vector<2x64xf32>
    %cst_178 = arith.constant 1.000000e+00 : f32
    %568 = vector.broadcast %cst_178 : f32 to vector<2x64xf32>
    %569 = arith.addf %568, %567 : vector<2x64xf32>
    %cst_179 = arith.constant 1.000000e+00 : f32
    %570 = vector.broadcast %cst_179 : f32 to vector<2x64xf32>
    %571 = arith.divf %570, %569 : vector<2x64xf32>
    %572 = vector.extract_strided_slice %552 {offsets = [0, 128], sizes = [2, 64], strides = [1, 1]} : vector<2x256xf32> to vector<2x64xf32>
    %573 = math.tanh %572 : vector<2x64xf32>
    %574 = vector.extract_strided_slice %552 {offsets = [0, 192], sizes = [2, 64], strides = [1, 1]} : vector<2x256xf32> to vector<2x64xf32>
    %cst_180 = arith.constant 0.000000e+00 : f32
    %575 = vector.broadcast %cst_180 : f32 to vector<2x64xf32>
    %576 = arith.subf %575, %574 : vector<2x64xf32>
    %577 = math.exp %576 : vector<2x64xf32>
    %cst_181 = arith.constant 1.000000e+00 : f32
    %578 = vector.broadcast %cst_181 : f32 to vector<2x64xf32>
    %579 = arith.addf %578, %577 : vector<2x64xf32>
    %cst_182 = arith.constant 1.000000e+00 : f32
    %580 = vector.broadcast %cst_182 : f32 to vector<2x64xf32>
    %581 = arith.divf %580, %579 : vector<2x64xf32>
    %582 = arith.mulf %571, %511 : vector<2x64xf32>
    %583 = arith.mulf %563, %573 : vector<2x64xf32>
    %584 = arith.addf %582, %583 : vector<2x64xf32>
    %585 = math.tanh %584 : vector<2x64xf32>
    %586 = arith.mulf %581, %585 : vector<2x64xf32>
    %587 = vector.extract_strided_slice %555 {offsets = [0, 0], sizes = [2, 64], strides = [1, 1]} : vector<2x256xf32> to vector<2x64xf32>
    %cst_183 = arith.constant 0.000000e+00 : f32
    %588 = vector.broadcast %cst_183 : f32 to vector<2x64xf32>
    %589 = arith.subf %588, %587 : vector<2x64xf32>
    %590 = math.exp %589 : vector<2x64xf32>
    %cst_184 = arith.constant 1.000000e+00 : f32
    %591 = vector.broadcast %cst_184 : f32 to vector<2x64xf32>
    %592 = arith.addf %591, %590 : vector<2x64xf32>
    %cst_185 = arith.constant 1.000000e+00 : f32
    %593 = vector.broadcast %cst_185 : f32 to vector<2x64xf32>
    %594 = arith.divf %593, %592 : vector<2x64xf32>
    %595 = vector.extract_strided_slice %555 {offsets = [0, 64], sizes = [2, 64], strides = [1, 1]} : vector<2x256xf32> to vector<2x64xf32>
    %cst_186 = arith.constant 0.000000e+00 : f32
    %596 = vector.broadcast %cst_186 : f32 to vector<2x64xf32>
    %597 = arith.subf %596, %595 : vector<2x64xf32>
    %598 = math.exp %597 : vector<2x64xf32>
    %cst_187 = arith.constant 1.000000e+00 : f32
    %599 = vector.broadcast %cst_187 : f32 to vector<2x64xf32>
    %600 = arith.addf %599, %598 : vector<2x64xf32>
    %cst_188 = arith.constant 1.000000e+00 : f32
    %601 = vector.broadcast %cst_188 : f32 to vector<2x64xf32>
    %602 = arith.divf %601, %600 : vector<2x64xf32>
    %603 = vector.extract_strided_slice %555 {offsets = [0, 128], sizes = [2, 64], strides = [1, 1]} : vector<2x256xf32> to vector<2x64xf32>
    %604 = math.tanh %603 : vector<2x64xf32>
    %605 = vector.extract_strided_slice %555 {offsets = [0, 192], sizes = [2, 64], strides = [1, 1]} : vector<2x256xf32> to vector<2x64xf32>
    %cst_189 = arith.constant 0.000000e+00 : f32
    %606 = vector.broadcast %cst_189 : f32 to vector<2x64xf32>
    %607 = arith.subf %606, %605 : vector<2x64xf32>
    %608 = math.exp %607 : vector<2x64xf32>
    %cst_190 = arith.constant 1.000000e+00 : f32
    %609 = vector.broadcast %cst_190 : f32 to vector<2x64xf32>
    %610 = arith.addf %609, %608 : vector<2x64xf32>
    %cst_191 = arith.constant 1.000000e+00 : f32
    %611 = vector.broadcast %cst_191 : f32 to vector<2x64xf32>
    %612 = arith.divf %611, %610 : vector<2x64xf32>
    %613 = arith.mulf %602, %542 : vector<2x64xf32>
    %614 = arith.mulf %594, %604 : vector<2x64xf32>
    %615 = arith.addf %613, %614 : vector<2x64xf32>
    %616 = math.tanh %615 : vector<2x64xf32>
    %617 = arith.mulf %612, %616 : vector<2x64xf32>
    %c14_192 = arith.constant 14 : index
    %c0_193 = arith.constant 0 : index
    %618 = vector.load %arg16[%c14_192, %c0_193] : memref<16x128xf32, #tpu.memory_space<vmem>>, vector<2x64xf32>
    tpu.vector_store %arg16[%c14_192, %c0_193], %586 {strides = array<i32>} : memref<16x128xf32, #tpu.memory_space<vmem>>, vector<2x64xf32>,
    %c0_194 = arith.constant 0 : index
    %c64_195 = arith.constant 64 : index
    %619 = vector.load %arg16[%c0_194, %c64_195] : memref<16x128xf32, #tpu.memory_space<vmem>>, vector<2x64xf32>
    tpu.vector_store %arg16[%c0_194, %c64_195], %617 {strides = array<i32>} : memref<16x128xf32, #tpu.memory_space<vmem>>, vector<2x64xf32>,
    %c0_196 = arith.constant 0 : index
    %c0_197 = arith.constant 0 : index
    %620 = vector.load %arg16[%c0_196, %c0_197] : memref<16x128xf32, #tpu.memory_space<vmem>>, vector<16x128xf32>
    %621 = arith.truncf %620 : vector<16x128xf32> to vector<16x128xbf16>
    %c0_198 = arith.constant 0 : index
    %c0_199 = arith.constant 0 : index
    %622 = vector.load %arg7[%c0_198, %c0_199] : memref<128x128xbf16, #tpu.memory_space<vmem>>, vector<128x128xbf16>
    %cst_200 = arith.constant dense<0.000000e+00> : vector<16x128xf32>
    %623 = tpu.matmul %621, %622, %cst_200 {dimension_numbers = #tpu.dot_dimension_numbers<[1], [0], [0], [1], [0, 0, 1, 1], [], []>} : vector<16x128xbf16>, vector<128x128xbf16>, vector<16x128xf32> -> vector<16x128xf32>
    %c0_201 = arith.constant 0 : index
    %c0_202 = arith.constant 0 : index
    %624 = vector.load %arg8[%c0_201, %c0_202] : memref<1x128xf32, #tpu.memory_space<vmem>>, vector<1x128xf32>
    %625 = vector.broadcast %624 : vector<1x128xf32> to vector<16x128xf32>
    %626 = arith.addf %623, %625 : vector<16x128xf32>
    %c0_203 = arith.constant 0 : index
    %c0_204 = arith.constant 0 : index
    %627 = vector.load %arg13[%c0_203, %c0_204] : memref<16x128xf32, #tpu.memory_space<vmem>>, vector<16x128xf32>
    tpu.vector_store %arg13[%c0_203, %c0_204], %626 {strides = array<i32>} : memref<16x128xf32, #tpu.memory_space<vmem>>, vector<16x128xf32>,
    %c0_205 = arith.constant 0 : index
    %c0_206 = arith.constant 0 : index
    %628 = vector.load %arg11[%c0_205, %c0_206] : memref<8x128xf32, #tpu.memory_space<vmem>>, vector<8x128xf32>
    %c0_207 = arith.constant 0 : index
    %c0_208 = arith.constant 0 : index
    %629 = vector.load %arg9[%c0_207, %c0_208] : memref<1x128xf32, #tpu.memory_space<vmem>>, vector<1x128xf32>
    %630 = vector.extract_strided_slice %626 {offsets = [0, 0], sizes = [2, 128], strides = [1, 1]} : vector<16x128xf32> to vector<2x128xf32>
    %631 = vector.broadcast %629 : vector<1x128xf32> to vector<2x128xf32>
    %632 = arith.addf %631, %630 : vector<2x128xf32>
    %c0_i32 = arith.constant 0 : i32
    %633 = vector.broadcast %c0_i32 : i32 to vector<2x128xi32>
    %c0_209 = arith.constant 0 : index
    %c0_210 = arith.constant 0 : index
    %634 = vector.load %arg15[%c0_209, %c0_210] : memref<16x128xi32, #tpu.memory_space<vmem>>, vector<2x128xi32>
    tpu.vector_store %arg15[%c0_209, %c0_210], %633 {strides = array<i32>} : memref<16x128xi32, #tpu.memory_space<vmem>>, vector<2x128xi32>,
    %635 = vector.extract_strided_slice %626 {offsets = [2, 0], sizes = [2, 128], strides = [1, 1]} : vector<16x128xf32> to vector<2x128xf32>
    %636 = vector.extract_strided_slice %632 {offsets = [0, 0], sizes = [2, 1], strides = [1, 1]} : vector<2x128xf32> to vector<2x1xf32>
    %637 = vector.extract_strided_slice %628 {offsets = [0, 0], sizes = [1, 128], strides = [1, 1]} : vector<8x128xf32> to vector<1x128xf32>
    %638 = vector.broadcast %636 : vector<2x1xf32> to vector<2x128xf32>
    %639 = vector.broadcast %637 : vector<1x128xf32> to vector<2x128xf32>
    %640 = arith.addf %638, %639 : vector<2x128xf32>
    %c0_i32_211 = arith.constant 0 : i32
    %641 = vector.broadcast %c0_i32_211 : i32 to vector<2x128xi32>
    %642 = vector.extract_strided_slice %632 {offsets = [0, 1], sizes = [2, 1], strides = [1, 1]} : vector<2x128xf32> to vector<2x1xf32>
    %643 = vector.extract_strided_slice %628 {offsets = [1, 0], sizes = [1, 128], strides = [1, 1]} : vector<8x128xf32> to vector<1x128xf32>
    %644 = vector.broadcast %642 : vector<2x1xf32> to vector<2x128xf32>
    %645 = vector.broadcast %643 : vector<1x128xf32> to vector<2x128xf32>
    %646 = arith.addf %644, %645 : vector<2x128xf32>
    %647 = arith.cmpf ogt, %646, %640 : vector<2x128xf32>
    %648 = arith.select %647, %646, %640 : vector<2x128xi1>, vector<2x128xf32>
    %c1_i32 = arith.constant 1 : i32
    %649 = vector.broadcast %c1_i32 : i32 to vector<2x128xi32>
    %650 = arith.select %647, %649, %641 : vector<2x128xi1>, vector<2x128xi32>
    %651 = vector.extract_strided_slice %632 {offsets = [0, 2], sizes = [2, 1], strides = [1, 1]} : vector<2x128xf32> to vector<2x1xf32>
    %652 = vector.extract_strided_slice %628 {offsets = [2, 0], sizes = [1, 128], strides = [1, 1]} : vector<8x128xf32> to vector<1x128xf32>
    %653 = vector.broadcast %651 : vector<2x1xf32> to vector<2x128xf32>
    %654 = vector.broadcast %652 : vector<1x128xf32> to vector<2x128xf32>
    %655 = arith.addf %653, %654 : vector<2x128xf32>
    %656 = arith.cmpf ogt, %655, %648 : vector<2x128xf32>
    %657 = arith.select %656, %655, %648 : vector<2x128xi1>, vector<2x128xf32>
    %c2_i32 = arith.constant 2 : i32
    %658 = vector.broadcast %c2_i32 : i32 to vector<2x128xi32>
    %659 = arith.select %656, %658, %650 : vector<2x128xi1>, vector<2x128xi32>
    %660 = vector.extract_strided_slice %632 {offsets = [0, 3], sizes = [2, 1], strides = [1, 1]} : vector<2x128xf32> to vector<2x1xf32>
    %661 = vector.extract_strided_slice %628 {offsets = [3, 0], sizes = [1, 128], strides = [1, 1]} : vector<8x128xf32> to vector<1x128xf32>
    %662 = vector.broadcast %660 : vector<2x1xf32> to vector<2x128xf32>
    %663 = vector.broadcast %661 : vector<1x128xf32> to vector<2x128xf32>
    %664 = arith.addf %662, %663 : vector<2x128xf32>
    %665 = arith.cmpf ogt, %664, %657 : vector<2x128xf32>
    %666 = arith.select %665, %664, %657 : vector<2x128xi1>, vector<2x128xf32>
    %c3_i32 = arith.constant 3 : i32
    %667 = vector.broadcast %c3_i32 : i32 to vector<2x128xi32>
    %668 = arith.select %665, %667, %659 : vector<2x128xi1>, vector<2x128xi32>
    %669 = vector.extract_strided_slice %632 {offsets = [0, 4], sizes = [2, 1], strides = [1, 1]} : vector<2x128xf32> to vector<2x1xf32>
    %670 = vector.extract_strided_slice %628 {offsets = [4, 0], sizes = [1, 128], strides = [1, 1]} : vector<8x128xf32> to vector<1x128xf32>
    %671 = vector.broadcast %669 : vector<2x1xf32> to vector<2x128xf32>
    %672 = vector.broadcast %670 : vector<1x128xf32> to vector<2x128xf32>
    %673 = arith.addf %671, %672 : vector<2x128xf32>
    %674 = arith.cmpf ogt, %673, %666 : vector<2x128xf32>
    %675 = arith.select %674, %673, %666 : vector<2x128xi1>, vector<2x128xf32>
    %c4_i32 = arith.constant 4 : i32
    %676 = vector.broadcast %c4_i32 : i32 to vector<2x128xi32>
    %677 = arith.select %674, %676, %668 : vector<2x128xi1>, vector<2x128xi32>
    %678 = vector.extract_strided_slice %632 {offsets = [0, 5], sizes = [2, 1], strides = [1, 1]} : vector<2x128xf32> to vector<2x1xf32>
    %679 = vector.extract_strided_slice %628 {offsets = [5, 0], sizes = [1, 128], strides = [1, 1]} : vector<8x128xf32> to vector<1x128xf32>
    %680 = vector.broadcast %678 : vector<2x1xf32> to vector<2x128xf32>
    %681 = vector.broadcast %679 : vector<1x128xf32> to vector<2x128xf32>
    %682 = arith.addf %680, %681 : vector<2x128xf32>
    %683 = arith.cmpf ogt, %682, %675 : vector<2x128xf32>
    %684 = arith.select %683, %682, %675 : vector<2x128xi1>, vector<2x128xf32>
    %c5_i32 = arith.constant 5 : i32
    %685 = vector.broadcast %c5_i32 : i32 to vector<2x128xi32>
    %686 = arith.select %683, %685, %677 : vector<2x128xi1>, vector<2x128xi32>
    %687 = vector.extract_strided_slice %632 {offsets = [0, 6], sizes = [2, 1], strides = [1, 1]} : vector<2x128xf32> to vector<2x1xf32>
    %688 = vector.extract_strided_slice %628 {offsets = [6, 0], sizes = [1, 128], strides = [1, 1]} : vector<8x128xf32> to vector<1x128xf32>
    %689 = vector.broadcast %687 : vector<2x1xf32> to vector<2x128xf32>
    %690 = vector.broadcast %688 : vector<1x128xf32> to vector<2x128xf32>
    %691 = arith.addf %689, %690 : vector<2x128xf32>
    %692 = arith.cmpf ogt, %691, %684 : vector<2x128xf32>
    %693 = arith.select %692, %691, %684 : vector<2x128xi1>, vector<2x128xf32>
    %c6_i32 = arith.constant 6 : i32
    %694 = vector.broadcast %c6_i32 : i32 to vector<2x128xi32>
    %695 = arith.select %692, %694, %686 : vector<2x128xi1>, vector<2x128xi32>
    %696 = vector.extract_strided_slice %632 {offsets = [0, 7], sizes = [2, 1], strides = [1, 1]} : vector<2x128xf32> to vector<2x1xf32>
    %697 = vector.extract_strided_slice %628 {offsets = [7, 0], sizes = [1, 128], strides = [1, 1]} : vector<8x128xf32> to vector<1x128xf32>
    %698 = vector.broadcast %696 : vector<2x1xf32> to vector<2x128xf32>
    %699 = vector.broadcast %697 : vector<1x128xf32> to vector<2x128xf32>
    %700 = arith.addf %698, %699 : vector<2x128xf32>
    %701 = arith.cmpf ogt, %700, %693 : vector<2x128xf32>
    %702 = arith.select %701, %700, %693 : vector<2x128xi1>, vector<2x128xf32>
    %c7_i32 = arith.constant 7 : i32
    %703 = vector.broadcast %c7_i32 : i32 to vector<2x128xi32>
    %704 = arith.select %701, %703, %695 : vector<2x128xi1>, vector<2x128xi32>
    %c2_212 = arith.constant 2 : index
    %c0_213 = arith.constant 0 : index
    %705 = vector.load %arg15[%c2_212, %c0_213] : memref<16x128xi32, #tpu.memory_space<vmem>>, vector<2x128xi32>
    tpu.vector_store %arg15[%c2_212, %c0_213], %704 {strides = array<i32>} : memref<16x128xi32, #tpu.memory_space<vmem>>, vector<2x128xi32>,
    %c2_214 = arith.constant 2 : index
    %c0_215 = arith.constant 0 : index
    %706 = vector.load %arg12[%c2_214, %c0_215] : memref<16x1xf32, #tpu.memory_space<vmem>>, vector<2x1xf32>
    %cst_216 = arith.constant 0.000000e+00 : f32
    %707 = vector.broadcast %cst_216 : f32 to vector<2x1xf32>
    %708 = arith.cmpf ogt, %706, %707 : vector<2x1xf32>
    %709 = arith.addf %702, %635 : vector<2x128xf32>
    %710 = vector.shape_cast %708 : vector<2x1xi1> to vector<2x1xi1>
    %711 = vector.broadcast %710 : vector<2x1xi1> to vector<2x128xi1>
    %712 = arith.select %711, %709, %632 : vector<2x128xi1>, vector<2x128xf32>
    %713 = vector.extract_strided_slice %626 {offsets = [4, 0], sizes = [2, 128], strides = [1, 1]} : vector<16x128xf32> to vector<2x128xf32>
    %714 = vector.extract_strided_slice %712 {offsets = [0, 0], sizes = [2, 1], strides = [1, 1]} : vector<2x128xf32> to vector<2x1xf32>
    %715 = vector.extract_strided_slice %628 {offsets = [0, 0], sizes = [1, 128], strides = [1, 1]} : vector<8x128xf32> to vector<1x128xf32>
    %716 = vector.broadcast %714 : vector<2x1xf32> to vector<2x128xf32>
    %717 = vector.broadcast %715 : vector<1x128xf32> to vector<2x128xf32>
    %718 = arith.addf %716, %717 : vector<2x128xf32>
    %c0_i32_217 = arith.constant 0 : i32
    %719 = vector.broadcast %c0_i32_217 : i32 to vector<2x128xi32>
    %720 = vector.extract_strided_slice %712 {offsets = [0, 1], sizes = [2, 1], strides = [1, 1]} : vector<2x128xf32> to vector<2x1xf32>
    %721 = vector.extract_strided_slice %628 {offsets = [1, 0], sizes = [1, 128], strides = [1, 1]} : vector<8x128xf32> to vector<1x128xf32>
    %722 = vector.broadcast %720 : vector<2x1xf32> to vector<2x128xf32>
    %723 = vector.broadcast %721 : vector<1x128xf32> to vector<2x128xf32>
    %724 = arith.addf %722, %723 : vector<2x128xf32>
    %725 = arith.cmpf ogt, %724, %718 : vector<2x128xf32>
    %726 = arith.select %725, %724, %718 : vector<2x128xi1>, vector<2x128xf32>
    %c1_i32_218 = arith.constant 1 : i32
    %727 = vector.broadcast %c1_i32_218 : i32 to vector<2x128xi32>
    %728 = arith.select %725, %727, %719 : vector<2x128xi1>, vector<2x128xi32>
    %729 = vector.extract_strided_slice %712 {offsets = [0, 2], sizes = [2, 1], strides = [1, 1]} : vector<2x128xf32> to vector<2x1xf32>
    %730 = vector.extract_strided_slice %628 {offsets = [2, 0], sizes = [1, 128], strides = [1, 1]} : vector<8x128xf32> to vector<1x128xf32>
    %731 = vector.broadcast %729 : vector<2x1xf32> to vector<2x128xf32>
    %732 = vector.broadcast %730 : vector<1x128xf32> to vector<2x128xf32>
    %733 = arith.addf %731, %732 : vector<2x128xf32>
    %734 = arith.cmpf ogt, %733, %726 : vector<2x128xf32>
    %735 = arith.select %734, %733, %726 : vector<2x128xi1>, vector<2x128xf32>
    %c2_i32_219 = arith.constant 2 : i32
    %736 = vector.broadcast %c2_i32_219 : i32 to vector<2x128xi32>
    %737 = arith.select %734, %736, %728 : vector<2x128xi1>, vector<2x128xi32>
    %738 = vector.extract_strided_slice %712 {offsets = [0, 3], sizes = [2, 1], strides = [1, 1]} : vector<2x128xf32> to vector<2x1xf32>
    %739 = vector.extract_strided_slice %628 {offsets = [3, 0], sizes = [1, 128], strides = [1, 1]} : vector<8x128xf32> to vector<1x128xf32>
    %740 = vector.broadcast %738 : vector<2x1xf32> to vector<2x128xf32>
    %741 = vector.broadcast %739 : vector<1x128xf32> to vector<2x128xf32>
    %742 = arith.addf %740, %741 : vector<2x128xf32>
    %743 = arith.cmpf ogt, %742, %735 : vector<2x128xf32>
    %744 = arith.select %743, %742, %735 : vector<2x128xi1>, vector<2x128xf32>
    %c3_i32_220 = arith.constant 3 : i32
    %745 = vector.broadcast %c3_i32_220 : i32 to vector<2x128xi32>
    %746 = arith.select %743, %745, %737 : vector<2x128xi1>, vector<2x128xi32>
    %747 = vector.extract_strided_slice %712 {offsets = [0, 4], sizes = [2, 1], strides = [1, 1]} : vector<2x128xf32> to vector<2x1xf32>
    %748 = vector.extract_strided_slice %628 {offsets = [4, 0], sizes = [1, 128], strides = [1, 1]} : vector<8x128xf32> to vector<1x128xf32>
    %749 = vector.broadcast %747 : vector<2x1xf32> to vector<2x128xf32>
    %750 = vector.broadcast %748 : vector<1x128xf32> to vector<2x128xf32>
    %751 = arith.addf %749, %750 : vector<2x128xf32>
    %752 = arith.cmpf ogt, %751, %744 : vector<2x128xf32>
    %753 = arith.select %752, %751, %744 : vector<2x128xi1>, vector<2x128xf32>
    %c4_i32_221 = arith.constant 4 : i32
    %754 = vector.broadcast %c4_i32_221 : i32 to vector<2x128xi32>
    %755 = arith.select %752, %754, %746 : vector<2x128xi1>, vector<2x128xi32>
    %756 = vector.extract_strided_slice %712 {offsets = [0, 5], sizes = [2, 1], strides = [1, 1]} : vector<2x128xf32> to vector<2x1xf32>
    %757 = vector.extract_strided_slice %628 {offsets = [5, 0], sizes = [1, 128], strides = [1, 1]} : vector<8x128xf32> to vector<1x128xf32>
    %758 = vector.broadcast %756 : vector<2x1xf32> to vector<2x128xf32>
    %759 = vector.broadcast %757 : vector<1x128xf32> to vector<2x128xf32>
    %760 = arith.addf %758, %759 : vector<2x128xf32>
    %761 = arith.cmpf ogt, %760, %753 : vector<2x128xf32>
    %762 = arith.select %761, %760, %753 : vector<2x128xi1>, vector<2x128xf32>
    %c5_i32_222 = arith.constant 5 : i32
    %763 = vector.broadcast %c5_i32_222 : i32 to vector<2x128xi32>
    %764 = arith.select %761, %763, %755 : vector<2x128xi1>, vector<2x128xi32>
    %765 = vector.extract_strided_slice %712 {offsets = [0, 6], sizes = [2, 1], strides = [1, 1]} : vector<2x128xf32> to vector<2x1xf32>
    %766 = vector.extract_strided_slice %628 {offsets = [6, 0], sizes = [1, 128], strides = [1, 1]} : vector<8x128xf32> to vector<1x128xf32>
    %767 = vector.broadcast %765 : vector<2x1xf32> to vector<2x128xf32>
    %768 = vector.broadcast %766 : vector<1x128xf32> to vector<2x128xf32>
    %769 = arith.addf %767, %768 : vector<2x128xf32>
    %770 = arith.cmpf ogt, %769, %762 : vector<2x128xf32>
    %771 = arith.select %770, %769, %762 : vector<2x128xi1>, vector<2x128xf32>
    %c6_i32_223 = arith.constant 6 : i32
    %772 = vector.broadcast %c6_i32_223 : i32 to vector<2x128xi32>
    %773 = arith.select %770, %772, %764 : vector<2x128xi1>, vector<2x128xi32>
    %774 = vector.extract_strided_slice %712 {offsets = [0, 7], sizes = [2, 1], strides = [1, 1]} : vector<2x128xf32> to vector<2x1xf32>
    %775 = vector.extract_strided_slice %628 {offsets = [7, 0], sizes = [1, 128], strides = [1, 1]} : vector<8x128xf32> to vector<1x128xf32>
    %776 = vector.broadcast %774 : vector<2x1xf32> to vector<2x128xf32>
    %777 = vector.broadcast %775 : vector<1x128xf32> to vector<2x128xf32>
    %778 = arith.addf %776, %777 : vector<2x128xf32>
    %779 = arith.cmpf ogt, %778, %771 : vector<2x128xf32>
    %780 = arith.select %779, %778, %771 : vector<2x128xi1>, vector<2x128xf32>
    %c7_i32_224 = arith.constant 7 : i32
    %781 = vector.broadcast %c7_i32_224 : i32 to vector<2x128xi32>
    %782 = arith.select %779, %781, %773 : vector<2x128xi1>, vector<2x128xi32>
    %c4_225 = arith.constant 4 : index
    %c0_226 = arith.constant 0 : index
    %783 = vector.load %arg15[%c4_225, %c0_226] : memref<16x128xi32, #tpu.memory_space<vmem>>, vector<2x128xi32>
    tpu.vector_store %arg15[%c4_225, %c0_226], %782 {strides = array<i32>} : memref<16x128xi32, #tpu.memory_space<vmem>>, vector<2x128xi32>,
    %c4_227 = arith.constant 4 : index
    %c0_228 = arith.constant 0 : index
    %784 = vector.load %arg12[%c4_227, %c0_228] : memref<16x1xf32, #tpu.memory_space<vmem>>, vector<2x1xf32>
    %cst_229 = arith.constant 0.000000e+00 : f32
    %785 = vector.broadcast %cst_229 : f32 to vector<2x1xf32>
    %786 = arith.cmpf ogt, %784, %785 : vector<2x1xf32>
    %787 = arith.addf %780, %713 : vector<2x128xf32>
    %788 = vector.shape_cast %786 : vector<2x1xi1> to vector<2x1xi1>
    %789 = vector.broadcast %788 : vector<2x1xi1> to vector<2x128xi1>
    %790 = arith.select %789, %787, %712 : vector<2x128xi1>, vector<2x128xf32>
    %791 = vector.extract_strided_slice %626 {offsets = [6, 0], sizes = [2, 128], strides = [1, 1]} : vector<16x128xf32> to vector<2x128xf32>
    %792 = vector.extract_strided_slice %790 {offsets = [0, 0], sizes = [2, 1], strides = [1, 1]} : vector<2x128xf32> to vector<2x1xf32>
    %793 = vector.extract_strided_slice %628 {offsets = [0, 0], sizes = [1, 128], strides = [1, 1]} : vector<8x128xf32> to vector<1x128xf32>
    %794 = vector.broadcast %792 : vector<2x1xf32> to vector<2x128xf32>
    %795 = vector.broadcast %793 : vector<1x128xf32> to vector<2x128xf32>
    %796 = arith.addf %794, %795 : vector<2x128xf32>
    %c0_i32_230 = arith.constant 0 : i32
    %797 = vector.broadcast %c0_i32_230 : i32 to vector<2x128xi32>
    %798 = vector.extract_strided_slice %790 {offsets = [0, 1], sizes = [2, 1], strides = [1, 1]} : vector<2x128xf32> to vector<2x1xf32>
    %799 = vector.extract_strided_slice %628 {offsets = [1, 0], sizes = [1, 128], strides = [1, 1]} : vector<8x128xf32> to vector<1x128xf32>
    %800 = vector.broadcast %798 : vector<2x1xf32> to vector<2x128xf32>
    %801 = vector.broadcast %799 : vector<1x128xf32> to vector<2x128xf32>
    %802 = arith.addf %800, %801 : vector<2x128xf32>
    %803 = arith.cmpf ogt, %802, %796 : vector<2x128xf32>
    %804 = arith.select %803, %802, %796 : vector<2x128xi1>, vector<2x128xf32>
    %c1_i32_231 = arith.constant 1 : i32
    %805 = vector.broadcast %c1_i32_231 : i32 to vector<2x128xi32>
    %806 = arith.select %803, %805, %797 : vector<2x128xi1>, vector<2x128xi32>
    %807 = vector.extract_strided_slice %790 {offsets = [0, 2], sizes = [2, 1], strides = [1, 1]} : vector<2x128xf32> to vector<2x1xf32>
    %808 = vector.extract_strided_slice %628 {offsets = [2, 0], sizes = [1, 128], strides = [1, 1]} : vector<8x128xf32> to vector<1x128xf32>
    %809 = vector.broadcast %807 : vector<2x1xf32> to vector<2x128xf32>
    %810 = vector.broadcast %808 : vector<1x128xf32> to vector<2x128xf32>
    %811 = arith.addf %809, %810 : vector<2x128xf32>
    %812 = arith.cmpf ogt, %811, %804 : vector<2x128xf32>
    %813 = arith.select %812, %811, %804 : vector<2x128xi1>, vector<2x128xf32>
    %c2_i32_232 = arith.constant 2 : i32
    %814 = vector.broadcast %c2_i32_232 : i32 to vector<2x128xi32>
    %815 = arith.select %812, %814, %806 : vector<2x128xi1>, vector<2x128xi32>
    %816 = vector.extract_strided_slice %790 {offsets = [0, 3], sizes = [2, 1], strides = [1, 1]} : vector<2x128xf32> to vector<2x1xf32>
    %817 = vector.extract_strided_slice %628 {offsets = [3, 0], sizes = [1, 128], strides = [1, 1]} : vector<8x128xf32> to vector<1x128xf32>
    %818 = vector.broadcast %816 : vector<2x1xf32> to vector<2x128xf32>
    %819 = vector.broadcast %817 : vector<1x128xf32> to vector<2x128xf32>
    %820 = arith.addf %818, %819 : vector<2x128xf32>
    %821 = arith.cmpf ogt, %820, %813 : vector<2x128xf32>
    %822 = arith.select %821, %820, %813 : vector<2x128xi1>, vector<2x128xf32>
    %c3_i32_233 = arith.constant 3 : i32
    %823 = vector.broadcast %c3_i32_233 : i32 to vector<2x128xi32>
    %824 = arith.select %821, %823, %815 : vector<2x128xi1>, vector<2x128xi32>
    %825 = vector.extract_strided_slice %790 {offsets = [0, 4], sizes = [2, 1], strides = [1, 1]} : vector<2x128xf32> to vector<2x1xf32>
    %826 = vector.extract_strided_slice %628 {offsets = [4, 0], sizes = [1, 128], strides = [1, 1]} : vector<8x128xf32> to vector<1x128xf32>
    %827 = vector.broadcast %825 : vector<2x1xf32> to vector<2x128xf32>
    %828 = vector.broadcast %826 : vector<1x128xf32> to vector<2x128xf32>
    %829 = arith.addf %827, %828 : vector<2x128xf32>
    %830 = arith.cmpf ogt, %829, %822 : vector<2x128xf32>
    %831 = arith.select %830, %829, %822 : vector<2x128xi1>, vector<2x128xf32>
    %c4_i32_234 = arith.constant 4 : i32
    %832 = vector.broadcast %c4_i32_234 : i32 to vector<2x128xi32>
    %833 = arith.select %830, %832, %824 : vector<2x128xi1>, vector<2x128xi32>
    %834 = vector.extract_strided_slice %790 {offsets = [0, 5], sizes = [2, 1], strides = [1, 1]} : vector<2x128xf32> to vector<2x1xf32>
    %835 = vector.extract_strided_slice %628 {offsets = [5, 0], sizes = [1, 128], strides = [1, 1]} : vector<8x128xf32> to vector<1x128xf32>
    %836 = vector.broadcast %834 : vector<2x1xf32> to vector<2x128xf32>
    %837 = vector.broadcast %835 : vector<1x128xf32> to vector<2x128xf32>
    %838 = arith.addf %836, %837 : vector<2x128xf32>
    %839 = arith.cmpf ogt, %838, %831 : vector<2x128xf32>
    %840 = arith.select %839, %838, %831 : vector<2x128xi1>, vector<2x128xf32>
    %c5_i32_235 = arith.constant 5 : i32
    %841 = vector.broadcast %c5_i32_235 : i32 to vector<2x128xi32>
    %842 = arith.select %839, %841, %833 : vector<2x128xi1>, vector<2x128xi32>
    %843 = vector.extract_strided_slice %790 {offsets = [0, 6], sizes = [2, 1], strides = [1, 1]} : vector<2x128xf32> to vector<2x1xf32>
    %844 = vector.extract_strided_slice %628 {offsets = [6, 0], sizes = [1, 128], strides = [1, 1]} : vector<8x128xf32> to vector<1x128xf32>
    %845 = vector.broadcast %843 : vector<2x1xf32> to vector<2x128xf32>
    %846 = vector.broadcast %844 : vector<1x128xf32> to vector<2x128xf32>
    %847 = arith.addf %845, %846 : vector<2x128xf32>
    %848 = arith.cmpf ogt, %847, %840 : vector<2x128xf32>
    %849 = arith.select %848, %847, %840 : vector<2x128xi1>, vector<2x128xf32>
    %c6_i32_236 = arith.constant 6 : i32
    %850 = vector.broadcast %c6_i32_236 : i32 to vector<2x128xi32>
    %851 = arith.select %848, %850, %842 : vector<2x128xi1>, vector<2x128xi32>
    %852 = vector.extract_strided_slice %790 {offsets = [0, 7], sizes = [2, 1], strides = [1, 1]} : vector<2x128xf32> to vector<2x1xf32>
    %853 = vector.extract_strided_slice %628 {offsets = [7, 0], sizes = [1, 128], strides = [1, 1]} : vector<8x128xf32> to vector<1x128xf32>
    %854 = vector.broadcast %852 : vector<2x1xf32> to vector<2x128xf32>
    %855 = vector.broadcast %853 : vector<1x128xf32> to vector<2x128xf32>
    %856 = arith.addf %854, %855 : vector<2x128xf32>
    %857 = arith.cmpf ogt, %856, %849 : vector<2x128xf32>
    %858 = arith.select %857, %856, %849 : vector<2x128xi1>, vector<2x128xf32>
    %c7_i32_237 = arith.constant 7 : i32
    %859 = vector.broadcast %c7_i32_237 : i32 to vector<2x128xi32>
    %860 = arith.select %857, %859, %851 : vector<2x128xi1>, vector<2x128xi32>
    %c6_238 = arith.constant 6 : index
    %c0_239 = arith.constant 0 : index
    %861 = vector.load %arg15[%c6_238, %c0_239] : memref<16x128xi32, #tpu.memory_space<vmem>>, vector<2x128xi32>
    tpu.vector_store %arg15[%c6_238, %c0_239], %860 {strides = array<i32>} : memref<16x128xi32, #tpu.memory_space<vmem>>, vector<2x128xi32>,
    %c6_240 = arith.constant 6 : index
    %c0_241 = arith.constant 0 : index
    %862 = vector.load %arg12[%c6_240, %c0_241] : memref<16x1xf32, #tpu.memory_space<vmem>>, vector<2x1xf32>
    %cst_242 = arith.constant 0.000000e+00 : f32
    %863 = vector.broadcast %cst_242 : f32 to vector<2x1xf32>
    %864 = arith.cmpf ogt, %862, %863 : vector<2x1xf32>
    %865 = arith.addf %858, %791 : vector<2x128xf32>
    %866 = vector.shape_cast %864 : vector<2x1xi1> to vector<2x1xi1>
    %867 = vector.broadcast %866 : vector<2x1xi1> to vector<2x128xi1>
    %868 = arith.select %867, %865, %790 : vector<2x128xi1>, vector<2x128xf32>
    %869 = vector.extract_strided_slice %626 {offsets = [8, 0], sizes = [2, 128], strides = [1, 1]} : vector<16x128xf32> to vector<2x128xf32>
    %870 = vector.extract_strided_slice %868 {offsets = [0, 0], sizes = [2, 1], strides = [1, 1]} : vector<2x128xf32> to vector<2x1xf32>
    %871 = vector.extract_strided_slice %628 {offsets = [0, 0], sizes = [1, 128], strides = [1, 1]} : vector<8x128xf32> to vector<1x128xf32>
    %872 = vector.broadcast %870 : vector<2x1xf32> to vector<2x128xf32>
    %873 = vector.broadcast %871 : vector<1x128xf32> to vector<2x128xf32>
    %874 = arith.addf %872, %873 : vector<2x128xf32>
    %c0_i32_243 = arith.constant 0 : i32
    %875 = vector.broadcast %c0_i32_243 : i32 to vector<2x128xi32>
    %876 = vector.extract_strided_slice %868 {offsets = [0, 1], sizes = [2, 1], strides = [1, 1]} : vector<2x128xf32> to vector<2x1xf32>
    %877 = vector.extract_strided_slice %628 {offsets = [1, 0], sizes = [1, 128], strides = [1, 1]} : vector<8x128xf32> to vector<1x128xf32>
    %878 = vector.broadcast %876 : vector<2x1xf32> to vector<2x128xf32>
    %879 = vector.broadcast %877 : vector<1x128xf32> to vector<2x128xf32>
    %880 = arith.addf %878, %879 : vector<2x128xf32>
    %881 = arith.cmpf ogt, %880, %874 : vector<2x128xf32>
    %882 = arith.select %881, %880, %874 : vector<2x128xi1>, vector<2x128xf32>
    %c1_i32_244 = arith.constant 1 : i32
    %883 = vector.broadcast %c1_i32_244 : i32 to vector<2x128xi32>
    %884 = arith.select %881, %883, %875 : vector<2x128xi1>, vector<2x128xi32>
    %885 = vector.extract_strided_slice %868 {offsets = [0, 2], sizes = [2, 1], strides = [1, 1]} : vector<2x128xf32> to vector<2x1xf32>
    %886 = vector.extract_strided_slice %628 {offsets = [2, 0], sizes = [1, 128], strides = [1, 1]} : vector<8x128xf32> to vector<1x128xf32>
    %887 = vector.broadcast %885 : vector<2x1xf32> to vector<2x128xf32>
    %888 = vector.broadcast %886 : vector<1x128xf32> to vector<2x128xf32>
    %889 = arith.addf %887, %888 : vector<2x128xf32>
    %890 = arith.cmpf ogt, %889, %882 : vector<2x128xf32>
    %891 = arith.select %890, %889, %882 : vector<2x128xi1>, vector<2x128xf32>
    %c2_i32_245 = arith.constant 2 : i32
    %892 = vector.broadcast %c2_i32_245 : i32 to vector<2x128xi32>
    %893 = arith.select %890, %892, %884 : vector<2x128xi1>, vector<2x128xi32>
    %894 = vector.extract_strided_slice %868 {offsets = [0, 3], sizes = [2, 1], strides = [1, 1]} : vector<2x128xf32> to vector<2x1xf32>
    %895 = vector.extract_strided_slice %628 {offsets = [3, 0], sizes = [1, 128], strides = [1, 1]} : vector<8x128xf32> to vector<1x128xf32>
    %896 = vector.broadcast %894 : vector<2x1xf32> to vector<2x128xf32>
    %897 = vector.broadcast %895 : vector<1x128xf32> to vector<2x128xf32>
    %898 = arith.addf %896, %897 : vector<2x128xf32>
    %899 = arith.cmpf ogt, %898, %891 : vector<2x128xf32>
    %900 = arith.select %899, %898, %891 : vector<2x128xi1>, vector<2x128xf32>
    %c3_i32_246 = arith.constant 3 : i32
    %901 = vector.broadcast %c3_i32_246 : i32 to vector<2x128xi32>
    %902 = arith.select %899, %901, %893 : vector<2x128xi1>, vector<2x128xi32>
    %903 = vector.extract_strided_slice %868 {offsets = [0, 4], sizes = [2, 1], strides = [1, 1]} : vector<2x128xf32> to vector<2x1xf32>
    %904 = vector.extract_strided_slice %628 {offsets = [4, 0], sizes = [1, 128], strides = [1, 1]} : vector<8x128xf32> to vector<1x128xf32>
    %905 = vector.broadcast %903 : vector<2x1xf32> to vector<2x128xf32>
    %906 = vector.broadcast %904 : vector<1x128xf32> to vector<2x128xf32>
    %907 = arith.addf %905, %906 : vector<2x128xf32>
    %908 = arith.cmpf ogt, %907, %900 : vector<2x128xf32>
    %909 = arith.select %908, %907, %900 : vector<2x128xi1>, vector<2x128xf32>
    %c4_i32_247 = arith.constant 4 : i32
    %910 = vector.broadcast %c4_i32_247 : i32 to vector<2x128xi32>
    %911 = arith.select %908, %910, %902 : vector<2x128xi1>, vector<2x128xi32>
    %912 = vector.extract_strided_slice %868 {offsets = [0, 5], sizes = [2, 1], strides = [1, 1]} : vector<2x128xf32> to vector<2x1xf32>
    %913 = vector.extract_strided_slice %628 {offsets = [5, 0], sizes = [1, 128], strides = [1, 1]} : vector<8x128xf32> to vector<1x128xf32>
    %914 = vector.broadcast %912 : vector<2x1xf32> to vector<2x128xf32>
    %915 = vector.broadcast %913 : vector<1x128xf32> to vector<2x128xf32>
    %916 = arith.addf %914, %915 : vector<2x128xf32>
    %917 = arith.cmpf ogt, %916, %909 : vector<2x128xf32>
    %918 = arith.select %917, %916, %909 : vector<2x128xi1>, vector<2x128xf32>
    %c5_i32_248 = arith.constant 5 : i32
    %919 = vector.broadcast %c5_i32_248 : i32 to vector<2x128xi32>
    %920 = arith.select %917, %919, %911 : vector<2x128xi1>, vector<2x128xi32>
    %921 = vector.extract_strided_slice %868 {offsets = [0, 6], sizes = [2, 1], strides = [1, 1]} : vector<2x128xf32> to vector<2x1xf32>
    %922 = vector.extract_strided_slice %628 {offsets = [6, 0], sizes = [1, 128], strides = [1, 1]} : vector<8x128xf32> to vector<1x128xf32>
    %923 = vector.broadcast %921 : vector<2x1xf32> to vector<2x128xf32>
    %924 = vector.broadcast %922 : vector<1x128xf32> to vector<2x128xf32>
    %925 = arith.addf %923, %924 : vector<2x128xf32>
    %926 = arith.cmpf ogt, %925, %918 : vector<2x128xf32>
    %927 = arith.select %926, %925, %918 : vector<2x128xi1>, vector<2x128xf32>
    %c6_i32_249 = arith.constant 6 : i32
    %928 = vector.broadcast %c6_i32_249 : i32 to vector<2x128xi32>
    %929 = arith.select %926, %928, %920 : vector<2x128xi1>, vector<2x128xi32>
    %930 = vector.extract_strided_slice %868 {offsets = [0, 7], sizes = [2, 1], strides = [1, 1]} : vector<2x128xf32> to vector<2x1xf32>
    %931 = vector.extract_strided_slice %628 {offsets = [7, 0], sizes = [1, 128], strides = [1, 1]} : vector<8x128xf32> to vector<1x128xf32>
    %932 = vector.broadcast %930 : vector<2x1xf32> to vector<2x128xf32>
    %933 = vector.broadcast %931 : vector<1x128xf32> to vector<2x128xf32>
    %934 = arith.addf %932, %933 : vector<2x128xf32>
    %935 = arith.cmpf ogt, %934, %927 : vector<2x128xf32>
    %936 = arith.select %935, %934, %927 : vector<2x128xi1>, vector<2x128xf32>
    %c7_i32_250 = arith.constant 7 : i32
    %937 = vector.broadcast %c7_i32_250 : i32 to vector<2x128xi32>
    %938 = arith.select %935, %937, %929 : vector<2x128xi1>, vector<2x128xi32>
    %c8_251 = arith.constant 8 : index
    %c0_252 = arith.constant 0 : index
    %939 = vector.load %arg15[%c8_251, %c0_252] : memref<16x128xi32, #tpu.memory_space<vmem>>, vector<2x128xi32>
    tpu.vector_store %arg15[%c8_251, %c0_252], %938 {strides = array<i32>} : memref<16x128xi32, #tpu.memory_space<vmem>>, vector<2x128xi32>,
    %c8_253 = arith.constant 8 : index
    %c0_254 = arith.constant 0 : index
    %940 = vector.load %arg12[%c8_253, %c0_254] : memref<16x1xf32, #tpu.memory_space<vmem>>, vector<2x1xf32>
    %cst_255 = arith.constant 0.000000e+00 : f32
    %941 = vector.broadcast %cst_255 : f32 to vector<2x1xf32>
    %942 = arith.cmpf ogt, %940, %941 : vector<2x1xf32>
    %943 = arith.addf %936, %869 : vector<2x128xf32>
    %944 = vector.shape_cast %942 : vector<2x1xi1> to vector<2x1xi1>
    %945 = vector.broadcast %944 : vector<2x1xi1> to vector<2x128xi1>
    %946 = arith.select %945, %943, %868 : vector<2x128xi1>, vector<2x128xf32>
    %947 = vector.extract_strided_slice %626 {offsets = [10, 0], sizes = [2, 128], strides = [1, 1]} : vector<16x128xf32> to vector<2x128xf32>
    %948 = vector.extract_strided_slice %946 {offsets = [0, 0], sizes = [2, 1], strides = [1, 1]} : vector<2x128xf32> to vector<2x1xf32>
    %949 = vector.extract_strided_slice %628 {offsets = [0, 0], sizes = [1, 128], strides = [1, 1]} : vector<8x128xf32> to vector<1x128xf32>
    %950 = vector.broadcast %948 : vector<2x1xf32> to vector<2x128xf32>
    %951 = vector.broadcast %949 : vector<1x128xf32> to vector<2x128xf32>
    %952 = arith.addf %950, %951 : vector<2x128xf32>
    %c0_i32_256 = arith.constant 0 : i32
    %953 = vector.broadcast %c0_i32_256 : i32 to vector<2x128xi32>
    %954 = vector.extract_strided_slice %946 {offsets = [0, 1], sizes = [2, 1], strides = [1, 1]} : vector<2x128xf32> to vector<2x1xf32>
    %955 = vector.extract_strided_slice %628 {offsets = [1, 0], sizes = [1, 128], strides = [1, 1]} : vector<8x128xf32> to vector<1x128xf32>
    %956 = vector.broadcast %954 : vector<2x1xf32> to vector<2x128xf32>
    %957 = vector.broadcast %955 : vector<1x128xf32> to vector<2x128xf32>
    %958 = arith.addf %956, %957 : vector<2x128xf32>
    %959 = arith.cmpf ogt, %958, %952 : vector<2x128xf32>
    %960 = arith.select %959, %958, %952 : vector<2x128xi1>, vector<2x128xf32>
    %c1_i32_257 = arith.constant 1 : i32
    %961 = vector.broadcast %c1_i32_257 : i32 to vector<2x128xi32>
    %962 = arith.select %959, %961, %953 : vector<2x128xi1>, vector<2x128xi32>
    %963 = vector.extract_strided_slice %946 {offsets = [0, 2], sizes = [2, 1], strides = [1, 1]} : vector<2x128xf32> to vector<2x1xf32>
    %964 = vector.extract_strided_slice %628 {offsets = [2, 0], sizes = [1, 128], strides = [1, 1]} : vector<8x128xf32> to vector<1x128xf32>
    %965 = vector.broadcast %963 : vector<2x1xf32> to vector<2x128xf32>
    %966 = vector.broadcast %964 : vector<1x128xf32> to vector<2x128xf32>
    %967 = arith.addf %965, %966 : vector<2x128xf32>
    %968 = arith.cmpf ogt, %967, %960 : vector<2x128xf32>
    %969 = arith.select %968, %967, %960 : vector<2x128xi1>, vector<2x128xf32>
    %c2_i32_258 = arith.constant 2 : i32
    %970 = vector.broadcast %c2_i32_258 : i32 to vector<2x128xi32>
    %971 = arith.select %968, %970, %962 : vector<2x128xi1>, vector<2x128xi32>
    %972 = vector.extract_strided_slice %946 {offsets = [0, 3], sizes = [2, 1], strides = [1, 1]} : vector<2x128xf32> to vector<2x1xf32>
    %973 = vector.extract_strided_slice %628 {offsets = [3, 0], sizes = [1, 128], strides = [1, 1]} : vector<8x128xf32> to vector<1x128xf32>
    %974 = vector.broadcast %972 : vector<2x1xf32> to vector<2x128xf32>
    %975 = vector.broadcast %973 : vector<1x128xf32> to vector<2x128xf32>
    %976 = arith.addf %974, %975 : vector<2x128xf32>
    %977 = arith.cmpf ogt, %976, %969 : vector<2x128xf32>
    %978 = arith.select %977, %976, %969 : vector<2x128xi1>, vector<2x128xf32>
    %c3_i32_259 = arith.constant 3 : i32
    %979 = vector.broadcast %c3_i32_259 : i32 to vector<2x128xi32>
    %980 = arith.select %977, %979, %971 : vector<2x128xi1>, vector<2x128xi32>
    %981 = vector.extract_strided_slice %946 {offsets = [0, 4], sizes = [2, 1], strides = [1, 1]} : vector<2x128xf32> to vector<2x1xf32>
    %982 = vector.extract_strided_slice %628 {offsets = [4, 0], sizes = [1, 128], strides = [1, 1]} : vector<8x128xf32> to vector<1x128xf32>
    %983 = vector.broadcast %981 : vector<2x1xf32> to vector<2x128xf32>
    %984 = vector.broadcast %982 : vector<1x128xf32> to vector<2x128xf32>
    %985 = arith.addf %983, %984 : vector<2x128xf32>
    %986 = arith.cmpf ogt, %985, %978 : vector<2x128xf32>
    %987 = arith.select %986, %985, %978 : vector<2x128xi1>, vector<2x128xf32>
    %c4_i32_260 = arith.constant 4 : i32
    %988 = vector.broadcast %c4_i32_260 : i32 to vector<2x128xi32>
    %989 = arith.select %986, %988, %980 : vector<2x128xi1>, vector<2x128xi32>
    %990 = vector.extract_strided_slice %946 {offsets = [0, 5], sizes = [2, 1], strides = [1, 1]} : vector<2x128xf32> to vector<2x1xf32>
    %991 = vector.extract_strided_slice %628 {offsets = [5, 0], sizes = [1, 128], strides = [1, 1]} : vector<8x128xf32> to vector<1x128xf32>
    %992 = vector.broadcast %990 : vector<2x1xf32> to vector<2x128xf32>
    %993 = vector.broadcast %991 : vector<1x128xf32> to vector<2x128xf32>
    %994 = arith.addf %992, %993 : vector<2x128xf32>
    %995 = arith.cmpf ogt, %994, %987 : vector<2x128xf32>
    %996 = arith.select %995, %994, %987 : vector<2x128xi1>, vector<2x128xf32>
    %c5_i32_261 = arith.constant 5 : i32
    %997 = vector.broadcast %c5_i32_261 : i32 to vector<2x128xi32>
    %998 = arith.select %995, %997, %989 : vector<2x128xi1>, vector<2x128xi32>
    %999 = vector.extract_strided_slice %946 {offsets = [0, 6], sizes = [2, 1], strides = [1, 1]} : vector<2x128xf32> to vector<2x1xf32>
    %1000 = vector.extract_strided_slice %628 {offsets = [6, 0], sizes = [1, 128], strides = [1, 1]} : vector<8x128xf32> to vector<1x128xf32>
    %1001 = vector.broadcast %999 : vector<2x1xf32> to vector<2x128xf32>
    %1002 = vector.broadcast %1000 : vector<1x128xf32> to vector<2x128xf32>
    %1003 = arith.addf %1001, %1002 : vector<2x128xf32>
    %1004 = arith.cmpf ogt, %1003, %996 : vector<2x128xf32>
    %1005 = arith.select %1004, %1003, %996 : vector<2x128xi1>, vector<2x128xf32>
    %c6_i32_262 = arith.constant 6 : i32
    %1006 = vector.broadcast %c6_i32_262 : i32 to vector<2x128xi32>
    %1007 = arith.select %1004, %1006, %998 : vector<2x128xi1>, vector<2x128xi32>
    %1008 = vector.extract_strided_slice %946 {offsets = [0, 7], sizes = [2, 1], strides = [1, 1]} : vector<2x128xf32> to vector<2x1xf32>
    %1009 = vector.extract_strided_slice %628 {offsets = [7, 0], sizes = [1, 128], strides = [1, 1]} : vector<8x128xf32> to vector<1x128xf32>
    %1010 = vector.broadcast %1008 : vector<2x1xf32> to vector<2x128xf32>
    %1011 = vector.broadcast %1009 : vector<1x128xf32> to vector<2x128xf32>
    %1012 = arith.addf %1010, %1011 : vector<2x128xf32>
    %1013 = arith.cmpf ogt, %1012, %1005 : vector<2x128xf32>
    %1014 = arith.select %1013, %1012, %1005 : vector<2x128xi1>, vector<2x128xf32>
    %c7_i32_263 = arith.constant 7 : i32
    %1015 = vector.broadcast %c7_i32_263 : i32 to vector<2x128xi32>
    %1016 = arith.select %1013, %1015, %1007 : vector<2x128xi1>, vector<2x128xi32>
    %c10_264 = arith.constant 10 : index
    %c0_265 = arith.constant 0 : index
    %1017 = vector.load %arg15[%c10_264, %c0_265] : memref<16x128xi32, #tpu.memory_space<vmem>>, vector<2x128xi32>
    tpu.vector_store %arg15[%c10_264, %c0_265], %1016 {strides = array<i32>} : memref<16x128xi32, #tpu.memory_space<vmem>>, vector<2x128xi32>,
    %c10_266 = arith.constant 10 : index
    %c0_267 = arith.constant 0 : index
    %1018 = vector.load %arg12[%c10_266, %c0_267] : memref<16x1xf32, #tpu.memory_space<vmem>>, vector<2x1xf32>
    %cst_268 = arith.constant 0.000000e+00 : f32
    %1019 = vector.broadcast %cst_268 : f32 to vector<2x1xf32>
    %1020 = arith.cmpf ogt, %1018, %1019 : vector<2x1xf32>
    %1021 = arith.addf %1014, %947 : vector<2x128xf32>
    %1022 = vector.shape_cast %1020 : vector<2x1xi1> to vector<2x1xi1>
    %1023 = vector.broadcast %1022 : vector<2x1xi1> to vector<2x128xi1>
    %1024 = arith.select %1023, %1021, %946 : vector<2x128xi1>, vector<2x128xf32>
    %1025 = vector.extract_strided_slice %626 {offsets = [12, 0], sizes = [2, 128], strides = [1, 1]} : vector<16x128xf32> to vector<2x128xf32>
    %1026 = vector.extract_strided_slice %1024 {offsets = [0, 0], sizes = [2, 1], strides = [1, 1]} : vector<2x128xf32> to vector<2x1xf32>
    %1027 = vector.extract_strided_slice %628 {offsets = [0, 0], sizes = [1, 128], strides = [1, 1]} : vector<8x128xf32> to vector<1x128xf32>
    %1028 = vector.broadcast %1026 : vector<2x1xf32> to vector<2x128xf32>
    %1029 = vector.broadcast %1027 : vector<1x128xf32> to vector<2x128xf32>
    %1030 = arith.addf %1028, %1029 : vector<2x128xf32>
    %c0_i32_269 = arith.constant 0 : i32
    %1031 = vector.broadcast %c0_i32_269 : i32 to vector<2x128xi32>
    %1032 = vector.extract_strided_slice %1024 {offsets = [0, 1], sizes = [2, 1], strides = [1, 1]} : vector<2x128xf32> to vector<2x1xf32>
    %1033 = vector.extract_strided_slice %628 {offsets = [1, 0], sizes = [1, 128], strides = [1, 1]} : vector<8x128xf32> to vector<1x128xf32>
    %1034 = vector.broadcast %1032 : vector<2x1xf32> to vector<2x128xf32>
    %1035 = vector.broadcast %1033 : vector<1x128xf32> to vector<2x128xf32>
    %1036 = arith.addf %1034, %1035 : vector<2x128xf32>
    %1037 = arith.cmpf ogt, %1036, %1030 : vector<2x128xf32>
    %1038 = arith.select %1037, %1036, %1030 : vector<2x128xi1>, vector<2x128xf32>
    %c1_i32_270 = arith.constant 1 : i32
    %1039 = vector.broadcast %c1_i32_270 : i32 to vector<2x128xi32>
    %1040 = arith.select %1037, %1039, %1031 : vector<2x128xi1>, vector<2x128xi32>
    %1041 = vector.extract_strided_slice %1024 {offsets = [0, 2], sizes = [2, 1], strides = [1, 1]} : vector<2x128xf32> to vector<2x1xf32>
    %1042 = vector.extract_strided_slice %628 {offsets = [2, 0], sizes = [1, 128], strides = [1, 1]} : vector<8x128xf32> to vector<1x128xf32>
    %1043 = vector.broadcast %1041 : vector<2x1xf32> to vector<2x128xf32>
    %1044 = vector.broadcast %1042 : vector<1x128xf32> to vector<2x128xf32>
    %1045 = arith.addf %1043, %1044 : vector<2x128xf32>
    %1046 = arith.cmpf ogt, %1045, %1038 : vector<2x128xf32>
    %1047 = arith.select %1046, %1045, %1038 : vector<2x128xi1>, vector<2x128xf32>
    %c2_i32_271 = arith.constant 2 : i32
    %1048 = vector.broadcast %c2_i32_271 : i32 to vector<2x128xi32>
    %1049 = arith.select %1046, %1048, %1040 : vector<2x128xi1>, vector<2x128xi32>
    %1050 = vector.extract_strided_slice %1024 {offsets = [0, 3], sizes = [2, 1], strides = [1, 1]} : vector<2x128xf32> to vector<2x1xf32>
    %1051 = vector.extract_strided_slice %628 {offsets = [3, 0], sizes = [1, 128], strides = [1, 1]} : vector<8x128xf32> to vector<1x128xf32>
    %1052 = vector.broadcast %1050 : vector<2x1xf32> to vector<2x128xf32>
    %1053 = vector.broadcast %1051 : vector<1x128xf32> to vector<2x128xf32>
    %1054 = arith.addf %1052, %1053 : vector<2x128xf32>
    %1055 = arith.cmpf ogt, %1054, %1047 : vector<2x128xf32>
    %1056 = arith.select %1055, %1054, %1047 : vector<2x128xi1>, vector<2x128xf32>
    %c3_i32_272 = arith.constant 3 : i32
    %1057 = vector.broadcast %c3_i32_272 : i32 to vector<2x128xi32>
    %1058 = arith.select %1055, %1057, %1049 : vector<2x128xi1>, vector<2x128xi32>
    %1059 = vector.extract_strided_slice %1024 {offsets = [0, 4], sizes = [2, 1], strides = [1, 1]} : vector<2x128xf32> to vector<2x1xf32>
    %1060 = vector.extract_strided_slice %628 {offsets = [4, 0], sizes = [1, 128], strides = [1, 1]} : vector<8x128xf32> to vector<1x128xf32>
    %1061 = vector.broadcast %1059 : vector<2x1xf32> to vector<2x128xf32>
    %1062 = vector.broadcast %1060 : vector<1x128xf32> to vector<2x128xf32>
    %1063 = arith.addf %1061, %1062 : vector<2x128xf32>
    %1064 = arith.cmpf ogt, %1063, %1056 : vector<2x128xf32>
    %1065 = arith.select %1064, %1063, %1056 : vector<2x128xi1>, vector<2x128xf32>
    %c4_i32_273 = arith.constant 4 : i32
    %1066 = vector.broadcast %c4_i32_273 : i32 to vector<2x128xi32>
    %1067 = arith.select %1064, %1066, %1058 : vector<2x128xi1>, vector<2x128xi32>
    %1068 = vector.extract_strided_slice %1024 {offsets = [0, 5], sizes = [2, 1], strides = [1, 1]} : vector<2x128xf32> to vector<2x1xf32>
    %1069 = vector.extract_strided_slice %628 {offsets = [5, 0], sizes = [1, 128], strides = [1, 1]} : vector<8x128xf32> to vector<1x128xf32>
    %1070 = vector.broadcast %1068 : vector<2x1xf32> to vector<2x128xf32>
    %1071 = vector.broadcast %1069 : vector<1x128xf32> to vector<2x128xf32>
    %1072 = arith.addf %1070, %1071 : vector<2x128xf32>
    %1073 = arith.cmpf ogt, %1072, %1065 : vector<2x128xf32>
    %1074 = arith.select %1073, %1072, %1065 : vector<2x128xi1>, vector<2x128xf32>
    %c5_i32_274 = arith.constant 5 : i32
    %1075 = vector.broadcast %c5_i32_274 : i32 to vector<2x128xi32>
    %1076 = arith.select %1073, %1075, %1067 : vector<2x128xi1>, vector<2x128xi32>
    %1077 = vector.extract_strided_slice %1024 {offsets = [0, 6], sizes = [2, 1], strides = [1, 1]} : vector<2x128xf32> to vector<2x1xf32>
    %1078 = vector.extract_strided_slice %628 {offsets = [6, 0], sizes = [1, 128], strides = [1, 1]} : vector<8x128xf32> to vector<1x128xf32>
    %1079 = vector.broadcast %1077 : vector<2x1xf32> to vector<2x128xf32>
    %1080 = vector.broadcast %1078 : vector<1x128xf32> to vector<2x128xf32>
    %1081 = arith.addf %1079, %1080 : vector<2x128xf32>
    %1082 = arith.cmpf ogt, %1081, %1074 : vector<2x128xf32>
    %1083 = arith.select %1082, %1081, %1074 : vector<2x128xi1>, vector<2x128xf32>
    %c6_i32_275 = arith.constant 6 : i32
    %1084 = vector.broadcast %c6_i32_275 : i32 to vector<2x128xi32>
    %1085 = arith.select %1082, %1084, %1076 : vector<2x128xi1>, vector<2x128xi32>
    %1086 = vector.extract_strided_slice %1024 {offsets = [0, 7], sizes = [2, 1], strides = [1, 1]} : vector<2x128xf32> to vector<2x1xf32>
    %1087 = vector.extract_strided_slice %628 {offsets = [7, 0], sizes = [1, 128], strides = [1, 1]} : vector<8x128xf32> to vector<1x128xf32>
    %1088 = vector.broadcast %1086 : vector<2x1xf32> to vector<2x128xf32>
    %1089 = vector.broadcast %1087 : vector<1x128xf32> to vector<2x128xf32>
    %1090 = arith.addf %1088, %1089 : vector<2x128xf32>
    %1091 = arith.cmpf ogt, %1090, %1083 : vector<2x128xf32>
    %1092 = arith.select %1091, %1090, %1083 : vector<2x128xi1>, vector<2x128xf32>
    %c7_i32_276 = arith.constant 7 : i32
    %1093 = vector.broadcast %c7_i32_276 : i32 to vector<2x128xi32>
    %1094 = arith.select %1091, %1093, %1085 : vector<2x128xi1>, vector<2x128xi32>
    %c12_277 = arith.constant 12 : index
    %c0_278 = arith.constant 0 : index
    %1095 = vector.load %arg15[%c12_277, %c0_278] : memref<16x128xi32, #tpu.memory_space<vmem>>, vector<2x128xi32>
    tpu.vector_store %arg15[%c12_277, %c0_278], %1094 {strides = array<i32>} : memref<16x128xi32, #tpu.memory_space<vmem>>, vector<2x128xi32>,
    %c12_279 = arith.constant 12 : index
    %c0_280 = arith.constant 0 : index
    %1096 = vector.load %arg12[%c12_279, %c0_280] : memref<16x1xf32, #tpu.memory_space<vmem>>, vector<2x1xf32>
    %cst_281 = arith.constant 0.000000e+00 : f32
    %1097 = vector.broadcast %cst_281 : f32 to vector<2x1xf32>
    %1098 = arith.cmpf ogt, %1096, %1097 : vector<2x1xf32>
    %1099 = arith.addf %1092, %1025 : vector<2x128xf32>
    %1100 = vector.shape_cast %1098 : vector<2x1xi1> to vector<2x1xi1>
    %1101 = vector.broadcast %1100 : vector<2x1xi1> to vector<2x128xi1>
    %1102 = arith.select %1101, %1099, %1024 : vector<2x128xi1>, vector<2x128xf32>
    %1103 = vector.extract_strided_slice %626 {offsets = [14, 0], sizes = [2, 128], strides = [1, 1]} : vector<16x128xf32> to vector<2x128xf32>
    %1104 = vector.extract_strided_slice %1102 {offsets = [0, 0], sizes = [2, 1], strides = [1, 1]} : vector<2x128xf32> to vector<2x1xf32>
    %1105 = vector.extract_strided_slice %628 {offsets = [0, 0], sizes = [1, 128], strides = [1, 1]} : vector<8x128xf32> to vector<1x128xf32>
    %1106 = vector.broadcast %1104 : vector<2x1xf32> to vector<2x128xf32>
    %1107 = vector.broadcast %1105 : vector<1x128xf32> to vector<2x128xf32>
    %1108 = arith.addf %1106, %1107 : vector<2x128xf32>
    %c0_i32_282 = arith.constant 0 : i32
    %1109 = vector.broadcast %c0_i32_282 : i32 to vector<2x128xi32>
    %1110 = vector.extract_strided_slice %1102 {offsets = [0, 1], sizes = [2, 1], strides = [1, 1]} : vector<2x128xf32> to vector<2x1xf32>
    %1111 = vector.extract_strided_slice %628 {offsets = [1, 0], sizes = [1, 128], strides = [1, 1]} : vector<8x128xf32> to vector<1x128xf32>
    %1112 = vector.broadcast %1110 : vector<2x1xf32> to vector<2x128xf32>
    %1113 = vector.broadcast %1111 : vector<1x128xf32> to vector<2x128xf32>
    %1114 = arith.addf %1112, %1113 : vector<2x128xf32>
    %1115 = arith.cmpf ogt, %1114, %1108 : vector<2x128xf32>
    %1116 = arith.select %1115, %1114, %1108 : vector<2x128xi1>, vector<2x128xf32>
    %c1_i32_283 = arith.constant 1 : i32
    %1117 = vector.broadcast %c1_i32_283 : i32 to vector<2x128xi32>
    %1118 = arith.select %1115, %1117, %1109 : vector<2x128xi1>, vector<2x128xi32>
    %1119 = vector.extract_strided_slice %1102 {offsets = [0, 2], sizes = [2, 1], strides = [1, 1]} : vector<2x128xf32> to vector<2x1xf32>
    %1120 = vector.extract_strided_slice %628 {offsets = [2, 0], sizes = [1, 128], strides = [1, 1]} : vector<8x128xf32> to vector<1x128xf32>
    %1121 = vector.broadcast %1119 : vector<2x1xf32> to vector<2x128xf32>
    %1122 = vector.broadcast %1120 : vector<1x128xf32> to vector<2x128xf32>
    %1123 = arith.addf %1121, %1122 : vector<2x128xf32>
    %1124 = arith.cmpf ogt, %1123, %1116 : vector<2x128xf32>
    %1125 = arith.select %1124, %1123, %1116 : vector<2x128xi1>, vector<2x128xf32>
    %c2_i32_284 = arith.constant 2 : i32
    %1126 = vector.broadcast %c2_i32_284 : i32 to vector<2x128xi32>
    %1127 = arith.select %1124, %1126, %1118 : vector<2x128xi1>, vector<2x128xi32>
    %1128 = vector.extract_strided_slice %1102 {offsets = [0, 3], sizes = [2, 1], strides = [1, 1]} : vector<2x128xf32> to vector<2x1xf32>
    %1129 = vector.extract_strided_slice %628 {offsets = [3, 0], sizes = [1, 128], strides = [1, 1]} : vector<8x128xf32> to vector<1x128xf32>
    %1130 = vector.broadcast %1128 : vector<2x1xf32> to vector<2x128xf32>
    %1131 = vector.broadcast %1129 : vector<1x128xf32> to vector<2x128xf32>
    %1132 = arith.addf %1130, %1131 : vector<2x128xf32>
    %1133 = arith.cmpf ogt, %1132, %1125 : vector<2x128xf32>
    %1134 = arith.select %1133, %1132, %1125 : vector<2x128xi1>, vector<2x128xf32>
    %c3_i32_285 = arith.constant 3 : i32
    %1135 = vector.broadcast %c3_i32_285 : i32 to vector<2x128xi32>
    %1136 = arith.select %1133, %1135, %1127 : vector<2x128xi1>, vector<2x128xi32>
    %1137 = vector.extract_strided_slice %1102 {offsets = [0, 4], sizes = [2, 1], strides = [1, 1]} : vector<2x128xf32> to vector<2x1xf32>
    %1138 = vector.extract_strided_slice %628 {offsets = [4, 0], sizes = [1, 128], strides = [1, 1]} : vector<8x128xf32> to vector<1x128xf32>
    %1139 = vector.broadcast %1137 : vector<2x1xf32> to vector<2x128xf32>
    %1140 = vector.broadcast %1138 : vector<1x128xf32> to vector<2x128xf32>
    %1141 = arith.addf %1139, %1140 : vector<2x128xf32>
    %1142 = arith.cmpf ogt, %1141, %1134 : vector<2x128xf32>
    %1143 = arith.select %1142, %1141, %1134 : vector<2x128xi1>, vector<2x128xf32>
    %c4_i32_286 = arith.constant 4 : i32
    %1144 = vector.broadcast %c4_i32_286 : i32 to vector<2x128xi32>
    %1145 = arith.select %1142, %1144, %1136 : vector<2x128xi1>, vector<2x128xi32>
    %1146 = vector.extract_strided_slice %1102 {offsets = [0, 5], sizes = [2, 1], strides = [1, 1]} : vector<2x128xf32> to vector<2x1xf32>
    %1147 = vector.extract_strided_slice %628 {offsets = [5, 0], sizes = [1, 128], strides = [1, 1]} : vector<8x128xf32> to vector<1x128xf32>
    %1148 = vector.broadcast %1146 : vector<2x1xf32> to vector<2x128xf32>
    %1149 = vector.broadcast %1147 : vector<1x128xf32> to vector<2x128xf32>
    %1150 = arith.addf %1148, %1149 : vector<2x128xf32>
    %1151 = arith.cmpf ogt, %1150, %1143 : vector<2x128xf32>
    %1152 = arith.select %1151, %1150, %1143 : vector<2x128xi1>, vector<2x128xf32>
    %c5_i32_287 = arith.constant 5 : i32
    %1153 = vector.broadcast %c5_i32_287 : i32 to vector<2x128xi32>
    %1154 = arith.select %1151, %1153, %1145 : vector<2x128xi1>, vector<2x128xi32>
    %1155 = vector.extract_strided_slice %1102 {offsets = [0, 6], sizes = [2, 1], strides = [1, 1]} : vector<2x128xf32> to vector<2x1xf32>
    %1156 = vector.extract_strided_slice %628 {offsets = [6, 0], sizes = [1, 128], strides = [1, 1]} : vector<8x128xf32> to vector<1x128xf32>
    %1157 = vector.broadcast %1155 : vector<2x1xf32> to vector<2x128xf32>
    %1158 = vector.broadcast %1156 : vector<1x128xf32> to vector<2x128xf32>
    %1159 = arith.addf %1157, %1158 : vector<2x128xf32>
    %1160 = arith.cmpf ogt, %1159, %1152 : vector<2x128xf32>
    %1161 = arith.select %1160, %1159, %1152 : vector<2x128xi1>, vector<2x128xf32>
    %c6_i32_288 = arith.constant 6 : i32
    %1162 = vector.broadcast %c6_i32_288 : i32 to vector<2x128xi32>
    %1163 = arith.select %1160, %1162, %1154 : vector<2x128xi1>, vector<2x128xi32>
    %1164 = vector.extract_strided_slice %1102 {offsets = [0, 7], sizes = [2, 1], strides = [1, 1]} : vector<2x128xf32> to vector<2x1xf32>
    %1165 = vector.extract_strided_slice %628 {offsets = [7, 0], sizes = [1, 128], strides = [1, 1]} : vector<8x128xf32> to vector<1x128xf32>
    %1166 = vector.broadcast %1164 : vector<2x1xf32> to vector<2x128xf32>
    %1167 = vector.broadcast %1165 : vector<1x128xf32> to vector<2x128xf32>
    %1168 = arith.addf %1166, %1167 : vector<2x128xf32>
    %1169 = arith.cmpf ogt, %1168, %1161 : vector<2x128xf32>
    %1170 = arith.select %1169, %1168, %1161 : vector<2x128xi1>, vector<2x128xf32>
    %c7_i32_289 = arith.constant 7 : i32
    %1171 = vector.broadcast %c7_i32_289 : i32 to vector<2x128xi32>
    %1172 = arith.select %1169, %1171, %1163 : vector<2x128xi1>, vector<2x128xi32>
    %c14_290 = arith.constant 14 : index
    %c0_291 = arith.constant 0 : index
    %1173 = vector.load %arg15[%c14_290, %c0_291] : memref<16x128xi32, #tpu.memory_space<vmem>>, vector<2x128xi32>
    tpu.vector_store %arg15[%c14_290, %c0_291], %1172 {strides = array<i32>} : memref<16x128xi32, #tpu.memory_space<vmem>>, vector<2x128xi32>,
    %c14_292 = arith.constant 14 : index
    %c0_293 = arith.constant 0 : index
    %1174 = vector.load %arg12[%c14_292, %c0_293] : memref<16x1xf32, #tpu.memory_space<vmem>>, vector<2x1xf32>
    %cst_294 = arith.constant 0.000000e+00 : f32
    %1175 = vector.broadcast %cst_294 : f32 to vector<2x1xf32>
    %1176 = arith.cmpf ogt, %1174, %1175 : vector<2x1xf32>
    %1177 = arith.addf %1170, %1103 : vector<2x128xf32>
    %1178 = vector.shape_cast %1176 : vector<2x1xi1> to vector<2x1xi1>
    %1179 = vector.broadcast %1178 : vector<2x1xi1> to vector<2x128xi1>
    %1180 = arith.select %1179, %1177, %1102 : vector<2x128xi1>, vector<2x128xf32>
    %c0_295 = arith.constant 0 : index
    %c0_296 = arith.constant 0 : index
    %1181 = vector.load %arg10[%c0_295, %c0_296] : memref<1x128xf32, #tpu.memory_space<vmem>>, vector<1x128xf32>
    %1182 = vector.broadcast %1181 : vector<1x128xf32> to vector<2x128xf32>
    %1183 = arith.addf %1180, %1182 : vector<2x128xf32>
    %c0_297 = arith.constant 0 : index
    %c0_298 = arith.constant 0 : index
    %1184 = vector.load %arg14[%c0_297, %c0_298] : memref<2x128xf32, #tpu.memory_space<vmem>>, vector<2x128xf32>
    tpu.vector_store %arg14[%c0_297, %c0_298], %1183 {strides = array<i32>} : memref<2x128xf32, #tpu.memory_space<vmem>>, vector<2x128xf32>,
    return
  }
  func.func @transform_0(%arg0: i32) -> (i32, i32) {
    %c0_i32 = arith.constant 0 : i32
    %c0_i32_0 = arith.constant 0 : i32
    %c0_i32_1 = arith.constant 0 : i32
    return %c0_i32, %c0_i32_0 : i32, i32
  }
  func.func @transform_1(%arg0: i32) -> (i32, i32) {
    %c0_i32 = arith.constant 0 : i32
    %c0_i32_0 = arith.constant 0 : i32
    %c0_i32_1 = arith.constant 0 : i32
    return %c0_i32, %c0_i32_0 : i32, i32
  }
  func.func @transform_2(%arg0: i32) -> (i32, i32) {
    %c0_i32 = arith.constant 0 : i32
    %c0_i32_0 = arith.constant 0 : i32
    %c0_i32_1 = arith.constant 0 : i32
    return %c0_i32, %c0_i32_0 : i32, i32
  }
  func.func @transform_3(%arg0: i32) -> (i32, i32) {
    %c0_i32 = arith.constant 0 : i32
    %c0_i32_0 = arith.constant 0 : i32
    %c0_i32_1 = arith.constant 0 : i32
    return %c0_i32, %c0_i32_0 : i32, i32
  }
  func.func @transform_4(%arg0: i32) -> (i32, i32) {
    %c0_i32 = arith.constant 0 : i32
    %c0_i32_0 = arith.constant 0 : i32
    %c0_i32_1 = arith.constant 0 : i32
    return %c0_i32, %c0_i32_0 : i32, i32
  }
  func.func @transform_5(%arg0: i32) -> (i32, i32) {
    %c0_i32 = arith.constant 0 : i32
    %c0_i32_0 = arith.constant 0 : i32
    %c0_i32_1 = arith.constant 0 : i32
    return %c0_i32, %c0_i32_0 : i32, i32
  }
  func.func @transform_6(%arg0: i32) -> (i32, i32) {
    %c0_i32 = arith.constant 0 : i32
    %c0_i32_0 = arith.constant 0 : i32
    %c0_i32_1 = arith.constant 0 : i32
    return %c0_i32, %c0_i32_0 : i32, i32
  }
  func.func @transform_7(%arg0: i32) -> (i32, i32) {
    %c0_i32 = arith.constant 0 : i32
    %c0_i32_0 = arith.constant 0 : i32
    %c0_i32_1 = arith.constant 0 : i32
    return %c0_i32, %c0_i32_0 : i32, i32
  }
  func.func @transform_8(%arg0: i32) -> (i32, i32) {
    %c0_i32 = arith.constant 0 : i32
    %c0_i32_0 = arith.constant 0 : i32
    %c0_i32_1 = arith.constant 0 : i32
    return %c0_i32, %c0_i32_0 : i32, i32
  }
  func.func @transform_9(%arg0: i32) -> (i32, i32) {
    %c0_i32 = arith.constant 0 : i32
    %c0_i32_0 = arith.constant 0 : i32
    %c0_i32_1 = arith.constant 0 : i32
    return %c0_i32, %c0_i32_0 : i32, i32
  }
  func.func @transform_10(%arg0: i32) -> (i32, i32) {
    %c0_i32 = arith.constant 0 : i32
    %c0_i32_0 = arith.constant 0 : i32
    %c0_i32_1 = arith.constant 0 : i32
    return %c0_i32, %c0_i32_0 : i32, i32
  }
  func.func @transform_11(%arg0: i32) -> (i32, i32) {
    %c0_i32 = arith.constant 0 : i32
    %c0_i32_0 = arith.constant 0 : i32
    %c0_i32_1 = arith.constant 0 : i32
    return %c0_i32, %c0_i32_0 : i32, i32
  }
  func.func @transform_12(%arg0: i32) -> (i32, i32) {
    %c0_i32 = arith.constant 0 : i32
    %c0_i32_0 = arith.constant 0 : i32
    %c0_i32_1 = arith.constant 0 : i32
    return %c0_i32, %c0_i32_0 : i32, i32
  }
  func.func @transform_13(%arg0: i32) -> (i32, i32) {
    %c0_i32 = arith.constant 0 : i32
    %c0_i32_0 = arith.constant 0 : i32
    %c0_i32_1 = arith.constant 0 : i32
    return %c0_i32, %c0_i32_0 : i32, i32
  }
  func.func @transform_14(%arg0: i32) -> (i32, i32) {
    %c0_i32 = arith.constant 0 : i32
    %c0_i32_0 = arith.constant 0 : i32
    %c0_i32_1 = arith.constant 0 : i32
    return %c0_i32, %c0_i32_0 : i32, i32
  }
}

</mosaic_0001>

<llo_original>
// kernel: tpu_custom_call.1
$region0: #{tpu_custom_call.1}
  #allocation0 [shape = 'u32[]', space=smem, size = 0x4, offset = 0x4, fixed_abs, tag = 'smem constant byte address 0x4 - core index']
  #allocation1 [shape = 'u32[144,128]{1,0:T(1,128)}', space=vmem, size = 0x12000, scoped, tag = 'internal scratch']
  #allocation2 [shape = 'f32[16,128]{1,0:T(8,128)}', space=vmem, size = 0x2000, scoped, tag = 'scratch operand']
  %s0 = inlined_call_operand.vmem [shape: f32[16,128], index: 0, kind: input, shape index: {}]
  %s1 = inlined_call_operand.hbm [shape: f32[1,128], index: 1, kind: input, shape index: {}]
  %s2 = inlined_call_operand.hbm [shape: f32[1,128], index: 2, kind: input, shape index: {}]
  %s3 = inlined_call_operand.hbm [shape: bf16[128,512], index: 3, kind: input, shape index: {}]
  %s4 = inlined_call_operand.hbm [shape: bf16[128,512], index: 4, kind: input, shape index: {}]
  %s5 = inlined_call_operand.vmem [shape: f32[1,512], index: 5, kind: input, shape index: {}]
  %s6 = inlined_call_operand.hbm [shape: bf16[128,128], index: 6, kind: input, shape index: {}]
  %s7 = inlined_call_operand.vmem [shape: f32[1,128], index: 7, kind: input, shape index: {}]
  %s8 = inlined_call_operand.vmem [shape: f32[1,128], index: 8, kind: input, shape index: {}]
  %s9 = inlined_call_operand.vmem [shape: f32[1,128], index: 9, kind: input, shape index: {}]
  %s10 = inlined_call_operand.vmem [shape: f32[8,128], index: 10, kind: input, shape index: {}]
  %s11 = inlined_call_operand.vmem [shape: f32[16,1], index: 11, kind: input, shape index: {}]
  %s12 = inlined_call_operand.hbm [shape: f32[16,128], index: 12, kind: output, shape index: {0}]
  %s13 = inlined_call_operand.hbm [shape: f32[2,128], index: 13, kind: output, shape index: {1}]
  %s14 = inlined_call_operand.hbm [shape: s32[16,128], index: 14, kind: output, shape index: {2}]
  %15 = xla_tuple %s12, %s13, %s14
  %s16 = sld [smem:[#allocation0]]
  $region94: #{tpu_custom_call.1} parent=0
    _
  %s18 = ssub.s32 1, %s16
  %s19 = scalar_select 0, %s18, %s16
  $region1: #{tpu_custom_call.1} parent=0
    #allocation3 [shape = 'u8[512]{0}', space=vmem, size = 0x400, scoped, tag = 'input window, operand 1, single buffered']
    #allocation4 [shape = 's32[1]{0}', space=sflag, size = 0x4, scoped, tag = 'scoped memory for tpu_custom_call.1']
    #allocation5 [shape = 's32[1]{0}', space=sflag, size = 0x4, scoped, tag = 'scoped memory for tpu_custom_call.1']
    #allocation6 [shape = 'u8[512]{0}', space=vmem, size = 0x400, scoped, tag = 'input window, operand 2, single buffered']
    #allocation7 [shape = 's32[1]{0}', space=sflag, size = 0x4, scoped, tag = 'scoped memory for tpu_custom_call.1']
    #allocation8 [shape = 'u8[131072]{0}', space=vmem, size = 0x20000, scoped, tag = 'input window, operand 3, single buffered']
    #allocation9 [shape = 'u8[131072]{0}', space=vmem, size = 0x20000, scoped, tag = 'input window, operand 4, single buffered']
    #allocation10 [shape = 's32[1]{0}', space=sflag, size = 0x4, scoped, tag = 'scoped memory for tpu_custom_call.1']
    #allocation11 [shape = 'u8[32768]{0}', space=vmem, size = 0x8000, scoped, tag = 'input window, operand 6, single buffered']
    #allocation12 [shape = 'u8[8192]{0}', space=vmem, size = 0x2000, scoped, tag = 'output window, operand 0, single buffered']
    #allocation13 [shape = 'u8[1024]{0}', space=vmem, size = 0x400, scoped, tag = 'output window, operand 1, single buffered']
    #allocation14 [shape = 's32[1]{0}', space=sflag, size = 0x4, scoped, tag = 'scoped memory for tpu_custom_call.1']
    #allocation15 [shape = 'u8[8192]{0}', space=vmem, size = 0x2000, scoped, tag = 'output window, operand 2, single buffered']
    %20 = vsyncpa [#allocation4], 0
    %21 = vsyncpa [#allocation7], 0
    %22 = vsyncpa [#allocation10], 0
    %23 = vsyncpa [#allocation5], 0
    %24 = vsyncpa [#allocation14], 0
    // Predicated region
    $region2: #{tpu_custom_call.1} parent=1 // pred_check
      _
    $region3: #{tpu_custom_call.1} parent=1 // pred_check_branch
      %26 = sbr.rel (0) target = $region5
    $region4: #{tpu_custom_call.1} parent=1 // pred_region
      _
    $region5: #{tpu_custom_call.1} parent=1 // pred_fallthru
      _
    // Predicated region
    $region6: #{tpu_custom_call.1} parent=1 // pred_check
      _
    $region7: #{tpu_custom_call.1} parent=1 // pred_check_branch
      %28 = sbr.rel (0) target = $region9
    $region8: #{tpu_custom_call.1} parent=1 // pred_region
      %s30 = ssub.s32 16, 16
      %31 = vsyncadd [#allocation4], %s30
      %s33 = sshll.u32 [#allocation3], 4
      %s34 = int_to_ptr.vmem [resolvable:$true] %s33
      %36 = dma.hbm_to_vmem [thread:$0]  %s1, 16, %s34, [#allocation4]
    $region9: #{tpu_custom_call.1} parent=1 // pred_fallthru
      _
    // Predicated region
    $region10: #{tpu_custom_call.1} parent=1 // pred_check
      _
    $region11: #{tpu_custom_call.1} parent=1 // pred_check_branch
      %38 = sbr.rel (0) target = $region13
    $region12: #{tpu_custom_call.1} parent=1 // pred_region
      %s40 = ssub.s32 16, 16
      %41 = vsyncadd [#allocation7], %s40
      %s43 = sshll.u32 [#allocation6], 4
      %s44 = int_to_ptr.vmem [resolvable:$true] %s43
      %46 = dma.hbm_to_vmem [thread:$0]  %s2, 16, %s44, [#allocation7]
    $region13: #{tpu_custom_call.1} parent=1 // pred_fallthru
      _
    // Predicated region
    $region14: #{tpu_custom_call.1} parent=1 // pred_check
      _
    $region15: #{tpu_custom_call.1} parent=1 // pred_check_branch
      %48 = sbr.rel (0) target = $region17
    $region16: #{tpu_custom_call.1} parent=1 // pred_region
      %s50 = ssub.s32 4096, 4096
      %51 = vsyncadd [#allocation7], %s50
      %s52 = sshll.u32 [#allocation8], 4
      %s53 = int_to_ptr.vmem [resolvable:$true] %s52
      %58 = dma.hbm_to_vmem [thread:$0]  %s3, 4096, %s53, [#allocation7], 256, 256, 16
    $region17: #{tpu_custom_call.1} parent=1 // pred_fallthru
      _
    // Predicated region
    $region18: #{tpu_custom_call.1} parent=1 // pred_check
      _
    $region19: #{tpu_custom_call.1} parent=1 // pred_check_branch
      %60 = sbr.rel (0) target = $region21
    $region20: #{tpu_custom_call.1} parent=1 // pred_region
      %s62 = ssub.s32 4096, 4096
      %63 = vsyncadd [#allocation10], %s62
      %s64 = sshll.u32 [#allocation9], 4
      %s65 = int_to_ptr.vmem [resolvable:$true] %s64
      %70 = dma.hbm_to_vmem [thread:$0]  %s4, 4096, %s65, [#allocation10], 256, 256, 16
    $region21: #{tpu_custom_call.1} parent=1 // pred_fallthru
      _
    // Predicated region
    $region22: #{tpu_custom_call.1} parent=1 // pred_check
      _
    $region23: #{tpu_custom_call.1} parent=1 // pred_check_branch
      %72 = sbr.rel (0) target = $region25
    $region24: #{tpu_custom_call.1} parent=1 // pred_region
      _
    $region25: #{tpu_custom_call.1} parent=1 // pred_fallthru
      _
    // Predicated region
    $region26: #{tpu_custom_call.1} parent=1 // pred_check
      _
    $region27: #{tpu_custom_call.1} parent=1 // pred_check_branch
      %74 = sbr.rel (0) target = $region29
    $region28: #{tpu_custom_call.1} parent=1 // pred_region
      %s76 = ssub.s32 1024, 1024
      %77 = vsyncadd [#allocation10], %s76
      %s78 = sshll.u32 [#allocation11], 4
      %s79 = int_to_ptr.vmem [resolvable:$true] %s78
      %84 = dma.hbm_to_vmem [thread:$0]  %s6, 1024, %s79, [#allocation10], 64, 64, 4
    $region29: #{tpu_custom_call.1} parent=1 // pred_fallthru
      _
    // Predicated region
    $region30: #{tpu_custom_call.1} parent=1 // pred_check
      _
    $region31: #{tpu_custom_call.1} parent=1 // pred_check_branch
      %86 = sbr.rel (0) target = $region33
    $region32: #{tpu_custom_call.1} parent=1 // pred_region
      _
    $region33: #{tpu_custom_call.1} parent=1 // pred_fallthru
      _
    // Predicated region
    $region34: #{tpu_custom_call.1} parent=1 // pred_check
      _
    $region35: #{tpu_custom_call.1} parent=1 // pred_check_branch
      %88 = sbr.rel (0) target = $region37
    $region36: #{tpu_custom_call.1} parent=1 // pred_region
      _
    $region37: #{tpu_custom_call.1} parent=1 // pred_fallthru
      _
    // Predicated region
    $region38: #{tpu_custom_call.1} parent=1 // pred_check
      _
    $region39: #{tpu_custom_call.1} parent=1 // pred_check_branch
      %90 = sbr.rel (0) target = $region41
    $region40: #{tpu_custom_call.1} parent=1 // pred_region
      _
    $region41: #{tpu_custom_call.1} parent=1 // pred_fallthru
      _
    // Predicated region
    $region42: #{tpu_custom_call.1} parent=1 // pred_check
      _
    $region43: #{tpu_custom_call.1} parent=1 // pred_check_branch
      %92 = sbr.rel (0) target = $region45
    $region44: #{tpu_custom_call.1} parent=1 // pred_region
      _
    $region45: #{tpu_custom_call.1} parent=1 // pred_fallthru
      _
    // Predicated region
    $region46: #{tpu_custom_call.1} parent=1 // pred_check
      _
    $region47: #{tpu_custom_call.1} parent=1 // pred_check_branch
      %94 = sbr.rel (0) target = $region49
    $region48: #{tpu_custom_call.1} parent=1 // pred_region
      _
    $region49: #{tpu_custom_call.1} parent=1 // pred_fallthru
      _
    // Predicated region
    $region50: #{tpu_custom_call.1} parent=1 // pred_check
      _
    $region51: #{tpu_custom_call.1} parent=1 // pred_check_branch
      %96 = sbr.rel (0) target = $region53
    $region52: #{tpu_custom_call.1} parent=1 // pred_region
      %97 = dma.done [#allocation4], 16
    $region53: #{tpu_custom_call.1} parent=1 // pred_fallthru
      _
    // Predicated region
    $region54: #{tpu_custom_call.1} parent=1 // pred_check
      _
    $region55: #{tpu_custom_call.1} parent=1 // pred_check_branch
      %99 = sbr.rel (0) target = $region57
    $region56: #{tpu_custom_call.1} parent=1 // pred_region
      %100 = dma.done [#allocation7], 16
    $region57: #{tpu_custom_call.1} parent=1 // pred_fallthru
      _
    // Predicated region
    $region58: #{tpu_custom_call.1} parent=1 // pred_check
      _
    $region59: #{tpu_custom_call.1} parent=1 // pred_check_branch
      %102 = sbr.rel (0) target = $region61
    $region60: #{tpu_custom_call.1} parent=1 // pred_region
      %103 = dma.done [#allocation7], 4096
    $region61: #{tpu_custom_call.1} parent=1 // pred_fallthru
      _
    // Predicated region
    $region62: #{tpu_custom_call.1} parent=1 // pred_check
      _
    $region63: #{tpu_custom_call.1} parent=1 // pred_check_branch
      %105 = sbr.rel (0) target = $region65
    $region64: #{tpu_custom_call.1} parent=1 // pred_region
      %106 = dma.done [#allocation10], 4096
    $region65: #{tpu_custom_call.1} parent=1 // pred_fallthru
      _
    // Predicated region
    $region66: #{tpu_custom_call.1} parent=1 // pred_check
      _
    $region67: #{tpu_custom_call.1} parent=1 // pred_check_branch
      %108 = sbr.rel (0) target = $region69
    $region68: #{tpu_custom_call.1} parent=1 // pred_region
      %109 = dma.done [#allocation10], 1024
    $region69: #{tpu_custom_call.1} parent=1 // pred_fallthru
      _
    %v111 = vld [vmem:[%s0] sm:$0xff]
    %v112 = vld [vmem:[%s0 + $0x8] sm:$0xff]
    %113 = vadd.xlane.f32.xlu0 %v111
    %v114 = vpop.xlane.xlu0 %113
    %115 = vadd.xlane.f32.xlu0 %v112
    %v116 = vpop.xlane.xlu0 %115
    %v117 = vrcp.pop 128.0
    %v118 = vmul.f32 %v114, %v117
    %v119 = vmul.f32 %v116, %v117
    %v120 = vsub.f32 %v111, %v118
    %v121 = vsub.f32 %v112, %v119
    %v122 = vmul.f32 %v120, %v120
    %v123 = vmul.f32 %v121, %v121
    %124 = vadd.xlane.f32.xlu0 %v122
    %v125 = vpop.xlane.xlu0 %124
    %126 = vadd.xlane.f32.xlu0 %v123
    %v127 = vpop.xlane.xlu0 %126
    %v128 = vmul.f32 %v125, %v117
    %v129 = vmul.f32 %v127, %v117
    %v130 = vadd.f32 %v128, 1e-05
    %v131 = vadd.f32 %v129, 1e-05
    %v132 = vrsqrt.pop %v130
    %v133 = vrsqrt.pop %v131
    %v134 = vmul.f32 %v120, %v132
    %v135 = vmul.f32 %v121, %v133
    %v136 = vld [vmem:[#allocation3] sm:$0x1]
    %v138 = vlaneseq
    %v139 = vshrl.u32 %v138, 7
    %v140 = vsub.s32 0, %v139
    %v141 = vrot.slane %v136, %v140
    %v143 = vmul.f32 %v134, %v141
    %v144 = vmul.f32 %v135, %v141
    %v145 = vld [vmem:[#allocation6] sm:$0x1]
    %v147 = vlaneseq
    %v148 = vshrl.u32 %v147, 7
    %v149 = vsub.s32 0, %v148
    %v150 = vrot.slane %v145, %v149
    %v152 = vadd.f32 %v143, %v150
    %v153 = vadd.f32 %v144, %v150
    %v154 = vpack.c.bf16 %v153, %v152
    %v155 = vld [vmem:[#allocation8] sm:$0xff]
    %v156 = vld [vmem:[#allocation8 + $0x8] sm:$0xff]
    %v157 = vld [vmem:[#allocation8 + $0x10] sm:$0xff]
    %v158 = vld [vmem:[#allocation8 + $0x18] sm:$0xff]
    %v159 = vld [vmem:[#allocation8 + $0x20] sm:$0xff]
    %v160 = vld [vmem:[#allocation8 + $0x28] sm:$0xff]
    %v161 = vld [vmem:[#allocation8 + $0x30] sm:$0xff]
    %v162 = vld [vmem:[#allocation8 + $0x38] sm:$0xff]
    %v163 = vld [vmem:[#allocation8 + $0x40] sm:$0xff]
    %v164 = vld [vmem:[#allocation8 + $0x48] sm:$0xff]
    %v165 = vld [vmem:[#allocation8 + $0x50] sm:$0xff]
    %v166 = vld [vmem:[#allocation8 + $0x58] sm:$0xff]
    %v167 = vld [vmem:[#allocation8 + $0x60] sm:$0xff]
    %v168 = vld [vmem:[#allocation8 + $0x68] sm:$0xff]
    %v169 = vld [vmem:[#allocation8 + $0x70] sm:$0xff]
    %v170 = vld [vmem:[#allocation8 + $0x78] sm:$0xff]
    %v171 = vld [vmem:[#allocation8 + $0x80] sm:$0xff]
    %v172 = vld [vmem:[#allocation8 + $0x88] sm:$0xff]
    %v173 = vld [vmem:[#allocation8 + $0x90] sm:$0xff]
    %v174 = vld [vmem:[#allocation8 + $0x98] sm:$0xff]
    %v175 = vld [vmem:[#allocation8 + $0xa0] sm:$0xff]
    %v176 = vld [vmem:[#allocation8 + $0xa8] sm:$0xff]
    %v177 = vld [vmem:[#allocation8 + $0xb0] sm:$0xff]
    %v178 = vld [vmem:[#allocation8 + $0xb8] sm:$0xff]
    %v179 = vld [vmem:[#allocation8 + $0xc0] sm:$0xff]
    %v180 = vld [vmem:[#allocation8 + $0xc8] sm:$0xff]
    %v181 = vld [vmem:[#allocation8 + $0xd0] sm:$0xff]
    %v182 = vld [vmem:[#allocation8 + $0xd8] sm:$0xff]
    %v183 = vld [vmem:[#allocation8 + $0xe0] sm:$0xff]
    %v184 = vld [vmem:[#allocation8 + $0xe8] sm:$0xff]
    %v185 = vld [vmem:[#allocation8 + $0xf0] sm:$0xff]
    %v186 = vld [vmem:[#allocation8 + $0xf8] sm:$0xff]
    %v187 = vld [vmem:[%s5] sm:$0xf]
    %v189 = vlaneseq
    %v190 = vshrl.u32 %v189, 7
    %v191 = vsub.s32 0, %v190
    %v192 = vrot.slane %v187, %v191
    %v193 = vlaneseq
    %v194 = vshrl.u32 %v193, 7
    %v195 = vsub.s32 1, %v194
    %v196 = vrot.slane %v187, %v195
    %v197 = vlaneseq
    %v198 = vshrl.u32 %v197, 7
    %v199 = vsub.s32 2, %v198
    %v200 = vrot.slane %v187, %v199
    %v201 = vlaneseq
    %v202 = vshrl.u32 %v201, 7
    %v203 = vsub.s32 3, %v202
    %v204 = vrot.slane %v187, %v203
    %v241 = vunpack.c.l.b16 %v155
    %v242 = vunpack.c.h.b16 %v155
    %v243 = vunpack.c.l.b16 %v156
    %v244 = vunpack.c.h.b16 %v156
    %v245 = vunpack.c.l.b16 %v157
    %v246 = vunpack.c.h.b16 %v157
    %v247 = vunpack.c.l.b16 %v158
    %v248 = vunpack.c.h.b16 %v158
    %v249 = vunpack.c.l.b16 %v159
    %v250 = vunpack.c.h.b16 %v159
    %v251 = vunpack.c.l.b16 %v160
    %v252 = vunpack.c.h.b16 %v160
    %v253 = vunpack.c.l.b16 %v161
    %v254 = vunpack.c.h.b16 %v161
    %v255 = vunpack.c.l.b16 %v162
    %v256 = vunpack.c.h.b16 %v162
    %v257 = vunpack.c.l.b16 %v163
    %v258 = vunpack.c.h.b16 %v163
    %v259 = vunpack.c.l.b16 %v164
    %v260 = vunpack.c.h.b16 %v164
    %v261 = vunpack.c.l.b16 %v165
    %v262 = vunpack.c.h.b16 %v165
    %v263 = vunpack.c.l.b16 %v166
    %v264 = vunpack.c.h.b16 %v166
    %v265 = vunpack.c.l.b16 %v167
    %v266 = vunpack.c.h.b16 %v167
    %v267 = vunpack.c.l.b16 %v168
    %v268 = vunpack.c.h.b16 %v168
    %v269 = vunpack.c.l.b16 %v169
    %v270 = vunpack.c.h.b16 %v169
    %v271 = vunpack.c.l.b16 %v170
    %v272 = vunpack.c.h.b16 %v170
    %v273 = vunpack.c.l.b16 %v171
    %v274 = vunpack.c.h.b16 %v171
    %v275 = vunpack.c.l.b16 %v172
    %v276 = vunpack.c.h.b16 %v172
    %v277 = vunpack.c.l.b16 %v173
    %v278 = vunpack.c.h.b16 %v173
    %v279 = vunpack.c.l.b16 %v174
    %v280 = vunpack.c.h.b16 %v174
    %v281 = vunpack.c.l.b16 %v175
    %v282 = vunpack.c.h.b16 %v175
    %v283 = vunpack.c.l.b16 %v176
    %v284 = vunpack.c.h.b16 %v176
    %v285 = vunpack.c.l.b16 %v177
    %v286 = vunpack.c.h.b16 %v177
    %v287 = vunpack.c.l.b16 %v178
    %v288 = vunpack.c.h.b16 %v178
    %v289 = vunpack.c.l.b16 %v179
    %v290 = vunpack.c.h.b16 %v179
    %v291 = vunpack.c.l.b16 %v180
    %v292 = vunpack.c.h.b16 %v180
    %v293 = vunpack.c.l.b16 %v181
    %v294 = vunpack.c.h.b16 %v181
    %v295 = vunpack.c.l.b16 %v182
    %v296 = vunpack.c.h.b16 %v182
    %v297 = vunpack.c.l.b16 %v183
    %v298 = vunpack.c.h.b16 %v183
    %v299 = vunpack.c.l.b16 %v184
    %v300 = vunpack.c.h.b16 %v184
    %v301 = vunpack.c.l.b16 %v185
    %v302 = vunpack.c.h.b16 %v185
    %v303 = vunpack.c.l.b16 %v186
    %v304 = vunpack.c.h.b16 %v186
    %v305 = vpack.c.b16 %v245, %v241
    %v306 = vpack.c.b16 %v246, %v242
    %v307 = vpack.c.b16 %v247, %v243
    %v308 = vpack.c.b16 %v248, %v244
    %v309 = vpack.c.b16 %v253, %v249
    %v310 = vpack.c.b16 %v254, %v250
    %v311 = vpack.c.b16 %v255, %v251
    %v312 = vpack.c.b16 %v256, %v252
    %v313 = vpack.c.b16 %v261, %v257
    %v314 = vpack.c.b16 %v262, %v258
    %v315 = vpack.c.b16 %v263, %v259
    %v316 = vpack.c.b16 %v264, %v260
    %v317 = vpack.c.b16 %v269, %v265
    %v318 = vpack.c.b16 %v270, %v266
    %v319 = vpack.c.b16 %v271, %v267
    %v320 = vpack.c.b16 %v272, %v268
    %v321 = vpack.c.b16 %v277, %v273
    %v322 = vpack.c.b16 %v278, %v274
    %v323 = vpack.c.b16 %v279, %v275
    %v324 = vpack.c.b16 %v280, %v276
    %v325 = vpack.c.b16 %v285, %v281
    %v326 = vpack.c.b16 %v286, %v282
    %v327 = vpack.c.b16 %v287, %v283
    %v328 = vpack.c.b16 %v288, %v284
    %v329 = vpack.c.b16 %v293, %v289
    %v330 = vpack.c.b16 %v294, %v290
    %v331 = vpack.c.b16 %v295, %v291
    %v332 = vpack.c.b16 %v296, %v292
    %v333 = vpack.c.b16 %v301, %v297
    %v334 = vpack.c.b16 %v302, %v298
    %v335 = vpack.c.b16 %v303, %v299
    %v336 = vpack.c.b16 %v304, %v300
    %369 = vmatprep.subr.bf16.mxu0 %v306
    %370 = vmatpush1.bf16.msra.mxu0 %v305
    %371 = vmatprep.subr.bf16.mxu0 %v310
    %372 = vmatpush1.bf16.msra.mxu0 %v309
    %373 = vmatprep.subr.bf16.mxu0 %v314
    %374 = vmatpush1.bf16.msra.mxu0 %v313
    %375 = vmatprep.subr.bf16.mxu0 %v318
    %376 = vmatpush1.bf16.msra.mxu0 %v317
    %377 = vmatprep.subr.bf16.mxu0 %v322
    %378 = vmatpush1.bf16.msra.mxu0 %v321
    %379 = vmatprep.subr.bf16.mxu0 %v326
    %380 = vmatpush1.bf16.msra.mxu0 %v325
    %381 = vmatprep.subr.bf16.mxu0 %v330
    %382 = vmatpush1.bf16.msra.mxu0 %v329
    %383 = vmatprep.subr.bf16.mxu0 %v334
    %384 = vmatpush1.bf16.msra.mxu0 %v333
    %385 = vmatprep.subr.bf16.mxu0 0
    %386 = vmatpush1.bf16.msra.mxu0 0
    %387 = vmatprep.subr.bf16.mxu0 0
    %388 = vmatpush1.bf16.msra.mxu0 0
    %389 = vmatprep.subr.bf16.mxu0 0
    %390 = vmatpush1.bf16.msra.mxu0 0
    %391 = vmatprep.subr.bf16.mxu0 0
    %392 = vmatpush1.bf16.msra.mxu0 0
    %393 = vmatprep.subr.bf16.mxu0 0
    %394 = vmatpush1.bf16.msra.mxu0 0
    %395 = vmatprep.subr.bf16.mxu0 0
    %396 = vmatpush1.bf16.msra.mxu0 0
    %397 = vmatprep.subr.bf16.mxu0 0
    %398 = vmatpush1.bf16.msra.mxu0 0
    %399 = vmatprep.subr.bf16.mxu0 0
    %400 = vmatpush1.bf16.msra.mxu0 0
    %401 = vmatprep.mubr.bf16.mxu0 0
    %402 = vmatmul.mubr.bf16.gmra.mrb[0].mxu0 %v154
    %v403 = vpop.f32.mrb[0].mxu0
    %v404 = vadd.f32 %v192, %v403
    %v405 = vpop.f32.mrb[0].mxu0
    %v406 = vadd.f32 %v196, %v405
    %v407 = vpop.f32.mrb[0].mxu0
    %v408 = vadd.f32 %v192, %v407
    %v409 = vpop.f32.mrb[0].mxu0
    %v410 = vadd.f32 %v196, %v409
    %411 = vdwg.mxu0
    %412 = vmatprep.subr.bf16.mxu0 %v308
    %413 = vmatpush1.bf16.msra.mxu0 %v307
    %414 = vmatprep.subr.bf16.mxu0 %v312
    %415 = vmatpush1.bf16.msra.mxu0 %v311
    %416 = vmatprep.subr.bf16.mxu0 %v316
    %417 = vmatpush1.bf16.msra.mxu0 %v315
    %418 = vmatprep.subr.bf16.mxu0 %v320
    %419 = vmatpush1.bf16.msra.mxu0 %v319
    %420 = vmatprep.subr.bf16.mxu0 %v324
    %421 = vmatpush1.bf16.msra.mxu0 %v323
    %422 = vmatprep.subr.bf16.mxu0 %v328
    %423 = vmatpush1.bf16.msra.mxu0 %v327
    %424 = vmatprep.subr.bf16.mxu0 %v332
    %425 = vmatpush1.bf16.msra.mxu0 %v331
    %426 = vmatprep.subr.bf16.mxu0 %v336
    %427 = vmatpush1.bf16.msra.mxu0 %v335
    %428 = vmatprep.subr.bf16.mxu0 0
    %429 = vmatpush1.bf16.msra.mxu0 0
    %430 = vmatprep.subr.bf16.mxu0 0
    %431 = vmatpush1.bf16.msra.mxu0 0
    %432 = vmatprep.subr.bf16.mxu0 0
    %433 = vmatpush1.bf16.msra.mxu0 0
    %434 = vmatprep.subr.bf16.mxu0 0
    %435 = vmatpush1.bf16.msra.mxu0 0
    %436 = vmatprep.subr.bf16.mxu0 0
    %437 = vmatpush1.bf16.msra.mxu0 0
    %438 = vmatprep.subr.bf16.mxu0 0
    %439 = vmatpush1.bf16.msra.mxu0 0
    %440 = vmatprep.subr.bf16.mxu0 0
    %441 = vmatpush1.bf16.msra.mxu0 0
    %442 = vmatprep.subr.bf16.mxu0 0
    %443 = vmatpush1.bf16.msra.mxu0 0
    %444 = vmatprep.mubr.bf16.mxu0 0
    %445 = vmatmul.mubr.bf16.gmra.mrb[0].mxu0 %v154
    %v446 = vpop.f32.mrb[0].mxu0
    %v447 = vadd.f32 %v200, %v446
    %v448 = vpop.f32.mrb[0].mxu0
    %v449 = vadd.f32 %v204, %v448
    %v450 = vpop.f32.mrb[0].mxu0
    %v451 = vadd.f32 %v200, %v450
    %v452 = vpop.f32.mrb[0].mxu0
    %v453 = vadd.f32 %v204, %v452
    %454 = vdwg.mxu0
    %v455 = vld [vmem:[#allocation9] sm:$0xff]
    %v456 = vld [vmem:[#allocation9 + $0x8] sm:$0xff]
    %v457 = vld [vmem:[#allocation9 + $0x10] sm:$0xff]
    %v458 = vld [vmem:[#allocation9 + $0x18] sm:$0xff]
    %v459 = vld [vmem:[#allocation9 + $0x20] sm:$0xff]
    %v460 = vld [vmem:[#allocation9 + $0x28] sm:$0xff]
    %v461 = vld [vmem:[#allocation9 + $0x30] sm:$0xff]
    %v462 = vld [vmem:[#allocation9 + $0x38] sm:$0xff]
    %v463 = vld [vmem:[#allocation9 + $0x40] sm:$0xff]
    %v464 = vld [vmem:[#allocation9 + $0x48] sm:$0xff]
    %v465 = vld [vmem:[#allocation9 + $0x50] sm:$0xff]
    %v466 = vld [vmem:[#allocation9 + $0x58] sm:$0xff]
    %v467 = vld [vmem:[#allocation9 + $0x60] sm:$0xff]
    %v468 = vld [vmem:[#allocation9 + $0x68] sm:$0xff]
    %v469 = vld [vmem:[#allocation9 + $0x70] sm:$0xff]
    %v470 = vld [vmem:[#allocation9 + $0x78] sm:$0xff]
    %v471 = vld [vmem:[#allocation9 + $0x80] sm:$0xff]
    %v472 = vld [vmem:[#allocation9 + $0x88] sm:$0xff]
    %v473 = vld [vmem:[#allocation9 + $0x90] sm:$0xff]
    %v474 = vld [vmem:[#allocation9 + $0x98] sm:$0xff]
    %v475 = vld [vmem:[#allocation9 + $0xa0] sm:$0xff]
    %v476 = vld [vmem:[#allocation9 + $0xa8] sm:$0xff]
    %v477 = vld [vmem:[#allocation9 + $0xb0] sm:$0xff]
    %v478 = vld [vmem:[#allocation9 + $0xb8] sm:$0xff]
    %v479 = vld [vmem:[#allocation9 + $0xc0] sm:$0xff]
    %v480 = vld [vmem:[#allocation9 + $0xc8] sm:$0xff]
    %v481 = vld [vmem:[#allocation9 + $0xd0] sm:$0xff]
    %v482 = vld [vmem:[#allocation9 + $0xd8] sm:$0xff]
    %v483 = vld [vmem:[#allocation9 + $0xe0] sm:$0xff]
    %v484 = vld [vmem:[#allocation9 + $0xe8] sm:$0xff]
    %v485 = vld [vmem:[#allocation9 + $0xf0] sm:$0xff]
    %v486 = vld [vmem:[#allocation9 + $0xf8] sm:$0xff]
    %v487 = vpack.c.bf16 0.0, 0.0
    %v520 = vunpack.c.l.b16 %v455
    %v521 = vunpack.c.h.b16 %v455
    %v522 = vunpack.c.l.b16 %v456
    %v523 = vunpack.c.h.b16 %v456
    %v524 = vunpack.c.l.b16 %v457
    %v525 = vunpack.c.h.b16 %v457
    %v526 = vunpack.c.l.b16 %v458
    %v527 = vunpack.c.h.b16 %v458
    %v528 = vunpack.c.l.b16 %v459
    %v529 = vunpack.c.h.b16 %v459
    %v530 = vunpack.c.l.b16 %v460
    %v531 = vunpack.c.h.b16 %v460
    %v532 = vunpack.c.l.b16 %v461
    %v533 = vunpack.c.h.b16 %v461
    %v534 = vunpack.c.l.b16 %v462
    %v535 = vunpack.c.h.b16 %v462
    %v536 = vunpack.c.l.b16 %v463
    %v537 = vunpack.c.h.b16 %v463
    %v538 = vunpack.c.l.b16 %v464
    %v539 = vunpack.c.h.b16 %v464
    %v540 = vunpack.c.l.b16 %v465
    %v541 = vunpack.c.h.b16 %v465
    %v542 = vunpack.c.l.b16 %v466
    %v543 = vunpack.c.h.b16 %v466
    %v544 = vunpack.c.l.b16 %v467
    %v545 = vunpack.c.h.b16 %v467
    %v546 = vunpack.c.l.b16 %v468
    %v547 = vunpack.c.h.b16 %v468
    %v548 = vunpack.c.l.b16 %v469
    %v549 = vunpack.c.h.b16 %v469
    %v550 = vunpack.c.l.b16 %v470
    %v551 = vunpack.c.h.b16 %v470
    %v552 = vunpack.c.l.b16 %v471
    %v553 = vunpack.c.h.b16 %v471
    %v554 = vunpack.c.l.b16 %v472
    %v555 = vunpack.c.h.b16 %v472
    %v556 = vunpack.c.l.b16 %v473
    %v557 = vunpack.c.h.b16 %v473
    %v558 = vunpack.c.l.b16 %v474
    %v559 = vunpack.c.h.b16 %v474
    %v560 = vunpack.c.l.b16 %v475
    %v561 = vunpack.c.h.b16 %v475
    %v562 = vunpack.c.l.b16 %v476
    %v563 = vunpack.c.h.b16 %v476
    %v564 = vunpack.c.l.b16 %v477
    %v565 = vunpack.c.h.b16 %v477
    %v566 = vunpack.c.l.b16 %v478
    %v567 = vunpack.c.h.b16 %v478
    %v568 = vunpack.c.l.b16 %v479
    %v569 = vunpack.c.h.b16 %v479
    %v570 = vunpack.c.l.b16 %v480
    %v571 = vunpack.c.h.b16 %v480
    %v572 = vunpack.c.l.b16 %v481
    %v573 = vunpack.c.h.b16 %v481
    %v574 = vunpack.c.l.b16 %v482
    %v575 = vunpack.c.h.b16 %v482
    %v576 = vunpack.c.l.b16 %v483
    %v577 = vunpack.c.h.b16 %v483
    %v578 = vunpack.c.l.b16 %v484
    %v579 = vunpack.c.h.b16 %v484
    %v580 = vunpack.c.l.b16 %v485
    %v581 = vunpack.c.h.b16 %v485
    %v582 = vunpack.c.l.b16 %v486
    %v583 = vunpack.c.h.b16 %v486
    %v584 = vpack.c.b16 %v524, %v520
    %v585 = vpack.c.b16 %v525, %v521
    %v586 = vpack.c.b16 %v526, %v522
    %v587 = vpack.c.b16 %v527, %v523
    %v588 = vpack.c.b16 %v532, %v528
    %v589 = vpack.c.b16 %v533, %v529
    %v590 = vpack.c.b16 %v534, %v530
    %v591 = vpack.c.b16 %v535, %v531
    %v592 = vpack.c.b16 %v540, %v536
    %v593 = vpack.c.b16 %v541, %v537
    %v594 = vpack.c.b16 %v542, %v538
    %v595 = vpack.c.b16 %v543, %v539
    %v596 = vpack.c.b16 %v548, %v544
    %v597 = vpack.c.b16 %v549, %v545
    %v598 = vpack.c.b16 %v550, %v546
    %v599 = vpack.c.b16 %v551, %v547
    %v600 = vpack.c.b16 %v556, %v552
    %v601 = vpack.c.b16 %v557, %v553
    %v602 = vpack.c.b16 %v558, %v554
    %v603 = vpack.c.b16 %v559, %v555
    %v604 = vpack.c.b16 %v564, %v560
    %v605 = vpack.c.b16 %v565, %v561
    %v606 = vpack.c.b16 %v566, %v562
    %v607 = vpack.c.b16 %v567, %v563
    %v608 = vpack.c.b16 %v572, %v568
    %v609 = vpack.c.b16 %v573, %v569
    %v610 = vpack.c.b16 %v574, %v570
    %v611 = vpack.c.b16 %v575, %v571
    %v612 = vpack.c.b16 %v580, %v576
    %v613 = vpack.c.b16 %v581, %v577
    %v614 = vpack.c.b16 %v582, %v578
    %v615 = vpack.c.b16 %v583, %v579
    %648 = vmatprep.subr.bf16.mxu0 %v585
    %649 = vmatpush1.bf16.msra.mxu0 %v584
    %650 = vmatprep.subr.bf16.mxu0 %v589
    %651 = vmatpush1.bf16.msra.mxu0 %v588
    %652 = vmatprep.subr.bf16.mxu0 %v593
    %653 = vmatpush1.bf16.msra.mxu0 %v592
    %654 = vmatprep.subr.bf16.mxu0 %v597
    %655 = vmatpush1.bf16.msra.mxu0 %v596
    %656 = vmatprep.subr.bf16.mxu0 %v601
    %657 = vmatpush1.bf16.msra.mxu0 %v600
    %658 = vmatprep.subr.bf16.mxu0 %v605
    %659 = vmatpush1.bf16.msra.mxu0 %v604
    %660 = vmatprep.subr.bf16.mxu0 %v609
    %661 = vmatpush1.bf16.msra.mxu0 %v608
    %662 = vmatprep.subr.bf16.mxu0 %v613
    %663 = vmatpush1.bf16.msra.mxu0 %v612
    %664 = vmatprep.subr.bf16.mxu0 0
    %665 = vmatpush1.bf16.msra.mxu0 0
    %666 = vmatprep.subr.bf16.mxu0 0
    %667 = vmatpush1.bf16.msra.mxu0 0
    %668 = vmatprep.subr.bf16.mxu0 0
    %669 = vmatpush1.bf16.msra.mxu0 0
    %670 = vmatprep.subr.bf16.mxu0 0
    %671 = vmatpush1.bf16.msra.mxu0 0
    %672 = vmatprep.subr.bf16.mxu0 0
    %673 = vmatpush1.bf16.msra.mxu0 0
    %674 = vmatprep.subr.bf16.mxu0 0
    %675 = vmatpush1.bf16.msra.mxu0 0
    %676 = vmatprep.subr.bf16.mxu0 0
    %677 = vmatpush1.bf16.msra.mxu0 0
    %678 = vmatprep.subr.bf16.mxu0 0
    %679 = vmatpush1.bf16.msra.mxu0 0
    %680 = vmatprep.mubr.bf16.mxu0 0
    %681 = vmatmul.mubr.bf16.gmra.mrb[0].mxu0 %v487
    %v682 = vpop.f32.mrb[0].mxu0
    %v683 = vadd.f32 0.0, %v682
    %v684 = vpop.f32.mrb[0].mxu0
    %v685 = vadd.f32 0.0, %v684
    %v686 = vpop.f32.mrb[0].mxu0
    %v687 = vpop.f32.mrb[0].mxu0
    %688 = vdwg.mxu0
    %689 = vmatprep.subr.bf16.mxu0 %v587
    %690 = vmatpush1.bf16.msra.mxu0 %v586
    %691 = vmatprep.subr.bf16.mxu0 %v591
    %692 = vmatpush1.bf16.msra.mxu0 %v590
    %693 = vmatprep.subr.bf16.mxu0 %v595
    %694 = vmatpush1.bf16.msra.mxu0 %v594
    %695 = vmatprep.subr.bf16.mxu0 %v599
    %696 = vmatpush1.bf16.msra.mxu0 %v598
    %697 = vmatprep.subr.bf16.mxu0 %v603
    %698 = vmatpush1.bf16.msra.mxu0 %v602
    %699 = vmatprep.subr.bf16.mxu0 %v607
    %700 = vmatpush1.bf16.msra.mxu0 %v606
    %701 = vmatprep.subr.bf16.mxu0 %v611
    %702 = vmatpush1.bf16.msra.mxu0 %v610
    %703 = vmatprep.subr.bf16.mxu0 %v615
    %704 = vmatpush1.bf16.msra.mxu0 %v614
    %705 = vmatprep.subr.bf16.mxu0 0
    %706 = vmatpush1.bf16.msra.mxu0 0
    %707 = vmatprep.subr.bf16.mxu0 0
    %708 = vmatpush1.bf16.msra.mxu0 0
    %709 = vmatprep.subr.bf16.mxu0 0
    %710 = vmatpush1.bf16.msra.mxu0 0
    %711 = vmatprep.subr.bf16.mxu0 0
    %712 = vmatpush1.bf16.msra.mxu0 0
    %713 = vmatprep.subr.bf16.mxu0 0
    %714 = vmatpush1.bf16.msra.mxu0 0
    %715 = vmatprep.subr.bf16.mxu0 0
    %716 = vmatpush1.bf16.msra.mxu0 0
    %717 = vmatprep.subr.bf16.mxu0 0
    %718 = vmatpush1.bf16.msra.mxu0 0
    %719 = vmatprep.subr.bf16.mxu0 0
    %720 = vmatpush1.bf16.msra.mxu0 0
    %721 = vmatprep.mubr.bf16.mxu0 0
    %722 = vmatmul.mubr.bf16.gmra.mrb[0].mxu0 %v487
    %v723 = vpop.f32.mrb[0].mxu0
    %v724 = vadd.f32 0.0, %v723
    %v725 = vpop.f32.mrb[0].mxu0
    %v726 = vadd.f32 0.0, %v725
    %v727 = vpop.f32.mrb[0].mxu0
    %v728 = vpop.f32.mrb[0].mxu0
    %729 = vdwg.mxu0
    %v730 = vadd.f32 %v404, %v683
    %v731 = vadd.f32 %v406, %v685
    %v734 = vrot.slane %v724, 2
    %v735 = vrot.slane %v726, 2
    %v738 = vadd.f32 %v451, %v734
    %v739 = vadd.f32 %v453, %v735
    %v740 = vsub.f32 0.0, %v730
    %v741 = vmul.f32 %v740, 1.442695
    %v742 = vpow.pop %v741
    %v743 = vadd.f32 %v742, 1.0
    %v744 = vrcp.pop %v743
    %v745 = vmul.f32 1.0, %v744
    %v746 = vtanh.pop %v731
    %v747 = vsub.f32 0.0, %v731
    %v748 = vmul.f32 %v747, 1.442695
    %v749 = vpow.pop %v748
    %v750 = vadd.f32 %v749, 1.0
    %v751 = vrcp.pop %v750
    %v752 = vmul.f32 1.0, %v751
    %v753 = vmul.f32 %v745, 0.0
    %v754 = vmul.f32 %v745, %v746
    %756 = vrot.lane.b32.xlu0 %v754, 64
    %v757 = vpop.permute.xlu0 %756
    %v759 = vadd.f32 %v753, %v757
    %v760 = vtanh.pop %v759
    %v761 = vmul.f32 %v752, %v760
    %v762 = vsub.f32 0.0, %v738
    %v763 = vmul.f32 %v762, 1.442695
    %v764 = vpow.pop %v763
    %v765 = vadd.f32 %v764, 1.0
    %v766 = vrcp.pop %v765
    %v767 = vmul.f32 1.0, %v766
    %v768 = vtanh.pop %v739
    %v769 = vsub.f32 0.0, %v739
    %v770 = vmul.f32 %v769, 1.442695
    %v771 = vpow.pop %v770
    %v772 = vadd.f32 %v771, 1.0
    %v773 = vrcp.pop %v772
    %v774 = vmul.f32 1.0, %v773
    %v775 = vmul.f32 %v767, 0.0
    %v776 = vmul.f32 %v767, %v768
    %778 = vrot.lane.b32.xlu0 %v776, 64
    %v779 = vpop.permute.xlu0 %778
    %v781 = vadd.f32 %v775, %v779
    %v782 = vtanh.pop %v781
    %v783 = vmul.f32 %v774, %v782
    %785 = vrot.lane.b32.xlu0 %v761, 64
    %v786 = vpop.permute.xlu0 %785
    %vm788 = vcmask 517120
    %789 = vst.msk [vmem:[#allocation2] sm:$0x3] %vm788, %v786
    %vm790 = vcmask 1048070
    %791 = vst.msk [vmem:[#allocation2 + $0x8] sm:$0xc0] %vm790, %v783
    %v793 = vrot.slane %v783, 6
    %vm795 = vcmask 523264
    %v796 = vsel %vm795, %v786, %v793
    %v797 = vpack.c.bf16 %v796, %v796
    %798 = vmatprep.subr.bf16.mxu0 %v585
    %799 = vmatpush1.bf16.msra.mxu0 %v584
    %800 = vmatprep.subr.bf16.mxu0 %v589
    %801 = vmatpush1.bf16.msra.mxu0 %v588
    %802 = vmatprep.subr.bf16.mxu0 %v593
    %803 = vmatpush1.bf16.msra.mxu0 %v592
    %804 = vmatprep.subr.bf16.mxu0 %v597
    %805 = vmatpush1.bf16.msra.mxu0 %v596
    %806 = vmatprep.subr.bf16.mxu0 %v601
    %807 = vmatpush1.bf16.msra.mxu0 %v600
    %808 = vmatprep.subr.bf16.mxu0 %v605
    %809 = vmatpush1.bf16.msra.mxu0 %v604
    %810 = vmatprep.subr.bf16.mxu0 %v609
    %811 = vmatpush1.bf16.msra.mxu0 %v608
    %812 = vmatprep.subr.bf16.mxu0 %v613
    %813 = vmatpush1.bf16.msra.mxu0 %v612
    %814 = vmatprep.subr.bf16.mxu0 0
    %815 = vmatpush1.bf16.msra.mxu0 0
    %816 = vmatprep.subr.bf16.mxu0 0
    %817 = vmatpush1.bf16.msra.mxu0 0
    %818 = vmatprep.subr.bf16.mxu0 0
    %819 = vmatpush1.bf16.msra.mxu0 0
    %820 = vmatprep.subr.bf16.mxu0 0
    %821 = vmatpush1.bf16.msra.mxu0 0
    %822 = vmatprep.subr.bf16.mxu0 0
    %823 = vmatpush1.bf16.msra.mxu0 0
    %824 = vmatprep.subr.bf16.mxu0 0
    %825 = vmatpush1.bf16.msra.mxu0 0
    %826 = vmatprep.subr.bf16.mxu0 0
    %827 = vmatpush1.bf16.msra.mxu0 0
    %828 = vmatprep.subr.bf16.mxu0 0
    %829 = vmatpush1.bf16.msra.mxu0 0
    %830 = vmatprep.mubr.bf16.mxu0 0
    %831 = vmatmul.mubr.bf16.gmra.mrb[0].mxu0 %v797
    %v832 = vpop.f32.mrb[0].mxu0
    %v833 = vadd.f32 0.0, %v832
    %v834 = vpop.f32.mrb[0].mxu0
    %v835 = vadd.f32 0.0, %v834
    %v836 = vpop.f32.mrb[0].mxu0
    %v837 = vpop.f32.mrb[0].mxu0
    %838 = vdwg.mxu0
    %839 = vmatprep.subr.bf16.mxu0 %v587
    %840 = vmatpush1.bf16.msra.mxu0 %v586
    %841 = vmatprep.subr.bf16.mxu0 %v591
    %842 = vmatpush1.bf16.msra.mxu0 %v590
    %843 = vmatprep.subr.bf16.mxu0 %v595
    %844 = vmatpush1.bf16.msra.mxu0 %v594
    %845 = vmatprep.subr.bf16.mxu0 %v599
    %846 = vmatpush1.bf16.msra.mxu0 %v598
    %847 = vmatprep.subr.bf16.mxu0 %v603
    %848 = vmatpush1.bf16.msra.mxu0 %v602
    %849 = vmatprep.subr.bf16.mxu0 %v607
    %850 = vmatpush1.bf16.msra.mxu0 %v606
    %851 = vmatprep.subr.bf16.mxu0 %v611
    %852 = vmatpush1.bf16.msra.mxu0 %v610
    %853 = vmatprep.subr.bf16.mxu0 %v615
    %854 = vmatpush1.bf16.msra.mxu0 %v614
    %855 = vmatprep.subr.bf16.mxu0 0
    %856 = vmatpush1.bf16.msra.mxu0 0
    %857 = vmatprep.subr.bf16.mxu0 0
    %858 = vmatpush1.bf16.msra.mxu0 0
    %859 = vmatprep.subr.bf16.mxu0 0
    %860 = vmatpush1.bf16.msra.mxu0 0
    %861 = vmatprep.subr.bf16.mxu0 0
    %862 = vmatpush1.bf16.msra.mxu0 0
    %863 = vmatprep.subr.bf16.mxu0 0
    %864 = vmatpush1.bf16.msra.mxu0 0
    %865 = vmatprep.subr.bf16.mxu0 0
    %866 = vmatpush1.bf16.msra.mxu0 0
    %867 = vmatprep.subr.bf16.mxu0 0
    %868 = vmatpush1.bf16.msra.mxu0 0
    %869 = vmatprep.subr.bf16.mxu0 0
    %870 = vmatpush1.bf16.msra.mxu0 0
    %871 = vmatprep.mubr.bf16.mxu0 0
    %872 = vmatmul.mubr.bf16.gmra.mrb[0].mxu0 %v797
    %v873 = vpop.f32.mrb[0].mxu0
    %v874 = vadd.f32 0.0, %v873
    %v875 = vpop.f32.mrb[0].mxu0
    %v876 = vadd.f32 0.0, %v875
    %v877 = vpop.f32.mrb[0].mxu0
    %v878 = vpop.f32.mrb[0].mxu0
    %879 = vdwg.mxu0
    %v882 = vrot.slane %v833, 6
    %v883 = vrot.slane %v835, 6
    %v886 = vadd.f32 %v404, %v882
    %v887 = vadd.f32 %v406, %v883
    %v890 = vrot.slane %v874, 4
    %v891 = vrot.slane %v876, 4
    %v894 = vadd.f32 %v451, %v890
    %v895 = vadd.f32 %v453, %v891
    %v896 = vsub.f32 0.0, %v886
    %v897 = vmul.f32 %v896, 1.442695
    %v898 = vpow.pop %v897
    %v899 = vadd.f32 %v898, 1.0
    %v900 = vrcp.pop %v899
    %v901 = vmul.f32 1.0, %v900
    %v902 = vtanh.pop %v887
    %v903 = vsub.f32 0.0, %v887
    %v904 = vmul.f32 %v903, 1.442695
    %v905 = vpow.pop %v904
    %v906 = vadd.f32 %v905, 1.0
    %v907 = vrcp.pop %v906
    %v908 = vmul.f32 1.0, %v907
    %v910 = vrot.slane %v759, 6
    %v912 = vmul.f32 %v901, %v910
    %v913 = vmul.f32 %v901, %v902
    %915 = vrot.lane.b32.xlu0 %v913, 64
    %v916 = vpop.permute.xlu0 %915
    %v918 = vadd.f32 %v912, %v916
    %v919 = vtanh.pop %v918
    %v920 = vmul.f32 %v908, %v919
    %v921 = vsub.f32 0.0, %v894
    %v922 = vmul.f32 %v921, 1.442695
    %v923 = vpow.pop %v922
    %v924 = vadd.f32 %v923, 1.0
    %v925 = vrcp.pop %v924
    %v926 = vmul.f32 1.0, %v925
    %v927 = vtanh.pop %v895
    %v928 = vsub.f32 0.0, %v895
    %v929 = vmul.f32 %v928, 1.442695
    %v930 = vpow.pop %v929
    %v931 = vadd.f32 %v930, 1.0
    %v932 = vrcp.pop %v931
    %v933 = vmul.f32 1.0, %v932
    %v935 = vrot.slane %v781, 2
    %v937 = vmul.f32 %v926, %v935
    %v938 = vmul.f32 %v926, %v927
    %940 = vrot.lane.b32.xlu0 %v938, 64
    %v941 = vpop.permute.xlu0 %940
    %v943 = vadd.f32 %v937, %v941
    %v944 = vtanh.pop %v943
    %v945 = vmul.f32 %v933, %v944
    %947 = vrot.lane.b32.xlu0 %v920, 64
    %v948 = vpop.permute.xlu0 %947
    %vm950 = vcmask 519170
    %951 = vst.msk [vmem:[#allocation2] sm:$0xc] %vm950, %v948
    %vm952 = vcmask 1046020
    %953 = vst.msk [vmem:[#allocation2 + $0x8] sm:$0x30] %vm952, %v945
    %v955 = vrot.slane %v945, 2
    %v957 = vsel %vm795, %v948, %v955
    %v958 = vpack.c.bf16 %v957, %v957
    %v960 = vrot.slane %v958, 1
    %962 = vmatprep.subr.bf16.mxu0 %v585
    %963 = vmatpush1.bf16.msra.mxu0 %v584
    %964 = vmatprep.subr.bf16.mxu0 %v589
    %965 = vmatpush1.bf16.msra.mxu0 %v588
    %966 = vmatprep.subr.bf16.mxu0 %v593
    %967 = vmatpush1.bf16.msra.mxu0 %v592
    %968 = vmatprep.subr.bf16.mxu0 %v597
    %969 = vmatpush1.bf16.msra.mxu0 %v596
    %970 = vmatprep.subr.bf16.mxu0 %v601
    %971 = vmatpush1.bf16.msra.mxu0 %v600
    %972 = vmatprep.subr.bf16.mxu0 %v605
    %973 = vmatpush1.bf16.msra.mxu0 %v604
    %974 = vmatprep.subr.bf16.mxu0 %v609
    %975 = vmatpush1.bf16.msra.mxu0 %v608
    %976 = vmatprep.subr.bf16.mxu0 %v613
    %977 = vmatpush1.bf16.msra.mxu0 %v612
    %978 = vmatprep.subr.bf16.mxu0 0
    %979 = vmatpush1.bf16.msra.mxu0 0
    %980 = vmatprep.subr.bf16.mxu0 0
    %981 = vmatpush1.bf16.msra.mxu0 0
    %982 = vmatprep.subr.bf16.mxu0 0
    %983 = vmatpush1.bf16.msra.mxu0 0
    %984 = vmatprep.subr.bf16.mxu0 0
    %985 = vmatpush1.bf16.msra.mxu0 0
    %986 = vmatprep.subr.bf16.mxu0 0
    %987 = vmatpush1.bf16.msra.mxu0 0
    %988 = vmatprep.subr.bf16.mxu0 0
    %989 = vmatpush1.bf16.msra.mxu0 0
    %990 = vmatprep.subr.bf16.mxu0 0
    %991 = vmatpush1.bf16.msra.mxu0 0
    %992 = vmatprep.subr.bf16.mxu0 0
    %993 = vmatpush1.bf16.msra.mxu0 0
    %994 = vmatprep.mubr.bf16.mxu0 0
    %995 = vmatmul.mubr.bf16.gmra.mrb[0].mxu0 %v960
    %v996 = vpop.f32.mrb[0].mxu0
    %v997 = vadd.f32 0.0, %v996
    %v998 = vpop.f32.mrb[0].mxu0
    %v999 = vadd.f32 0.0, %v998
    %v1000 = vpop.f32.mrb[0].mxu0
    %v1001 = vpop.f32.mrb[0].mxu0
    %1002 = vdwg.mxu0
    %1003 = vmatprep.subr.bf16.mxu0 %v587
    %1004 = vmatpush1.bf16.msra.mxu0 %v586
    %1005 = vmatprep.subr.bf16.mxu0 %v591
    %1006 = vmatpush1.bf16.msra.mxu0 %v590
    %1007 = vmatprep.subr.bf16.mxu0 %v595
    %1008 = vmatpush1.bf16.msra.mxu0 %v594
    %1009 = vmatprep.subr.bf16.mxu0 %v599
    %1010 = vmatpush1.bf16.msra.mxu0 %v598
    %1011 = vmatprep.subr.bf16.mxu0 %v603
    %1012 = vmatpush1.bf16.msra.mxu0 %v602
    %1013 = vmatprep.subr.bf16.mxu0 %v607
    %1014 = vmatpush1.bf16.msra.mxu0 %v606
    %1015 = vmatprep.subr.bf16.mxu0 %v611
    %1016 = vmatpush1.bf16.msra.mxu0 %v610
    %1017 = vmatprep.subr.bf16.mxu0 %v615
    %1018 = vmatpush1.bf16.msra.mxu0 %v614
    %1019 = vmatprep.subr.bf16.mxu0 0
    %1020 = vmatpush1.bf16.msra.mxu0 0
    %1021 = vmatprep.subr.bf16.mxu0 0
    %1022 = vmatpush1.bf16.msra.mxu0 0
    %1023 = vmatprep.subr.bf16.mxu0 0
    %1024 = vmatpush1.bf16.msra.mxu0 0
    %1025 = vmatprep.subr.bf16.mxu0 0
    %1026 = vmatpush1.bf16.msra.mxu0 0
    %1027 = vmatprep.subr.bf16.mxu0 0
    %1028 = vmatpush1.bf16.msra.mxu0 0
    %1029 = vmatprep.subr.bf16.mxu0 0
    %1030 = vmatpush1.bf16.msra.mxu0 0
    %1031 = vmatprep.subr.bf16.mxu0 0
    %1032 = vmatpush1.bf16.msra.mxu0 0
    %1033 = vmatprep.subr.bf16.mxu0 0
    %1034 = vmatpush1.bf16.msra.mxu0 0
    %1035 = vmatprep.mubr.bf16.mxu0 0
    %1036 = vmatmul.mubr.bf16.gmra.mrb[0].mxu0 %v960
    %v1037 = vpop.f32.mrb[0].mxu0
    %v1038 = vadd.f32 0.0, %v1037
    %v1039 = vpop.f32.mrb[0].mxu0
    %v1040 = vadd.f32 0.0, %v1039
    %v1041 = vpop.f32.mrb[0].mxu0
    %v1042 = vpop.f32.mrb[0].mxu0
    %1043 = vdwg.mxu0
    %v1046 = vrot.slane %v997, 4
    %v1047 = vrot.slane %v999, 4
    %v1050 = vadd.f32 %v404, %v1046
    %v1051 = vadd.f32 %v406, %v1047
    %v1054 = vrot.slane %v1038, 6
    %v1055 = vrot.slane %v1040, 6
    %v1058 = vadd.f32 %v451, %v1054
    %v1059 = vadd.f32 %v453, %v1055
    %v1060 = vsub.f32 0.0, %v1050
    %v1061 = vmul.f32 %v1060, 1.442695
    %v1062 = vpow.pop %v1061
    %v1063 = vadd.f32 %v1062, 1.0
    %v1064 = vrcp.pop %v1063
    %v1065 = vmul.f32 1.0, %v1064
    %v1066 = vtanh.pop %v1051
    %v1067 = vsub.f32 0.0, %v1051
    %v1068 = vmul.f32 %v1067, 1.442695
    %v1069 = vpow.pop %v1068
    %v1070 = vadd.f32 %v1069, 1.0
    %v1071 = vrcp.pop %v1070
    %v1072 = vmul.f32 1.0, %v1071
    %v1074 = vrot.slane %v918, 6
    %v1076 = vmul.f32 %v1065, %v1074
    %v1077 = vmul.f32 %v1065, %v1066
    %1079 = vrot.lane.b32.xlu0 %v1077, 64
    %v1080 = vpop.permute.xlu0 %1079
    %v1082 = vadd.f32 %v1076, %v1080
    %v1083 = vtanh.pop %v1082
    %v1084 = vmul.f32 %v1072, %v1083
    %v1085 = vsub.f32 0.0, %v1058
    %v1086 = vmul.f32 %v1085, 1.442695
    %v1087 = vpow.pop %v1086
    %v1088 = vadd.f32 %v1087, 1.0
    %v1089 = vrcp.pop %v1088
    %v1090 = vmul.f32 1.0, %v1089
    %v1091 = vtanh.pop %v1059
    %v1092 = vsub.f32 0.0, %v1059
    %v1093 = vmul.f32 %v1092, 1.442695
    %v1094 = vpow.pop %v1093
    %v1095 = vadd.f32 %v1094, 1.0
    %v1096 = vrcp.pop %v1095
    %v1097 = vmul.f32 1.0, %v1096
    %v1099 = vrot.slane %v943, 2
    %v1101 = vmul.f32 %v1090, %v1099
    %v1102 = vmul.f32 %v1090, %v1091
    %1104 = vrot.lane.b32.xlu0 %v1102, 64
    %v1105 = vpop.permute.xlu0 %1104
    %v1107 = vadd.f32 %v1101, %v1105
    %v1108 = vtanh.pop %v1107
    %v1109 = vmul.f32 %v1097, %v1108
    %1111 = vrot.lane.b32.xlu0 %v1084, 64
    %v1112 = vpop.permute.xlu0 %1111
    %vm1114 = vcmask 521220
    %1115 = vst.msk [vmem:[#allocation2] sm:$0x30] %vm1114, %v1112
    %vm1116 = vcmask 1043970
    %1117 = vst.msk [vmem:[#allocation2 + $0x8] sm:$0xc] %vm1116, %v1109
    %v1119 = vrot.slane %v1109, 6
    %v1121 = vsel %vm795, %v1112, %v1119
    %v1122 = vpack.c.bf16 %v1121, %v1121
    %v1124 = vrot.slane %v1122, 2
    %1126 = vmatprep.subr.bf16.mxu0 %v585
    %1127 = vmatpush1.bf16.msra.mxu0 %v584
    %1128 = vmatprep.subr.bf16.mxu0 %v589
    %1129 = vmatpush1.bf16.msra.mxu0 %v588
    %1130 = vmatprep.subr.bf16.mxu0 %v593
    %1131 = vmatpush1.bf16.msra.mxu0 %v592
    %1132 = vmatprep.subr.bf16.mxu0 %v597
    %1133 = vmatpush1.bf16.msra.mxu0 %v596
    %1134 = vmatprep.subr.bf16.mxu0 %v601
    %1135 = vmatpush1.bf16.msra.mxu0 %v600
    %1136 = vmatprep.subr.bf16.mxu0 %v605
    %1137 = vmatpush1.bf16.msra.mxu0 %v604
    %1138 = vmatprep.subr.bf16.mxu0 %v609
    %1139 = vmatpush1.bf16.msra.mxu0 %v608
    %1140 = vmatprep.subr.bf16.mxu0 %v613
    %1141 = vmatpush1.bf16.msra.mxu0 %v612
    %1142 = vmatprep.subr.bf16.mxu0 0
    %1143 = vmatpush1.bf16.msra.mxu0 0
    %1144 = vmatprep.subr.bf16.mxu0 0
    %1145 = vmatpush1.bf16.msra.mxu0 0
    %1146 = vmatprep.subr.bf16.mxu0 0
    %1147 = vmatpush1.bf16.msra.mxu0 0
    %1148 = vmatprep.subr.bf16.mxu0 0
    %1149 = vmatpush1.bf16.msra.mxu0 0
    %1150 = vmatprep.subr.bf16.mxu0 0
    %1151 = vmatpush1.bf16.msra.mxu0 0
    %1152 = vmatprep.subr.bf16.mxu0 0
    %1153 = vmatpush1.bf16.msra.mxu0 0
    %1154 = vmatprep.subr.bf16.mxu0 0
    %1155 = vmatpush1.bf16.msra.mxu0 0
    %1156 = vmatprep.subr.bf16.mxu0 0
    %1157 = vmatpush1.bf16.msra.mxu0 0
    %1158 = vmatprep.mubr.bf16.mxu0 0
    %1159 = vmatmul.mubr.bf16.gmra.mrb[0].mxu0 %v1124
    %v1160 = vpop.f32.mrb[0].mxu0
    %v1161 = vadd.f32 0.0, %v1160
    %v1162 = vpop.f32.mrb[0].mxu0
    %v1163 = vadd.f32 0.0, %v1162
    %v1164 = vpop.f32.mrb[0].mxu0
    %v1165 = vpop.f32.mrb[0].mxu0
    %1166 = vdwg.mxu0
    %1167 = vmatprep.subr.bf16.mxu0 %v587
    %1168 = vmatpush1.bf16.msra.mxu0 %v586
    %1169 = vmatprep.subr.bf16.mxu0 %v591
    %1170 = vmatpush1.bf16.msra.mxu0 %v590
    %1171 = vmatprep.subr.bf16.mxu0 %v595
    %1172 = vmatpush1.bf16.msra.mxu0 %v594
    %1173 = vmatprep.subr.bf16.mxu0 %v599
    %1174 = vmatpush1.bf16.msra.mxu0 %v598
    %1175 = vmatprep.subr.bf16.mxu0 %v603
    %1176 = vmatpush1.bf16.msra.mxu0 %v602
    %1177 = vmatprep.subr.bf16.mxu0 %v607
    %1178 = vmatpush1.bf16.msra.mxu0 %v606
    %1179 = vmatprep.subr.bf16.mxu0 %v611
    %1180 = vmatpush1.bf16.msra.mxu0 %v610
    %1181 = vmatprep.subr.bf16.mxu0 %v615
    %1182 = vmatpush1.bf16.msra.mxu0 %v614
    %1183 = vmatprep.subr.bf16.mxu0 0
    %1184 = vmatpush1.bf16.msra.mxu0 0
    %1185 = vmatprep.subr.bf16.mxu0 0
    %1186 = vmatpush1.bf16.msra.mxu0 0
    %1187 = vmatprep.subr.bf16.mxu0 0
    %1188 = vmatpush1.bf16.msra.mxu0 0
    %1189 = vmatprep.subr.bf16.mxu0 0
    %1190 = vmatpush1.bf16.msra.mxu0 0
    %1191 = vmatprep.subr.bf16.mxu0 0
    %1192 = vmatpush1.bf16.msra.mxu0 0
    %1193 = vmatprep.subr.bf16.mxu0 0
    %1194 = vmatpush1.bf16.msra.mxu0 0
    %1195 = vmatprep.subr.bf16.mxu0 0
    %1196 = vmatpush1.bf16.msra.mxu0 0
    %1197 = vmatprep.subr.bf16.mxu0 0
    %1198 = vmatpush1.bf16.msra.mxu0 0
    %1199 = vmatprep.mubr.bf16.mxu0 0
    %1200 = vmatmul.mubr.bf16.gmra.mrb[0].mxu0 %v1124
    %v1201 = vpop.f32.mrb[0].mxu0
    %v1202 = vadd.f32 0.0, %v1201
    %v1203 = vpop.f32.mrb[0].mxu0
    %v1204 = vadd.f32 0.0, %v1203
    %v1205 = vpop.f32.mrb[0].mxu0
    %v1206 = vpop.f32.mrb[0].mxu0
    %1207 = vdwg.mxu0
    %v1210 = vrot.slane %v1161, 2
    %v1211 = vrot.slane %v1163, 2
    %v1214 = vadd.f32 %v404, %v1210
    %v1215 = vadd.f32 %v406, %v1211
    %v1216 = vadd.f32 %v451, %v1202
    %v1217 = vadd.f32 %v453, %v1204
    %v1218 = vsub.f32 0.0, %v1214
    %v1219 = vmul.f32 %v1218, 1.442695
    %v1220 = vpow.pop %v1219
    %v1221 = vadd.f32 %v1220, 1.0
    %v1222 = vrcp.pop %v1221
    %v1223 = vmul.f32 1.0, %v1222
    %v1224 = vtanh.pop %v1215
    %v1225 = vsub.f32 0.0, %v1215
    %v1226 = vmul.f32 %v1225, 1.442695
    %v1227 = vpow.pop %v1226
    %v1228 = vadd.f32 %v1227, 1.0
    %v1229 = vrcp.pop %v1228
    %v1230 = vmul.f32 1.0, %v1229
    %v1232 = vrot.slane %v1082, 6
    %v1234 = vmul.f32 %v1223, %v1232
    %v1235 = vmul.f32 %v1223, %v1224
    %1237 = vrot.lane.b32.xlu0 %v1235, 64
    %v1238 = vpop.permute.xlu0 %1237
    %v1240 = vadd.f32 %v1234, %v1238
    %v1241 = vtanh.pop %v1240
    %v1242 = vmul.f32 %v1230, %v1241
    %v1243 = vsub.f32 0.0, %v1216
    %v1244 = vmul.f32 %v1243, 1.442695
    %v1245 = vpow.pop %v1244
    %v1246 = vadd.f32 %v1245, 1.0
    %v1247 = vrcp.pop %v1246
    %v1248 = vmul.f32 1.0, %v1247
    %v1249 = vtanh.pop %v1217
    %v1250 = vsub.f32 0.0, %v1217
    %v1251 = vmul.f32 %v1250, 1.442695
    %v1252 = vpow.pop %v1251
    %v1253 = vadd.f32 %v1252, 1.0
    %v1254 = vrcp.pop %v1253
    %v1255 = vmul.f32 1.0, %v1254
    %v1257 = vrot.slane %v1107, 2
    %v1259 = vmul.f32 %v1248, %v1257
    %v1260 = vmul.f32 %v1248, %v1249
    %1262 = vrot.lane.b32.xlu0 %v1260, 64
    %v1263 = vpop.permute.xlu0 %1262
    %v1265 = vadd.f32 %v1259, %v1263
    %v1266 = vtanh.pop %v1265
    %v1267 = vmul.f32 %v1255, %v1266
    %1269 = vrot.lane.b32.xlu0 %v1242, 64
    %v1270 = vpop.permute.xlu0 %1269
    %vm1272 = vcmask 523270
    %1273 = vst.msk [vmem:[#allocation2] sm:$0xc0] %vm1272, %v1270
    %vm1274 = vcmask 1041920
    %1275 = vst.msk [vmem:[#allocation2 + $0x8] sm:$0x3] %vm1274, %v1267
    %v1277 = vrot.slane %v1267, 2
    %v1279 = vsel %vm795, %v1270, %v1277
    %v1280 = vpack.c.bf16 %v1279, %v1279
    %v1282 = vrot.slane %v1280, 3
    %1284 = vmatprep.subr.bf16.mxu0 %v585
    %1285 = vmatpush1.bf16.msra.mxu0 %v584
    %1286 = vmatprep.subr.bf16.mxu0 %v589
    %1287 = vmatpush1.bf16.msra.mxu0 %v588
    %1288 = vmatprep.subr.bf16.mxu0 %v593
    %1289 = vmatpush1.bf16.msra.mxu0 %v592
    %1290 = vmatprep.subr.bf16.mxu0 %v597
    %1291 = vmatpush1.bf16.msra.mxu0 %v596
    %1292 = vmatprep.subr.bf16.mxu0 %v601
    %1293 = vmatpush1.bf16.msra.mxu0 %v600
    %1294 = vmatprep.subr.bf16.mxu0 %v605
    %1295 = vmatpush1.bf16.msra.mxu0 %v604
    %1296 = vmatprep.subr.bf16.mxu0 %v609
    %1297 = vmatpush1.bf16.msra.mxu0 %v608
    %1298 = vmatprep.subr.bf16.mxu0 %v613
    %1299 = vmatpush1.bf16.msra.mxu0 %v612
    %1300 = vmatprep.subr.bf16.mxu0 0
    %1301 = vmatpush1.bf16.msra.mxu0 0
    %1302 = vmatprep.subr.bf16.mxu0 0
    %1303 = vmatpush1.bf16.msra.mxu0 0
    %1304 = vmatprep.subr.bf16.mxu0 0
    %1305 = vmatpush1.bf16.msra.mxu0 0
    %1306 = vmatprep.subr.bf16.mxu0 0
    %1307 = vmatpush1.bf16.msra.mxu0 0
    %1308 = vmatprep.subr.bf16.mxu0 0
    %1309 = vmatpush1.bf16.msra.mxu0 0
    %1310 = vmatprep.subr.bf16.mxu0 0
    %1311 = vmatpush1.bf16.msra.mxu0 0
    %1312 = vmatprep.subr.bf16.mxu0 0
    %1313 = vmatpush1.bf16.msra.mxu0 0
    %1314 = vmatprep.subr.bf16.mxu0 0
    %1315 = vmatpush1.bf16.msra.mxu0 0
    %1316 = vmatprep.mubr.bf16.mxu0 0
    %1317 = vmatmul.mubr.bf16.gmra.mrb[0].mxu0 %v1282
    %v1318 = vpop.f32.mrb[0].mxu0
    %v1319 = vadd.f32 0.0, %v1318
    %v1320 = vpop.f32.mrb[0].mxu0
    %v1321 = vadd.f32 0.0, %v1320
    %v1322 = vpop.f32.mrb[0].mxu0
    %v1323 = vpop.f32.mrb[0].mxu0
    %1324 = vdwg.mxu0
    %1325 = vmatprep.subr.bf16.mxu0 %v587
    %1326 = vmatpush1.bf16.msra.mxu0 %v586
    %1327 = vmatprep.subr.bf16.mxu0 %v591
    %1328 = vmatpush1.bf16.msra.mxu0 %v590
    %1329 = vmatprep.subr.bf16.mxu0 %v595
    %1330 = vmatpush1.bf16.msra.mxu0 %v594
    %1331 = vmatprep.subr.bf16.mxu0 %v599
    %1332 = vmatpush1.bf16.msra.mxu0 %v598
    %1333 = vmatprep.subr.bf16.mxu0 %v603
    %1334 = vmatpush1.bf16.msra.mxu0 %v602
    %1335 = vmatprep.subr.bf16.mxu0 %v607
    %1336 = vmatpush1.bf16.msra.mxu0 %v606
    %1337 = vmatprep.subr.bf16.mxu0 %v611
    %1338 = vmatpush1.bf16.msra.mxu0 %v610
    %1339 = vmatprep.subr.bf16.mxu0 %v615
    %1340 = vmatpush1.bf16.msra.mxu0 %v614
    %1341 = vmatprep.subr.bf16.mxu0 0
    %1342 = vmatpush1.bf16.msra.mxu0 0
    %1343 = vmatprep.subr.bf16.mxu0 0
    %1344 = vmatpush1.bf16.msra.mxu0 0
    %1345 = vmatprep.subr.bf16.mxu0 0
    %1346 = vmatpush1.bf16.msra.mxu0 0
    %1347 = vmatprep.subr.bf16.mxu0 0
    %1348 = vmatpush1.bf16.msra.mxu0 0
    %1349 = vmatprep.subr.bf16.mxu0 0
    %1350 = vmatpush1.bf16.msra.mxu0 0
    %1351 = vmatprep.subr.bf16.mxu0 0
    %1352 = vmatpush1.bf16.msra.mxu0 0
    %1353 = vmatprep.subr.bf16.mxu0 0
    %1354 = vmatpush1.bf16.msra.mxu0 0
    %1355 = vmatprep.subr.bf16.mxu0 0
    %1356 = vmatpush1.bf16.msra.mxu0 0
    %1357 = vmatprep.mubr.bf16.mxu0 0
    %1358 = vmatmul.mubr.bf16.gmra.mrb[0].mxu0 %v1282
    %v1359 = vpop.f32.mrb[0].mxu0
    %v1360 = vadd.f32 0.0, %v1359
    %v1361 = vpop.f32.mrb[0].mxu0
    %v1362 = vadd.f32 0.0, %v1361
    %v1363 = vpop.f32.mrb[0].mxu0
    %v1364 = vpop.f32.mrb[0].mxu0
    %1365 = vdwg.mxu0
    %v1366 = vadd.f32 %v408, %v1319
    %v1367 = vadd.f32 %v410, %v1321
    %v1370 = vrot.slane %v1360, 2
    %v1371 = vrot.slane %v1362, 2
    %v1374 = vadd.f32 %v447, %v1370
    %v1375 = vadd.f32 %v449, %v1371
    %v1376 = vsub.f32 0.0, %v1366
    %v1377 = vmul.f32 %v1376, 1.442695
    %v1378 = vpow.pop %v1377
    %v1379 = vadd.f32 %v1378, 1.0
    %v1380 = vrcp.pop %v1379
    %v1381 = vmul.f32 1.0, %v1380
    %v1382 = vtanh.pop %v1367
    %v1383 = vsub.f32 0.0, %v1367
    %v1384 = vmul.f32 %v1383, 1.442695
    %v1385 = vpow.pop %v1384
    %v1386 = vadd.f32 %v1385, 1.0
    %v1387 = vrcp.pop %v1386
    %v1388 = vmul.f32 1.0, %v1387
    %v1390 = vrot.slane %v1240, 6
    %v1392 = vmul.f32 %v1381, %v1390
    %v1393 = vmul.f32 %v1381, %v1382
    %1395 = vrot.lane.b32.xlu0 %v1393, 64
    %v1396 = vpop.permute.xlu0 %1395
    %v1398 = vadd.f32 %v1392, %v1396
    %v1399 = vtanh.pop %v1398
    %v1400 = vmul.f32 %v1388, %v1399
    %v1401 = vsub.f32 0.0, %v1374
    %v1402 = vmul.f32 %v1401, 1.442695
    %v1403 = vpow.pop %v1402
    %v1404 = vadd.f32 %v1403, 1.0
    %v1405 = vrcp.pop %v1404
    %v1406 = vmul.f32 1.0, %v1405
    %v1407 = vtanh.pop %v1375
    %v1408 = vsub.f32 0.0, %v1375
    %v1409 = vmul.f32 %v1408, 1.442695
    %v1410 = vpow.pop %v1409
    %v1411 = vadd.f32 %v1410, 1.0
    %v1412 = vrcp.pop %v1411
    %v1413 = vmul.f32 1.0, %v1412
    %v1415 = vrot.slane %v1265, 2
    %v1417 = vmul.f32 %v1406, %v1415
    %v1418 = vmul.f32 %v1406, %v1407
    %1420 = vrot.lane.b32.xlu0 %v1418, 64
    %v1421 = vpop.permute.xlu0 %1420
    %v1423 = vadd.f32 %v1417, %v1421
    %v1424 = vtanh.pop %v1423
    %v1425 = vmul.f32 %v1413, %v1424
    %1427 = vrot.lane.b32.xlu0 %v1400, 64
    %v1428 = vpop.permute.xlu0 %1427
    %1430 = vst.msk [vmem:[#allocation2 + $0x8] sm:$0x3] %vm788, %v1428
    %1431 = vst.msk [vmem:[#allocation2] sm:$0xc0] %vm790, %v1425
    %v1433 = vrot.slane %v1425, 6
    %v1435 = vsel %vm795, %v1428, %v1433
    %v1436 = vpack.c.bf16 %v1435, %v1435
    %1437 = vmatprep.subr.bf16.mxu0 %v585
    %1438 = vmatpush1.bf16.msra.mxu0 %v584
    %1439 = vmatprep.subr.bf16.mxu0 %v589
    %1440 = vmatpush1.bf16.msra.mxu0 %v588
    %1441 = vmatprep.subr.bf16.mxu0 %v593
    %1442 = vmatpush1.bf16.msra.mxu0 %v592
    %1443 = vmatprep.subr.bf16.mxu0 %v597
    %1444 = vmatpush1.bf16.msra.mxu0 %v596
    %1445 = vmatprep.subr.bf16.mxu0 %v601
    %1446 = vmatpush1.bf16.msra.mxu0 %v600
    %1447 = vmatprep.subr.bf16.mxu0 %v605
    %1448 = vmatpush1.bf16.msra.mxu0 %v604
    %1449 = vmatprep.subr.bf16.mxu0 %v609
    %1450 = vmatpush1.bf16.msra.mxu0 %v608
    %1451 = vmatprep.subr.bf16.mxu0 %v613
    %1452 = vmatpush1.bf16.msra.mxu0 %v612
    %1453 = vmatprep.subr.bf16.mxu0 0
    %1454 = vmatpush1.bf16.msra.mxu0 0
    %1455 = vmatprep.subr.bf16.mxu0 0
    %1456 = vmatpush1.bf16.msra.mxu0 0
    %1457 = vmatprep.subr.bf16.mxu0 0
    %1458 = vmatpush1.bf16.msra.mxu0 0
    %1459 = vmatprep.subr.bf16.mxu0 0
    %1460 = vmatpush1.bf16.msra.mxu0 0
    %1461 = vmatprep.subr.bf16.mxu0 0
    %1462 = vmatpush1.bf16.msra.mxu0 0
    %1463 = vmatprep.subr.bf16.mxu0 0
    %1464 = vmatpush1.bf16.msra.mxu0 0
    %1465 = vmatprep.subr.bf16.mxu0 0
    %1466 = vmatpush1.bf16.msra.mxu0 0
    %1467 = vmatprep.subr.bf16.mxu0 0
    %1468 = vmatpush1.bf16.msra.mxu0 0
    %1469 = vmatprep.mubr.bf16.mxu0 0
    %1470 = vmatmul.mubr.bf16.gmra.mrb[0].mxu0 %v1436
    %v1471 = vpop.f32.mrb[0].mxu0
    %v1472 = vadd.f32 0.0, %v1471
    %v1473 = vpop.f32.mrb[0].mxu0
    %v1474 = vadd.f32 0.0, %v1473
    %v1475 = vpop.f32.mrb[0].mxu0
    %v1476 = vpop.f32.mrb[0].mxu0
    %1477 = vdwg.mxu0
    %1478 = vmatprep.subr.bf16.mxu0 %v587
    %1479 = vmatpush1.bf16.msra.mxu0 %v586
    %1480 = vmatprep.subr.bf16.mxu0 %v591
    %1481 = vmatpush1.bf16.msra.mxu0 %v590
    %1482 = vmatprep.subr.bf16.mxu0 %v595
    %1483 = vmatpush1.bf16.msra.mxu0 %v594
    %1484 = vmatprep.subr.bf16.mxu0 %v599
    %1485 = vmatpush1.bf16.msra.mxu0 %v598
    %1486 = vmatprep.subr.bf16.mxu0 %v603
    %1487 = vmatpush1.bf16.msra.mxu0 %v602
    %1488 = vmatprep.subr.bf16.mxu0 %v607
    %1489 = vmatpush1.bf16.msra.mxu0 %v606
    %1490 = vmatprep.subr.bf16.mxu0 %v611
    %1491 = vmatpush1.bf16.msra.mxu0 %v610
    %1492 = vmatprep.subr.bf16.mxu0 %v615
    %1493 = vmatpush1.bf16.msra.mxu0 %v614
    %1494 = vmatprep.subr.bf16.mxu0 0
    %1495 = vmatpush1.bf16.msra.mxu0 0
    %1496 = vmatprep.subr.bf16.mxu0 0
    %1497 = vmatpush1.bf16.msra.mxu0 0
    %1498 = vmatprep.subr.bf16.mxu0 0
    %1499 = vmatpush1.bf16.msra.mxu0 0
    %1500 = vmatprep.subr.bf16.mxu0 0
    %1501 = vmatpush1.bf16.msra.mxu0 0
    %1502 = vmatprep.subr.bf16.mxu0 0
    %1503 = vmatpush1.bf16.msra.mxu0 0
    %1504 = vmatprep.subr.bf16.mxu0 0
    %1505 = vmatpush1.bf16.msra.mxu0 0
    %1506 = vmatprep.subr.bf16.mxu0 0
    %1507 = vmatpush1.bf16.msra.mxu0 0
    %1508 = vmatprep.subr.bf16.mxu0 0
    %1509 = vmatpush1.bf16.msra.mxu0 0
    %1510 = vmatprep.mubr.bf16.mxu0 0
    %1511 = vmatmul.mubr.bf16.gmra.mrb[0].mxu0 %v1436
    %v1512 = vpop.f32.mrb[0].mxu0
    %v1513 = vadd.f32 0.0, %v1512
    %v1514 = vpop.f32.mrb[0].mxu0
    %v1515 = vadd.f32 0.0, %v1514
    %v1516 = vpop.f32.mrb[0].mxu0
    %v1517 = vpop.f32.mrb[0].mxu0
    %1518 = vdwg.mxu0
    %v1521 = vrot.slane %v1472, 6
    %v1522 = vrot.slane %v1474, 6
    %v1525 = vadd.f32 %v408, %v1521
    %v1526 = vadd.f32 %v410, %v1522
    %v1529 = vrot.slane %v1513, 4
    %v1530 = vrot.slane %v1515, 4
    %v1533 = vadd.f32 %v447, %v1529
    %v1534 = vadd.f32 %v449, %v1530
    %v1535 = vsub.f32 0.0, %v1525
    %v1536 = vmul.f32 %v1535, 1.442695
    %v1537 = vpow.pop %v1536
    %v1538 = vadd.f32 %v1537, 1.0
    %v1539 = vrcp.pop %v1538
    %v1540 = vmul.f32 1.0, %v1539
    %v1541 = vtanh.pop %v1526
    %v1542 = vsub.f32 0.0, %v1526
    %v1543 = vmul.f32 %v1542, 1.442695
    %v1544 = vpow.pop %v1543
    %v1545 = vadd.f32 %v1544, 1.0
    %v1546 = vrcp.pop %v1545
    %v1547 = vmul.f32 1.0, %v1546
    %v1549 = vrot.slane %v1398, 6
    %v1551 = vmul.f32 %v1540, %v1549
    %v1552 = vmul.f32 %v1540, %v1541
    %1554 = vrot.lane.b32.xlu0 %v1552, 64
    %v1555 = vpop.permute.xlu0 %1554
    %v1557 = vadd.f32 %v1551, %v1555
    %v1558 = vtanh.pop %v1557
    %v1559 = vmul.f32 %v1547, %v1558
    %v1560 = vsub.f32 0.0, %v1533
    %v1561 = vmul.f32 %v1560, 1.442695
    %v1562 = vpow.pop %v1561
    %v1563 = vadd.f32 %v1562, 1.0
    %v1564 = vrcp.pop %v1563
    %v1565 = vmul.f32 1.0, %v1564
    %v1566 = vtanh.pop %v1534
    %v1567 = vsub.f32 0.0, %v1534
    %v1568 = vmul.f32 %v1567, 1.442695
    %v1569 = vpow.pop %v1568
    %v1570 = vadd.f32 %v1569, 1.0
    %v1571 = vrcp.pop %v1570
    %v1572 = vmul.f32 1.0, %v1571
    %v1574 = vrot.slane %v1423, 2
    %v1576 = vmul.f32 %v1565, %v1574
    %v1577 = vmul.f32 %v1565, %v1566
    %1579 = vrot.lane.b32.xlu0 %v1577, 64
    %v1580 = vpop.permute.xlu0 %1579
    %v1582 = vadd.f32 %v1576, %v1580
    %v1583 = vtanh.pop %v1582
    %v1584 = vmul.f32 %v1572, %v1583
    %1586 = vrot.lane.b32.xlu0 %v1559, 64
    %v1587 = vpop.permute.xlu0 %1586
    %1589 = vst.msk [vmem:[#allocation2 + $0x8] sm:$0xc] %vm950, %v1587
    %1590 = vst.msk [vmem:[#allocation2] sm:$0x30] %vm952, %v1584
    %v1592 = vrot.slane %v1584, 2
    %v1594 = vsel %vm795, %v1587, %v1592
    %v1595 = vpack.c.bf16 %v1594, %v1594
    %v1597 = vrot.slane %v1595, 1
    %1599 = vmatprep.subr.bf16.mxu0 %v585
    %1600 = vmatpush1.bf16.msra.mxu0 %v584
    %1601 = vmatprep.subr.bf16.mxu0 %v589
    %1602 = vmatpush1.bf16.msra.mxu0 %v588
    %1603 = vmatprep.subr.bf16.mxu0 %v593
    %1604 = vmatpush1.bf16.msra.mxu0 %v592
    %1605 = vmatprep.subr.bf16.mxu0 %v597
    %1606 = vmatpush1.bf16.msra.mxu0 %v596
    %1607 = vmatprep.subr.bf16.mxu0 %v601
    %1608 = vmatpush1.bf16.msra.mxu0 %v600
    %1609 = vmatprep.subr.bf16.mxu0 %v605
    %1610 = vmatpush1.bf16.msra.mxu0 %v604
    %1611 = vmatprep.subr.bf16.mxu0 %v609
    %1612 = vmatpush1.bf16.msra.mxu0 %v608
    %1613 = vmatprep.subr.bf16.mxu0 %v613
    %1614 = vmatpush1.bf16.msra.mxu0 %v612
    %1615 = vmatprep.subr.bf16.mxu0 0
    %1616 = vmatpush1.bf16.msra.mxu0 0
    %1617 = vmatprep.subr.bf16.mxu0 0
    %1618 = vmatpush1.bf16.msra.mxu0 0
    %1619 = vmatprep.subr.bf16.mxu0 0
    %1620 = vmatpush1.bf16.msra.mxu0 0
    %1621 = vmatprep.subr.bf16.mxu0 0
    %1622 = vmatpush1.bf16.msra.mxu0 0
    %1623 = vmatprep.subr.bf16.mxu0 0
    %1624 = vmatpush1.bf16.msra.mxu0 0
    %1625 = vmatprep.subr.bf16.mxu0 0
    %1626 = vmatpush1.bf16.msra.mxu0 0
    %1627 = vmatprep.subr.bf16.mxu0 0
    %1628 = vmatpush1.bf16.msra.mxu0 0
    %1629 = vmatprep.subr.bf16.mxu0 0
    %1630 = vmatpush1.bf16.msra.mxu0 0
    %1631 = vmatprep.mubr.bf16.mxu0 0
    %1632 = vmatmul.mubr.bf16.gmra.mrb[0].mxu0 %v1597
    %v1633 = vpop.f32.mrb[0].mxu0
    %v1634 = vadd.f32 0.0, %v1633
    %v1635 = vpop.f32.mrb[0].mxu0
    %v1636 = vadd.f32 0.0, %v1635
    %v1637 = vpop.f32.mrb[0].mxu0
    %v1638 = vpop.f32.mrb[0].mxu0
    %1639 = vdwg.mxu0
    %1640 = vmatprep.subr.bf16.mxu0 %v587
    %1641 = vmatpush1.bf16.msra.mxu0 %v586
    %1642 = vmatprep.subr.bf16.mxu0 %v591
    %1643 = vmatpush1.bf16.msra.mxu0 %v590
    %1644 = vmatprep.subr.bf16.mxu0 %v595
    %1645 = vmatpush1.bf16.msra.mxu0 %v594
    %1646 = vmatprep.subr.bf16.mxu0 %v599
    %1647 = vmatpush1.bf16.msra.mxu0 %v598
    %1648 = vmatprep.subr.bf16.mxu0 %v603
    %1649 = vmatpush1.bf16.msra.mxu0 %v602
    %1650 = vmatprep.subr.bf16.mxu0 %v607
    %1651 = vmatpush1.bf16.msra.mxu0 %v606
    %1652 = vmatprep.subr.bf16.mxu0 %v611
    %1653 = vmatpush1.bf16.msra.mxu0 %v610
    %1654 = vmatprep.subr.bf16.mxu0 %v615
    %1655 = vmatpush1.bf16.msra.mxu0 %v614
    %1656 = vmatprep.subr.bf16.mxu0 0
    %1657 = vmatpush1.bf16.msra.mxu0 0
    %1658 = vmatprep.subr.bf16.mxu0 0
    %1659 = vmatpush1.bf16.msra.mxu0 0
    %1660 = vmatprep.subr.bf16.mxu0 0
    %1661 = vmatpush1.bf16.msra.mxu0 0
    %1662 = vmatprep.subr.bf16.mxu0 0
    %1663 = vmatpush1.bf16.msra.mxu0 0
    %1664 = vmatprep.subr.bf16.mxu0 0
    %1665 = vmatpush1.bf16.msra.mxu0 0
    %1666 = vmatprep.subr.bf16.mxu0 0
    %1667 = vmatpush1.bf16.msra.mxu0 0
    %1668 = vmatprep.subr.bf16.mxu0 0
    %1669 = vmatpush1.bf16.msra.mxu0 0
    %1670 = vmatprep.subr.bf16.mxu0 0
    %1671 = vmatpush1.bf16.msra.mxu0 0
    %1672 = vmatprep.mubr.bf16.mxu0 0
    %1673 = vmatmul.mubr.bf16.gmra.mrb[0].mxu0 %v1597
    %v1674 = vpop.f32.mrb[0].mxu0
    %v1675 = vadd.f32 0.0, %v1674
    %v1676 = vpop.f32.mrb[0].mxu0
    %v1677 = vadd.f32 0.0, %v1676
    %v1678 = vpop.f32.mrb[0].mxu0
    %v1679 = vpop.f32.mrb[0].mxu0
    %1680 = vdwg.mxu0
    %v1683 = vrot.slane %v1634, 4
    %v1684 = vrot.slane %v1636, 4
    %v1687 = vadd.f32 %v408, %v1683
    %v1688 = vadd.f32 %v410, %v1684
    %v1691 = vrot.slane %v1675, 6
    %v1692 = vrot.slane %v1677, 6
    %v1695 = vadd.f32 %v447, %v1691
    %v1696 = vadd.f32 %v449, %v1692
    %v1697 = vsub.f32 0.0, %v1687
    %v1698 = vmul.f32 %v1697, 1.442695
    %v1699 = vpow.pop %v1698
    %v1700 = vadd.f32 %v1699, 1.0
    %v1701 = vrcp.pop %v1700
    %v1702 = vmul.f32 1.0, %v1701
    %v1703 = vtanh.pop %v1688
    %v1704 = vsub.f32 0.0, %v1688
    %v1705 = vmul.f32 %v1704, 1.442695
    %v1706 = vpow.pop %v1705
    %v1707 = vadd.f32 %v1706, 1.0
    %v1708 = vrcp.pop %v1707
    %v1709 = vmul.f32 1.0, %v1708
    %v1711 = vrot.slane %v1557, 6
    %v1713 = vmul.f32 %v1702, %v1711
    %v1714 = vmul.f32 %v1702, %v1703
    %1716 = vrot.lane.b32.xlu0 %v1714, 64
    %v1717 = vpop.permute.xlu0 %1716
    %v1719 = vadd.f32 %v1713, %v1717
    %v1720 = vtanh.pop %v1719
    %v1721 = vmul.f32 %v1709, %v1720
    %v1722 = vsub.f32 0.0, %v1695
    %v1723 = vmul.f32 %v1722, 1.442695
    %v1724 = vpow.pop %v1723
    %v1725 = vadd.f32 %v1724, 1.0
    %v1726 = vrcp.pop %v1725
    %v1727 = vmul.f32 1.0, %v1726
    %v1728 = vtanh.pop %v1696
    %v1729 = vsub.f32 0.0, %v1696
    %v1730 = vmul.f32 %v1729, 1.442695
    %v1731 = vpow.pop %v1730
    %v1732 = vadd.f32 %v1731, 1.0
    %v1733 = vrcp.pop %v1732
    %v1734 = vmul.f32 1.0, %v1733
    %v1736 = vrot.slane %v1582, 2
    %v1738 = vmul.f32 %v1727, %v1736
    %v1739 = vmul.f32 %v1727, %v1728
    %1741 = vrot.lane.b32.xlu0 %v1739, 64
    %v1742 = vpop.permute.xlu0 %1741
    %v1744 = vadd.f32 %v1738, %v1742
    %v1745 = vtanh.pop %v1744
    %v1746 = vmul.f32 %v1734, %v1745
    %1748 = vrot.lane.b32.xlu0 %v1721, 64
    %v1749 = vpop.permute.xlu0 %1748
    %1751 = vst.msk [vmem:[#allocation2 + $0x8] sm:$0x30] %vm1114, %v1749
    %1752 = vst.msk [vmem:[#allocation2] sm:$0xc] %vm1116, %v1746
    %v1754 = vrot.slane %v1746, 6
    %v1756 = vsel %vm795, %v1749, %v1754
    %v1757 = vpack.c.bf16 %v1756, %v1756
    %v1759 = vrot.slane %v1757, 2
    %1761 = vmatprep.subr.bf16.mxu0 %v585
    %1762 = vmatpush1.bf16.msra.mxu0 %v584
    %1763 = vmatprep.subr.bf16.mxu0 %v589
    %1764 = vmatpush1.bf16.msra.mxu0 %v588
    %1765 = vmatprep.subr.bf16.mxu0 %v593
    %1766 = vmatpush1.bf16.msra.mxu0 %v592
    %1767 = vmatprep.subr.bf16.mxu0 %v597
    %1768 = vmatpush1.bf16.msra.mxu0 %v596
    %1769 = vmatprep.subr.bf16.mxu0 %v601
    %1770 = vmatpush1.bf16.msra.mxu0 %v600
    %1771 = vmatprep.subr.bf16.mxu0 %v605
    %1772 = vmatpush1.bf16.msra.mxu0 %v604
    %1773 = vmatprep.subr.bf16.mxu0 %v609
    %1774 = vmatpush1.bf16.msra.mxu0 %v608
    %1775 = vmatprep.subr.bf16.mxu0 %v613
    %1776 = vmatpush1.bf16.msra.mxu0 %v612
    %1777 = vmatprep.subr.bf16.mxu0 0
    %1778 = vmatpush1.bf16.msra.mxu0 0
    %1779 = vmatprep.subr.bf16.mxu0 0
    %1780 = vmatpush1.bf16.msra.mxu0 0
    %1781 = vmatprep.subr.bf16.mxu0 0
    %1782 = vmatpush1.bf16.msra.mxu0 0
    %1783 = vmatprep.subr.bf16.mxu0 0
    %1784 = vmatpush1.bf16.msra.mxu0 0
    %1785 = vmatprep.subr.bf16.mxu0 0
    %1786 = vmatpush1.bf16.msra.mxu0 0
    %1787 = vmatprep.subr.bf16.mxu0 0
    %1788 = vmatpush1.bf16.msra.mxu0 0
    %1789 = vmatprep.subr.bf16.mxu0 0
    %1790 = vmatpush1.bf16.msra.mxu0 0
    %1791 = vmatprep.subr.bf16.mxu0 0
    %1792 = vmatpush1.bf16.msra.mxu0 0
    %1793 = vmatprep.mubr.bf16.mxu0 0
    %1794 = vmatmul.mubr.bf16.gmra.mrb[0].mxu0 %v1759
    %v1795 = vpop.f32.mrb[0].mxu0
    %v1796 = vadd.f32 0.0, %v1795
    %v1797 = vpop.f32.mrb[0].mxu0
    %v1798 = vadd.f32 0.0, %v1797
    %v1799 = vpop.f32.mrb[0].mxu0
    %v1800 = vpop.f32.mrb[0].mxu0
    %1801 = vdwg.mxu0
    %1802 = vmatprep.subr.bf16.mxu0 %v587
    %1803 = vmatpush1.bf16.msra.mxu0 %v586
    %1804 = vmatprep.subr.bf16.mxu0 %v591
    %1805 = vmatpush1.bf16.msra.mxu0 %v590
    %1806 = vmatprep.subr.bf16.mxu0 %v595
    %1807 = vmatpush1.bf16.msra.mxu0 %v594
    %1808 = vmatprep.subr.bf16.mxu0 %v599
    %1809 = vmatpush1.bf16.msra.mxu0 %v598
    %1810 = vmatprep.subr.bf16.mxu0 %v603
    %1811 = vmatpush1.bf16.msra.mxu0 %v602
    %1812 = vmatprep.subr.bf16.mxu0 %v607
    %1813 = vmatpush1.bf16.msra.mxu0 %v606
    %1814 = vmatprep.subr.bf16.mxu0 %v611
    %1815 = vmatpush1.bf16.msra.mxu0 %v610
    %1816 = vmatprep.subr.bf16.mxu0 %v615
    %1817 = vmatpush1.bf16.msra.mxu0 %v614
    %1818 = vmatprep.subr.bf16.mxu0 0
    %1819 = vmatpush1.bf16.msra.mxu0 0
    %1820 = vmatprep.subr.bf16.mxu0 0
    %1821 = vmatpush1.bf16.msra.mxu0 0
    %1822 = vmatprep.subr.bf16.mxu0 0
    %1823 = vmatpush1.bf16.msra.mxu0 0
    %1824 = vmatprep.subr.bf16.mxu0 0
    %1825 = vmatpush1.bf16.msra.mxu0 0
    %1826 = vmatprep.subr.bf16.mxu0 0
    %1827 = vmatpush1.bf16.msra.mxu0 0
    %1828 = vmatprep.subr.bf16.mxu0 0
    %1829 = vmatpush1.bf16.msra.mxu0 0
    %1830 = vmatprep.subr.bf16.mxu0 0
    %1831 = vmatpush1.bf16.msra.mxu0 0
    %1832 = vmatprep.subr.bf16.mxu0 0
    %1833 = vmatpush1.bf16.msra.mxu0 0
    %1834 = vmatprep.mubr.bf16.mxu0 0
    %1835 = vmatmul.mubr.bf16.gmra.mrb[0].mxu0 %v1759
    %v1836 = vpop.f32.mrb[0].mxu0
    %v1837 = vadd.f32 0.0, %v1836
    %v1838 = vpop.f32.mrb[0].mxu0
    %v1839 = vadd.f32 0.0, %v1838
    %v1840 = vpop.f32.mrb[0].mxu0
    %v1841 = vpop.f32.mrb[0].mxu0
    %1842 = vdwg.mxu0
    %v1845 = vrot.slane %v1796, 2
    %v1846 = vrot.slane %v1798, 2
    %v1849 = vadd.f32 %v408, %v1845
    %v1850 = vadd.f32 %v410, %v1846
    %v1851 = vadd.f32 %v447, %v1837
    %v1852 = vadd.f32 %v449, %v1839
    %v1853 = vsub.f32 0.0, %v1849
    %v1854 = vmul.f32 %v1853, 1.442695
    %v1855 = vpow.pop %v1854
    %v1856 = vadd.f32 %v1855, 1.0
    %v1857 = vrcp.pop %v1856
    %v1858 = vmul.f32 1.0, %v1857
    %v1859 = vtanh.pop %v1850
    %v1860 = vsub.f32 0.0, %v1850
    %v1861 = vmul.f32 %v1860, 1.442695
    %v1862 = vpow.pop %v1861
    %v1863 = vadd.f32 %v1862, 1.0
    %v1864 = vrcp.pop %v1863
    %v1865 = vmul.f32 1.0, %v1864
    %v1867 = vrot.slane %v1719, 6
    %v1869 = vmul.f32 %v1858, %v1867
    %v1870 = vmul.f32 %v1858, %v1859
    %1872 = vrot.lane.b32.xlu0 %v1870, 64
    %v1873 = vpop.permute.xlu0 %1872
    %v1875 = vadd.f32 %v1869, %v1873
    %v1876 = vtanh.pop %v1875
    %v1877 = vmul.f32 %v1865, %v1876
    %v1878 = vsub.f32 0.0, %v1851
    %v1879 = vmul.f32 %v1878, 1.442695
    %v1880 = vpow.pop %v1879
    %v1881 = vadd.f32 %v1880, 1.0
    %v1882 = vrcp.pop %v1881
    %v1883 = vmul.f32 1.0, %v1882
    %v1884 = vtanh.pop %v1852
    %v1885 = vsub.f32 0.0, %v1852
    %v1886 = vmul.f32 %v1885, 1.442695
    %v1887 = vpow.pop %v1886
    %v1888 = vadd.f32 %v1887, 1.0
    %v1889 = vrcp.pop %v1888
    %v1890 = vmul.f32 1.0, %v1889
    %v1892 = vrot.slane %v1744, 2
    %v1894 = vmul.f32 %v1883, %v1892
    %v1895 = vmul.f32 %v1883, %v1884
    %1897 = vrot.lane.b32.xlu0 %v1895, 64
    %v1898 = vpop.permute.xlu0 %1897
    %v1900 = vadd.f32 %v1894, %v1898
    %v1901 = vtanh.pop %v1900
    %v1902 = vmul.f32 %v1890, %v1901
    %1904 = vrot.lane.b32.xlu0 %v1877, 64
    %v1905 = vpop.permute.xlu0 %1904
    %1907 = vst.msk [vmem:[#allocation2 + $0x8] sm:$0xc0] %vm1272, %v1905
    %1908 = vst.msk [vmem:[#allocation2] sm:$0x3] %vm1274, %v1902
    %v1909 = vld [vmem:[#allocation2] sm:$0xff]
    %v1910 = vld [vmem:[#allocation2 + $0x8] sm:$0xff]
    %v1911 = vpack.c.bf16 %v1910, %v1909
    %v1912 = vld [vmem:[#allocation11] sm:$0xf]
    %v1913 = vld [vmem:[#allocation11 + $0x4] sm:$0xf]
    %v1914 = vld [vmem:[#allocation11 + $0x8] sm:$0xf]
    %v1915 = vld [vmem:[#allocation11 + $0xc] sm:$0xf]
    %v1916 = vld [vmem:[#allocation11 + $0x10] sm:$0xf]
    %v1917 = vld [vmem:[#allocation11 + $0x14] sm:$0xf]
    %v1918 = vld [vmem:[#allocation11 + $0x18] sm:$0xf]
    %v1919 = vld [vmem:[#allocation11 + $0x1c] sm:$0xf]
    %v1920 = vld [vmem:[#allocation11 + $0x20] sm:$0xf]
    %v1921 = vld [vmem:[#allocation11 + $0x24] sm:$0xf]
    %v1922 = vld [vmem:[#allocation11 + $0x28] sm:$0xf]
    %v1923 = vld [vmem:[#allocation11 + $0x2c] sm:$0xf]
    %v1924 = vld [vmem:[#allocation11 + $0x30] sm:$0xf]
    %v1925 = vld [vmem:[#allocation11 + $0x34] sm:$0xf]
    %v1926 = vld [vmem:[#allocation11 + $0x38] sm:$0xf]
    %v1927 = vld [vmem:[#allocation11 + $0x3c] sm:$0xf]
    %v1928 = vld [vmem:[%s7] sm:$0x1]
    %v1930 = vlaneseq
    %v1931 = vshrl.u32 %v1930, 7
    %v1932 = vsub.s32 0, %v1931
    %v1933 = vrot.slane %v1928, %v1932
    %v1951 = vunpack.c.l.b16 %v1912
    %v1952 = vunpack.c.l.b16 %v1913
    %v1953 = vunpack.c.l.b16 %v1914
    %v1954 = vunpack.c.l.b16 %v1915
    %v1955 = vunpack.c.l.b16 %v1916
    %v1956 = vunpack.c.l.b16 %v1917
    %v1957 = vunpack.c.l.b16 %v1918
    %v1958 = vunpack.c.l.b16 %v1919
    %v1959 = vunpack.c.l.b16 %v1920
    %v1960 = vunpack.c.l.b16 %v1921
    %v1961 = vunpack.c.l.b16 %v1922
    %v1962 = vunpack.c.l.b16 %v1923
    %v1963 = vunpack.c.l.b16 %v1924
    %v1964 = vunpack.c.l.b16 %v1925
    %v1965 = vunpack.c.l.b16 %v1926
    %v1966 = vunpack.c.l.b16 %v1927
    %v1967 = vpack.c.b16 %v1952, %v1951
    %v1968 = vpack.c.b16 %v1954, %v1953
    %v1969 = vpack.c.b16 %v1956, %v1955
    %v1970 = vpack.c.b16 %v1958, %v1957
    %v1971 = vpack.c.b16 %v1960, %v1959
    %v1972 = vpack.c.b16 %v1962, %v1961
    %v1973 = vpack.c.b16 %v1964, %v1963
    %v1974 = vpack.c.b16 %v1966, %v1965
    %1983 = vmatprep.subr.bf16.mxu0 0
    %1984 = vmatpush1.bf16.msra.mxu0 %v1967
    %1985 = vmatprep.subr.bf16.mxu0 0
    %1986 = vmatpush1.bf16.msra.mxu0 %v1968
    %1987 = vmatprep.subr.bf16.mxu0 0
    %1988 = vmatpush1.bf16.msra.mxu0 %v1969
    %1989 = vmatprep.subr.bf16.mxu0 0
    %1990 = vmatpush1.bf16.msra.mxu0 %v1970
    %1991 = vmatprep.subr.bf16.mxu0 0
    %1992 = vmatpush1.bf16.msra.mxu0 %v1971
    %1993 = vmatprep.subr.bf16.mxu0 0
    %1994 = vmatpush1.bf16.msra.mxu0 %v1972
    %1995 = vmatprep.subr.bf16.mxu0 0
    %1996 = vmatpush1.bf16.msra.mxu0 %v1973
    %1997 = vmatprep.subr.bf16.mxu0 0
    %1998 = vmatpush1.bf16.msra.mxu0 %v1974
    %1999 = vmatprep.subr.bf16.mxu0 0
    %2000 = vmatpush1.bf16.msra.mxu0 0
    %2001 = vmatprep.subr.bf16.mxu0 0
    %2002 = vmatpush1.bf16.msra.mxu0 0
    %2003 = vmatprep.subr.bf16.mxu0 0
    %2004 = vmatpush1.bf16.msra.mxu0 0
    %2005 = vmatprep.subr.bf16.mxu0 0
    %2006 = vmatpush1.bf16.msra.mxu0 0
    %2007 = vmatprep.subr.bf16.mxu0 0
    %2008 = vmatpush1.bf16.msra.mxu0 0
    %2009 = vmatprep.subr.bf16.mxu0 0
    %2010 = vmatpush1.bf16.msra.mxu0 0
    %2011 = vmatprep.subr.bf16.mxu0 0
    %2012 = vmatpush1.bf16.msra.mxu0 0
    %2013 = vmatprep.subr.bf16.mxu0 0
    %2014 = vmatpush1.bf16.msra.mxu0 0
    %2015 = vmatprep.mubr.bf16.mxu0 0
    %2016 = vmatmul.mubr.bf16.gmra.mrb[0].mxu0 %v1911
    %v2017 = vpop.f32.mrb[0].mxu0
    %v2018 = vadd.f32 %v1933, %v2017
    %v2019 = vpop.f32.mrb[0].mxu0
    %v2020 = vpop.f32.mrb[0].mxu0
    %v2021 = vadd.f32 %v1933, %v2020
    %v2022 = vpop.f32.mrb[0].mxu0
    %2023 = vdwg.mxu0
    %2024 = vst [vmem:[#allocation12] sm:$0xff] %v2018
    %2025 = vst [vmem:[#allocation12 + $0x8] sm:$0xff] %v2021
    %v2026 = vld [vmem:[%s10] sm:$0xff]
    %v2027 = vld [vmem:[%s8] sm:$0x1]
    %v2029 = vlaneseq
    %v2030 = vshrl.u32 %v2029, 7
    %v2031 = vsub.s32 0, %v2030
    %v2032 = vrot.slane %v2027, %v2031
    %v2034 = vadd.f32 %v2032, %v2018
    %2035 = vst [vmem:[#allocation15] sm:$0x3] 0
    %2037 = vset.pattern.permute.xlu0 0
    %2038 = vperm.xlu0 %2037, %v2034
    %v2039 = vpop.permute.xlu0 %2038
    %v2041 = vlaneseq
    %v2042 = vshrl.u32 %v2041, 7
    %v2043 = vsub.s32 0, %v2042
    %v2044 = vrot.slane %v2026, %v2043
    %v2045 = vadd.f32 %v2039, %v2044
    %2046 = vset.pattern.permute.xlu0 1
    %2047 = vperm.xlu0 %2046, %v2034
    %v2048 = vpop.permute.xlu0 %2047
    %v2050 = vlaneseq
    %v2051 = vshrl.u32 %v2050, 7
    %v2052 = vsub.s32 1, %v2051
    %v2053 = vrot.slane %v2026, %v2052
    %v2054 = vadd.f32 %v2048, %v2053
    %vm2055 = vcmp.gt.f32.partialorder %v2054, %v2045
    %v2056 = vsel %vm2055, %v2054, %v2045
    %v2057 = vsel %vm2055, 1, 0
    %2058 = vset.pattern.permute.xlu0 2
    %2059 = vperm.xlu0 %2058, %v2034
    %v2060 = vpop.permute.xlu0 %2059
    %v2062 = vlaneseq
    %v2063 = vshrl.u32 %v2062, 7
    %v2064 = vsub.s32 2, %v2063
    %v2065 = vrot.slane %v2026, %v2064
    %v2066 = vadd.f32 %v2060, %v2065
    %vm2067 = vcmp.gt.f32.partialorder %v2066, %v2056
    %v2068 = vsel %vm2067, %v2066, %v2056
    %v2069 = vsel %vm2067, 2, %v2057
    %2070 = vset.pattern.permute.xlu0 3
    %2071 = vperm.xlu0 %2070, %v2034
    %v2072 = vpop.permute.xlu0 %2071
    %v2074 = vlaneseq
    %v2075 = vshrl.u32 %v2074, 7
    %v2076 = vsub.s32 3, %v2075
    %v2077 = vrot.slane %v2026, %v2076
    %v2078 = vadd.f32 %v2072, %v2077
    %vm2079 = vcmp.gt.f32.partialorder %v2078, %v2068
    %v2080 = vsel %vm2079, %v2078, %v2068
    %v2081 = vsel %vm2079, 3, %v2069
    %2082 = vset.pattern.permute.xlu0 4
    %2083 = vperm.xlu0 %2082, %v2034
    %v2084 = vpop.permute.xlu0 %2083
    %v2086 = vlaneseq
    %v2087 = vshrl.u32 %v2086, 7
    %v2088 = vsub.s32 4, %v2087
    %v2089 = vrot.slane %v2026, %v2088
    %v2090 = vadd.f32 %v2084, %v2089
    %vm2091 = vcmp.gt.f32.partialorder %v2090, %v2080
    %v2092 = vsel %vm2091, %v2090, %v2080
    %v2093 = vsel %vm2091, 4, %v2081
    %2094 = vset.pattern.permute.xlu0 5
    %2095 = vperm.xlu0 %2094, %v2034
    %v2096 = vpop.permute.xlu0 %2095
    %v2098 = vlaneseq
    %v2099 = vshrl.u32 %v2098, 7
    %v2100 = vsub.s32 5, %v2099
    %v2101 = vrot.slane %v2026, %v2100
    %v2102 = vadd.f32 %v2096, %v2101
    %vm2103 = vcmp.gt.f32.partialorder %v2102, %v2092
    %v2104 = vsel %vm2103, %v2102, %v2092
    %v2105 = vsel %vm2103, 5, %v2093
    %2106 = vset.pattern.permute.xlu0 6
    %2107 = vperm.xlu0 %2106, %v2034
    %v2108 = vpop.permute.xlu0 %2107
    %v2110 = vlaneseq
    %v2111 = vshrl.u32 %v2110, 7
    %v2112 = vsub.s32 6, %v2111
    %v2113 = vrot.slane %v2026, %v2112
    %v2114 = vadd.f32 %v2108, %v2113
    %vm2115 = vcmp.gt.f32.partialorder %v2114, %v2104
    %v2116 = vsel %vm2115, %v2114, %v2104
    %v2117 = vsel %vm2115, 6, %v2105
    %2118 = vset.pattern.permute.xlu0 7
    %2119 = vperm.xlu0 %2118, %v2034
    %v2120 = vpop.permute.xlu0 %2119
    %v2122 = vlaneseq
    %v2123 = vshrl.u32 %v2122, 7
    %v2124 = vsub.s32 7, %v2123
    %v2125 = vrot.slane %v2026, %v2124
    %v2126 = vadd.f32 %v2120, %v2125
    %vm2127 = vcmp.gt.f32.partialorder %v2126, %v2116
    %v2128 = vsel %vm2127, %v2126, %v2116
    %v2129 = vsel %vm2127, 7, %v2117
    %2130 = vst [vmem:[#allocation15 + $0x2] sm:$0x3] %v2129
    %v2131 = vld [vmem:[%s11 + $0x2] sm:$0x3]
    %vm2132 = vcmp.gt.f32.partialorder %v2131, 0.0
    %v2134 = vrot.slane %v2018, 2
    %v2136 = vadd.f32 %v2128, %v2134
    %v2137 = vsel %vm2132, 1, 0
    %2138 = vset.pattern.permute.xlu0 0
    %2139 = vperm.xlu0 %2138, %v2137
    %v2140 = vpop.permute.xlu0 %2139
    %vm2141 = vcmp.eq.s32.totalorder %v2140, 1
    %v2142 = vsel %vm2141, %v2136, %v2034
    %2144 = vset.pattern.permute.xlu0 0
    %2145 = vperm.xlu0 %2144, %v2142
    %v2146 = vpop.permute.xlu0 %2145
    %v2148 = vadd.f32 %v2146, %v2044
    %2149 = vset.pattern.permute.xlu0 1
    %2150 = vperm.xlu0 %2149, %v2142
    %v2151 = vpop.permute.xlu0 %2150
    %v2153 = vadd.f32 %v2151, %v2053
    %vm2154 = vcmp.gt.f32.partialorder %v2153, %v2148
    %v2155 = vsel %vm2154, %v2153, %v2148
    %v2156 = vsel %vm2154, 1, 0
    %2157 = vset.pattern.permute.xlu0 2
    %2158 = vperm.xlu0 %2157, %v2142
    %v2159 = vpop.permute.xlu0 %2158
    %v2161 = vadd.f32 %v2159, %v2065
    %vm2162 = vcmp.gt.f32.partialorder %v2161, %v2155
    %v2163 = vsel %vm2162, %v2161, %v2155
    %v2164 = vsel %vm2162, 2, %v2156
    %2165 = vset.pattern.permute.xlu0 3
    %2166 = vperm.xlu0 %2165, %v2142
    %v2167 = vpop.permute.xlu0 %2166
    %v2169 = vadd.f32 %v2167, %v2077
    %vm2170 = vcmp.gt.f32.partialorder %v2169, %v2163
    %v2171 = vsel %vm2170, %v2169, %v2163
    %v2172 = vsel %vm2170, 3, %v2164
    %2173 = vset.pattern.permute.xlu0 4
    %2174 = vperm.xlu0 %2173, %v2142
    %v2175 = vpop.permute.xlu0 %2174
    %v2177 = vadd.f32 %v2175, %v2089
    %vm2178 = vcmp.gt.f32.partialorder %v2177, %v2171
    %v2179 = vsel %vm2178, %v2177, %v2171
    %v2180 = vsel %vm2178, 4, %v2172
    %2181 = vset.pattern.permute.xlu0 5
    %2182 = vperm.xlu0 %2181, %v2142
    %v2183 = vpop.permute.xlu0 %2182
    %v2185 = vadd.f32 %v2183, %v2101
    %vm2186 = vcmp.gt.f32.partialorder %v2185, %v2179
    %v2187 = vsel %vm2186, %v2185, %v2179
    %v2188 = vsel %vm2186, 5, %v2180
    %2189 = vset.pattern.permute.xlu0 6
    %2190 = vperm.xlu0 %2189, %v2142
    %v2191 = vpop.permute.xlu0 %2190
    %v2193 = vadd.f32 %v2191, %v2113
    %vm2194 = vcmp.gt.f32.partialorder %v2193, %v2187
    %v2195 = vsel %vm2194, %v2193, %v2187
    %v2196 = vsel %vm2194, 6, %v2188
    %2197 = vset.pattern.permute.xlu0 7
    %2198 = vperm.xlu0 %2197, %v2142
    %v2199 = vpop.permute.xlu0 %2198
    %v2201 = vadd.f32 %v2199, %v2125
    %vm2202 = vcmp.gt.f32.partialorder %v2201, %v2195
    %v2203 = vsel %vm2202, %v2201, %v2195
    %v2204 = vsel %vm2202, 7, %v2196
    %2205 = vst [vmem:[#allocation15 + $0x4] sm:$0x3] %v2204
    %v2206 = vld [vmem:[%s11 + $0x4] sm:$0x3]
    %vm2207 = vcmp.gt.f32.partialorder %v2206, 0.0
    %v2208 = vrot.slane %v2018, 4
    %v2210 = vadd.f32 %v2203, %v2208
    %v2211 = vsel %vm2207, 1, 0
    %2212 = vset.pattern.permute.xlu0 0
    %2213 = vperm.xlu0 %2212, %v2211
    %v2214 = vpop.permute.xlu0 %2213
    %vm2215 = vcmp.eq.s32.totalorder %v2214, 1
    %v2216 = vsel %vm2215, %v2210, %v2142
    %2218 = vset.pattern.permute.xlu0 0
    %2219 = vperm.xlu0 %2218, %v2216
    %v2220 = vpop.permute.xlu0 %2219
    %v2222 = vadd.f32 %v2220, %v2044
    %2223 = vset.pattern.permute.xlu0 1
    %2224 = vperm.xlu0 %2223, %v2216
    %v2225 = vpop.permute.xlu0 %2224
    %v2227 = vadd.f32 %v2225, %v2053
    %vm2228 = vcmp.gt.f32.partialorder %v2227, %v2222
    %v2229 = vsel %vm2228, %v2227, %v2222
    %v2230 = vsel %vm2228, 1, 0
    %2231 = vset.pattern.permute.xlu0 2
    %2232 = vperm.xlu0 %2231, %v2216
    %v2233 = vpop.permute.xlu0 %2232
    %v2235 = vadd.f32 %v2233, %v2065
    %vm2236 = vcmp.gt.f32.partialorder %v2235, %v2229
    %v2237 = vsel %vm2236, %v2235, %v2229
    %v2238 = vsel %vm2236, 2, %v2230
    %2239 = vset.pattern.permute.xlu0 3
    %2240 = vperm.xlu0 %2239, %v2216
    %v2241 = vpop.permute.xlu0 %2240
    %v2243 = vadd.f32 %v2241, %v2077
    %vm2244 = vcmp.gt.f32.partialorder %v2243, %v2237
    %v2245 = vsel %vm2244, %v2243, %v2237
    %v2246 = vsel %vm2244, 3, %v2238
    %2247 = vset.pattern.permute.xlu0 4
    %2248 = vperm.xlu0 %2247, %v2216
    %v2249 = vpop.permute.xlu0 %2248
    %v2251 = vadd.f32 %v2249, %v2089
    %vm2252 = vcmp.gt.f32.partialorder %v2251, %v2245
    %v2253 = vsel %vm2252, %v2251, %v2245
    %v2254 = vsel %vm2252, 4, %v2246
    %2255 = vset.pattern.permute.xlu0 5
    %2256 = vperm.xlu0 %2255, %v2216
    %v2257 = vpop.permute.xlu0 %2256
    %v2259 = vadd.f32 %v2257, %v2101
    %vm2260 = vcmp.gt.f32.partialorder %v2259, %v2253
    %v2261 = vsel %vm2260, %v2259, %v2253
    %v2262 = vsel %vm2260, 5, %v2254
    %2263 = vset.pattern.permute.xlu0 6
    %2264 = vperm.xlu0 %2263, %v2216
    %v2265 = vpop.permute.xlu0 %2264
    %v2267 = vadd.f32 %v2265, %v2113
    %vm2268 = vcmp.gt.f32.partialorder %v2267, %v2261
    %v2269 = vsel %vm2268, %v2267, %v2261
    %v2270 = vsel %vm2268, 6, %v2262
    %2271 = vset.pattern.permute.xlu0 7
    %2272 = vperm.xlu0 %2271, %v2216
    %v2273 = vpop.permute.xlu0 %2272
    %v2275 = vadd.f32 %v2273, %v2125
    %vm2276 = vcmp.gt.f32.partialorder %v2275, %v2269
    %v2277 = vsel %vm2276, %v2275, %v2269
    %v2278 = vsel %vm2276, 7, %v2270
    %2279 = vst [vmem:[#allocation15 + $0x6] sm:$0x3] %v2278
    %v2280 = vld [vmem:[%s11 + $0x6] sm:$0x3]
    %vm2281 = vcmp.gt.f32.partialorder %v2280, 0.0
    %v2282 = vrot.slane %v2018, 6
    %v2284 = vadd.f32 %v2277, %v2282
    %v2285 = vsel %vm2281, 1, 0
    %2286 = vset.pattern.permute.xlu0 0
    %2287 = vperm.xlu0 %2286, %v2285
    %v2288 = vpop.permute.xlu0 %2287
    %vm2289 = vcmp.eq.s32.totalorder %v2288, 1
    %v2290 = vsel %vm2289, %v2284, %v2216
    %2292 = vset.pattern.permute.xlu0 0
    %2293 = vperm.xlu0 %2292, %v2290
    %v2294 = vpop.permute.xlu0 %2293
    %v2296 = vadd.f32 %v2294, %v2044
    %2297 = vset.pattern.permute.xlu0 1
    %2298 = vperm.xlu0 %2297, %v2290
    %v2299 = vpop.permute.xlu0 %2298
    %v2301 = vadd.f32 %v2299, %v2053
    %vm2302 = vcmp.gt.f32.partialorder %v2301, %v2296
    %v2303 = vsel %vm2302, %v2301, %v2296
    %v2304 = vsel %vm2302, 1, 0
    %2305 = vset.pattern.permute.xlu0 2
    %2306 = vperm.xlu0 %2305, %v2290
    %v2307 = vpop.permute.xlu0 %2306
    %v2309 = vadd.f32 %v2307, %v2065
    %vm2310 = vcmp.gt.f32.partialorder %v2309, %v2303
    %v2311 = vsel %vm2310, %v2309, %v2303
    %v2312 = vsel %vm2310, 2, %v2304
    %2313 = vset.pattern.permute.xlu0 3
    %2314 = vperm.xlu0 %2313, %v2290
    %v2315 = vpop.permute.xlu0 %2314
    %v2317 = vadd.f32 %v2315, %v2077
    %vm2318 = vcmp.gt.f32.partialorder %v2317, %v2311
    %v2319 = vsel %vm2318, %v2317, %v2311
    %v2320 = vsel %vm2318, 3, %v2312
    %2321 = vset.pattern.permute.xlu0 4
    %2322 = vperm.xlu0 %2321, %v2290
    %v2323 = vpop.permute.xlu0 %2322
    %v2325 = vadd.f32 %v2323, %v2089
    %vm2326 = vcmp.gt.f32.partialorder %v2325, %v2319
    %v2327 = vsel %vm2326, %v2325, %v2319
    %v2328 = vsel %vm2326, 4, %v2320
    %2329 = vset.pattern.permute.xlu0 5
    %2330 = vperm.xlu0 %2329, %v2290
    %v2331 = vpop.permute.xlu0 %2330
    %v2333 = vadd.f32 %v2331, %v2101
    %vm2334 = vcmp.gt.f32.partialorder %v2333, %v2327
    %v2335 = vsel %vm2334, %v2333, %v2327
    %v2336 = vsel %vm2334, 5, %v2328
    %2337 = vset.pattern.permute.xlu0 6
    %2338 = vperm.xlu0 %2337, %v2290
    %v2339 = vpop.permute.xlu0 %2338
    %v2341 = vadd.f32 %v2339, %v2113
    %vm2342 = vcmp.gt.f32.partialorder %v2341, %v2335
    %v2343 = vsel %vm2342, %v2341, %v2335
    %v2344 = vsel %vm2342, 6, %v2336
    %2345 = vset.pattern.permute.xlu0 7
    %2346 = vperm.xlu0 %2345, %v2290
    %v2347 = vpop.permute.xlu0 %2346
    %v2349 = vadd.f32 %v2347, %v2125
    %vm2350 = vcmp.gt.f32.partialorder %v2349, %v2343
    %v2351 = vsel %vm2350, %v2349, %v2343
    %v2352 = vsel %vm2350, 7, %v2344
    %2353 = vst [vmem:[#allocation15 + $0x8] sm:$0x3] %v2352
    %v2354 = vld [vmem:[%s11 + $0x8] sm:$0x3]
    %vm2355 = vcmp.gt.f32.partialorder %v2354, 0.0
    %v2356 = vadd.f32 %v2351, %v2021
    %v2357 = vsel %vm2355, 1, 0
    %2358 = vset.pattern.permute.xlu0 0
    %2359 = vperm.xlu0 %2358, %v2357
    %v2360 = vpop.permute.xlu0 %2359
    %vm2361 = vcmp.eq.s32.totalorder %v2360, 1
    %v2362 = vsel %vm2361, %v2356, %v2290
    %2364 = vset.pattern.permute.xlu0 0
    %2365 = vperm.xlu0 %2364, %v2362
    %v2366 = vpop.permute.xlu0 %2365
    %v2368 = vadd.f32 %v2366, %v2044
    %2369 = vset.pattern.permute.xlu0 1
    %2370 = vperm.xlu0 %2369, %v2362
    %v2371 = vpop.permute.xlu0 %2370
    %v2373 = vadd.f32 %v2371, %v2053
    %vm2374 = vcmp.gt.f32.partialorder %v2373, %v2368
    %v2375 = vsel %vm2374, %v2373, %v2368
    %v2376 = vsel %vm2374, 1, 0
    %2377 = vset.pattern.permute.xlu0 2
    %2378 = vperm.xlu0 %2377, %v2362
    %v2379 = vpop.permute.xlu0 %2378
    %v2381 = vadd.f32 %v2379, %v2065
    %vm2382 = vcmp.gt.f32.partialorder %v2381, %v2375
    %v2383 = vsel %vm2382, %v2381, %v2375
    %v2384 = vsel %vm2382, 2, %v2376
    %2385 = vset.pattern.permute.xlu0 3
    %2386 = vperm.xlu0 %2385, %v2362
    %v2387 = vpop.permute.xlu0 %2386
    %v2389 = vadd.f32 %v2387, %v2077
    %vm2390 = vcmp.gt.f32.partialorder %v2389, %v2383
    %v2391 = vsel %vm2390, %v2389, %v2383
    %v2392 = vsel %vm2390, 3, %v2384
    %2393 = vset.pattern.permute.xlu0 4
    %2394 = vperm.xlu0 %2393, %v2362
    %v2395 = vpop.permute.xlu0 %2394
    %v2397 = vadd.f32 %v2395, %v2089
    %vm2398 = vcmp.gt.f32.partialorder %v2397, %v2391
    %v2399 = vsel %vm2398, %v2397, %v2391
    %v2400 = vsel %vm2398, 4, %v2392
    %2401 = vset.pattern.permute.xlu0 5
    %2402 = vperm.xlu0 %2401, %v2362
    %v2403 = vpop.permute.xlu0 %2402
    %v2405 = vadd.f32 %v2403, %v2101
    %vm2406 = vcmp.gt.f32.partialorder %v2405, %v2399
    %v2407 = vsel %vm2406, %v2405, %v2399
    %v2408 = vsel %vm2406, 5, %v2400
    %2409 = vset.pattern.permute.xlu0 6
    %2410 = vperm.xlu0 %2409, %v2362
    %v2411 = vpop.permute.xlu0 %2410
    %v2413 = vadd.f32 %v2411, %v2113
    %vm2414 = vcmp.gt.f32.partialorder %v2413, %v2407
    %v2415 = vsel %vm2414, %v2413, %v2407
    %v2416 = vsel %vm2414, 6, %v2408
    %2417 = vset.pattern.permute.xlu0 7
    %2418 = vperm.xlu0 %2417, %v2362
    %v2419 = vpop.permute.xlu0 %2418
    %v2421 = vadd.f32 %v2419, %v2125
    %vm2422 = vcmp.gt.f32.partialorder %v2421, %v2415
    %v2423 = vsel %vm2422, %v2421, %v2415
    %v2424 = vsel %vm2422, 7, %v2416
    %2425 = vst [vmem:[#allocation15 + $0xa] sm:$0x3] %v2424
    %v2426 = vld [vmem:[%s11 + $0xa] sm:$0x3]
    %vm2427 = vcmp.gt.f32.partialorder %v2426, 0.0
    %v2429 = vrot.slane %v2021, 2
    %v2431 = vadd.f32 %v2423, %v2429
    %v2432 = vsel %vm2427, 1, 0
    %2433 = vset.pattern.permute.xlu0 0
    %2434 = vperm.xlu0 %2433, %v2432
    %v2435 = vpop.permute.xlu0 %2434
    %vm2436 = vcmp.eq.s32.totalorder %v2435, 1
    %v2437 = vsel %vm2436, %v2431, %v2362
    %2439 = vset.pattern.permute.xlu0 0
    %2440 = vperm.xlu0 %2439, %v2437
    %v2441 = vpop.permute.xlu0 %2440
    %v2443 = vadd.f32 %v2441, %v2044
    %2444 = vset.pattern.permute.xlu0 1
    %2445 = vperm.xlu0 %2444, %v2437
    %v2446 = vpop.permute.xlu0 %2445
    %v2448 = vadd.f32 %v2446, %v2053
    %vm2449 = vcmp.gt.f32.partialorder %v2448, %v2443
    %v2450 = vsel %vm2449, %v2448, %v2443
    %v2451 = vsel %vm2449, 1, 0
    %2452 = vset.pattern.permute.xlu0 2
    %2453 = vperm.xlu0 %2452, %v2437
    %v2454 = vpop.permute.xlu0 %2453
    %v2456 = vadd.f32 %v2454, %v2065
    %vm2457 = vcmp.gt.f32.partialorder %v2456, %v2450
    %v2458 = vsel %vm2457, %v2456, %v2450
    %v2459 = vsel %vm2457, 2, %v2451
    %2460 = vset.pattern.permute.xlu0 3
    %2461 = vperm.xlu0 %2460, %v2437
    %v2462 = vpop.permute.xlu0 %2461
    %v2464 = vadd.f32 %v2462, %v2077
    %vm2465 = vcmp.gt.f32.partialorder %v2464, %v2458
    %v2466 = vsel %vm2465, %v2464, %v2458
    %v2467 = vsel %vm2465, 3, %v2459
    %2468 = vset.pattern.permute.xlu0 4
    %2469 = vperm.xlu0 %2468, %v2437
    %v2470 = vpop.permute.xlu0 %2469
    %v2472 = vadd.f32 %v2470, %v2089
    %vm2473 = vcmp.gt.f32.partialorder %v2472, %v2466
    %v2474 = vsel %vm2473, %v2472, %v2466
    %v2475 = vsel %vm2473, 4, %v2467
    %2476 = vset.pattern.permute.xlu0 5
    %2477 = vperm.xlu0 %2476, %v2437
    %v2478 = vpop.permute.xlu0 %2477
    %v2480 = vadd.f32 %v2478, %v2101
    %vm2481 = vcmp.gt.f32.partialorder %v2480, %v2474
    %v2482 = vsel %vm2481, %v2480, %v2474
    %v2483 = vsel %vm2481, 5, %v2475
    %2484 = vset.pattern.permute.xlu0 6
    %2485 = vperm.xlu0 %2484, %v2437
    %v2486 = vpop.permute.xlu0 %2485
    %v2488 = vadd.f32 %v2486, %v2113
    %vm2489 = vcmp.gt.f32.partialorder %v2488, %v2482
    %v2490 = vsel %vm2489, %v2488, %v2482
    %v2491 = vsel %vm2489, 6, %v2483
    %2492 = vset.pattern.permute.xlu0 7
    %2493 = vperm.xlu0 %2492, %v2437
    %v2494 = vpop.permute.xlu0 %2493
    %v2496 = vadd.f32 %v2494, %v2125
    %vm2497 = vcmp.gt.f32.partialorder %v2496, %v2490
    %v2498 = vsel %vm2497, %v2496, %v2490
    %v2499 = vsel %vm2497, 7, %v2491
    %2500 = vst [vmem:[#allocation15 + $0xc] sm:$0x3] %v2499
    %v2501 = vld [vmem:[%s11 + $0xc] sm:$0x3]
    %vm2502 = vcmp.gt.f32.partialorder %v2501, 0.0
    %v2503 = vrot.slane %v2021, 4
    %v2505 = vadd.f32 %v2498, %v2503
    %v2506 = vsel %vm2502, 1, 0
    %2507 = vset.pattern.permute.xlu0 0
    %2508 = vperm.xlu0 %2507, %v2506
    %v2509 = vpop.permute.xlu0 %2508
    %vm2510 = vcmp.eq.s32.totalorder %v2509, 1
    %v2511 = vsel %vm2510, %v2505, %v2437
    %2513 = vset.pattern.permute.xlu0 0
    %2514 = vperm.xlu0 %2513, %v2511
    %v2515 = vpop.permute.xlu0 %2514
    %v2517 = vadd.f32 %v2515, %v2044
    %2518 = vset.pattern.permute.xlu0 1
    %2519 = vperm.xlu0 %2518, %v2511
    %v2520 = vpop.permute.xlu0 %2519
    %v2522 = vadd.f32 %v2520, %v2053
    %vm2523 = vcmp.gt.f32.partialorder %v2522, %v2517
    %v2524 = vsel %vm2523, %v2522, %v2517
    %v2525 = vsel %vm2523, 1, 0
    %2526 = vset.pattern.permute.xlu0 2
    %2527 = vperm.xlu0 %2526, %v2511
    %v2528 = vpop.permute.xlu0 %2527
    %v2530 = vadd.f32 %v2528, %v2065
    %vm2531 = vcmp.gt.f32.partialorder %v2530, %v2524
    %v2532 = vsel %vm2531, %v2530, %v2524
    %v2533 = vsel %vm2531, 2, %v2525
    %2534 = vset.pattern.permute.xlu0 3
    %2535 = vperm.xlu0 %2534, %v2511
    %v2536 = vpop.permute.xlu0 %2535
    %v2538 = vadd.f32 %v2536, %v2077
    %vm2539 = vcmp.gt.f32.partialorder %v2538, %v2532
    %v2540 = vsel %vm2539, %v2538, %v2532
    %v2541 = vsel %vm2539, 3, %v2533
    %2542 = vset.pattern.permute.xlu0 4
    %2543 = vperm.xlu0 %2542, %v2511
    %v2544 = vpop.permute.xlu0 %2543
    %v2546 = vadd.f32 %v2544, %v2089
    %vm2547 = vcmp.gt.f32.partialorder %v2546, %v2540
    %v2548 = vsel %vm2547, %v2546, %v2540
    %v2549 = vsel %vm2547, 4, %v2541
    %2550 = vset.pattern.permute.xlu0 5
    %2551 = vperm.xlu0 %2550, %v2511
    %v2552 = vpop.permute.xlu0 %2551
    %v2554 = vadd.f32 %v2552, %v2101
    %vm2555 = vcmp.gt.f32.partialorder %v2554, %v2548
    %v2556 = vsel %vm2555, %v2554, %v2548
    %v2557 = vsel %vm2555, 5, %v2549
    %2558 = vset.pattern.permute.xlu0 6
    %2559 = vperm.xlu0 %2558, %v2511
    %v2560 = vpop.permute.xlu0 %2559
    %v2562 = vadd.f32 %v2560, %v2113
    %vm2563 = vcmp.gt.f32.partialorder %v2562, %v2556
    %v2564 = vsel %vm2563, %v2562, %v2556
    %v2565 = vsel %vm2563, 6, %v2557
    %2566 = vset.pattern.permute.xlu0 7
    %2567 = vperm.xlu0 %2566, %v2511
    %v2568 = vpop.permute.xlu0 %2567
    %v2570 = vadd.f32 %v2568, %v2125
    %vm2571 = vcmp.gt.f32.partialorder %v2570, %v2564
    %v2572 = vsel %vm2571, %v2570, %v2564
    %v2573 = vsel %vm2571, 7, %v2565
    %2574 = vst [vmem:[#allocation15 + $0xe] sm:$0x3] %v2573
    %v2575 = vld [vmem:[%s11 + $0xe] sm:$0x3]
    %vm2576 = vcmp.gt.f32.partialorder %v2575, 0.0
    %v2577 = vrot.slane %v2021, 6
    %v2579 = vadd.f32 %v2572, %v2577
    %v2580 = vsel %vm2576, 1, 0
    %2581 = vset.pattern.permute.xlu0 0
    %2582 = vperm.xlu0 %2581, %v2580
    %v2583 = vpop.permute.xlu0 %2582
    %vm2584 = vcmp.eq.s32.totalorder %v2583, 1
    %v2585 = vsel %vm2584, %v2579, %v2511
    %v2586 = vld [vmem:[%s9] sm:$0x1]
    %v2588 = vlaneseq
    %v2589 = vshrl.u32 %v2588, 7
    %v2590 = vsub.s32 0, %v2589
    %v2591 = vrot.slane %v2586, %v2590
    %v2593 = vadd.f32 %v2585, %v2591
    %2594 = vst [vmem:[#allocation13] sm:$0x3] %v2593
    // Predicated region
    $region70: #{tpu_custom_call.1} parent=1 // pred_check
      _
    $region71: #{tpu_custom_call.1} parent=1 // pred_check_branch
      %2596 = sbr.rel (0) target = $region73
    $region72: #{tpu_custom_call.1} parent=1 // pred_region
      %s2598 = ssub.s32 256, 256
      %2599 = vsyncadd [#allocation5], %s2598
      %s2600 = sshll.u32 [#allocation12], 4
      %s2601 = int_to_ptr.vmem [resolvable:$true] %s2600
      %2606 = dma.vmem_to_hbm [thread:$0]  %s2601, 256, %s12, [#allocation5], 128, 128, 8
    $region73: #{tpu_custom_call.1} parent=1 // pred_fallthru
      _
    // Predicated region
    $region74: #{tpu_custom_call.1} parent=1 // pred_check
      _
    $region75: #{tpu_custom_call.1} parent=1 // pred_check_branch
      %2608 = sbr.rel (0) target = $region77
    $region76: #{tpu_custom_call.1} parent=1 // pred_region
      %s2610 = ssub.s32 32, 32
      %2611 = vsyncadd [#allocation14], %s2610
      %s2613 = sshll.u32 [#allocation13], 4
      %s2614 = int_to_ptr.vmem [resolvable:$true] %s2613
      %2616 = dma.vmem_to_hbm [thread:$0]  %s2614, 32, %s13, [#allocation14]
    $region77: #{tpu_custom_call.1} parent=1 // pred_fallthru
      _
    // Predicated region
    $region78: #{tpu_custom_call.1} parent=1 // pred_check
      _
    $region79: #{tpu_custom_call.1} parent=1 // pred_check_branch
      %2618 = sbr.rel (0) target = $region81
    $region80: #{tpu_custom_call.1} parent=1 // pred_region
      %s2620 = ssub.s32 256, 256
      %2621 = vsyncadd [#allocation14], %s2620
      %s2622 = sshll.u32 [#allocation15], 4
      %s2623 = int_to_ptr.vmem [resolvable:$true] %s2622
      %2628 = dma.vmem_to_hbm [thread:$0]  %s2623, 256, %s14, [#allocation14], 128, 128, 8
    $region81: #{tpu_custom_call.1} parent=1 // pred_fallthru
      _
    // Predicated region
    $region82: #{tpu_custom_call.1} parent=1 // pred_check
      _
    $region83: #{tpu_custom_call.1} parent=1 // pred_check_branch
      %2630 = sbr.rel (0) target = $region85
    $region84: #{tpu_custom_call.1} parent=1 // pred_region
      %2631 = dma.done [#allocation5], 256
    $region85: #{tpu_custom_call.1} parent=1 // pred_fallthru
      _
    // Predicated region
    $region86: #{tpu_custom_call.1} parent=1 // pred_check
      _
    $region87: #{tpu_custom_call.1} parent=1 // pred_check_branch
      %2633 = sbr.rel (0) target = $region89
    $region88: #{tpu_custom_call.1} parent=1 // pred_region
      %2634 = dma.done [#allocation14], 32
    $region89: #{tpu_custom_call.1} parent=1 // pred_fallthru
      _
    // Predicated region
    $region90: #{tpu_custom_call.1} parent=1 // pred_check
      _
    $region91: #{tpu_custom_call.1} parent=1 // pred_check_branch
      %2636 = sbr.rel (0) target = $region93
    $region92: #{tpu_custom_call.1} parent=1 // pred_region
      %2637 = dma.done [#allocation14], 256
    $region93: #{tpu_custom_call.1} parent=1 // pred_fallthru
      _
    %2638 = vsyncpa [#allocation4], 1
    %2639 = vsyncpa [#allocation7], 1
    %2640 = vsyncpa [#allocation10], 1
    %2641 = vsyncpa [#allocation5], 1
    %2642 = vsyncpa [#allocation14], 1

</llo_original>
